<compile_context>
chip_gen: v7x
topology: tpu7x:2x2x1
jax: 0.10.0
libtpu: 0.0.40
codegen_flags: <defaults>
</compile_context>

<pallas_src>
import functools

import jax
import jax.numpy as jnp
import numpy as np
from jax.experimental import pallas as pl
from jax.experimental.pallas import tpu as pltpu


def embeddings_kernel(ids_ref,        # scalar prefetch: (N_pad,) int32 token ids in SMEM
                      feats_ref,      # (T, 4) f32: [age, abspos, segment, keep_mask]
                      ptab_ref,       # (8, H) f32: rows 0..3 seg table, 4..7 t2v params
                      alpha_ref,      # (3,)  f32 ReZero scalars in SMEM
                      tok_hbm_ref,    # (V, H) f32 token table, left in HBM (pl.ANY)
                      out_ref,        # (T, H)
                      gbuf,           # VMEM scratch (T, H) f32: gathered token rows
                      sem):           # DMA completion semaphore
    tile_rows, H = out_ref.shape
    base = pl.multiple_of(pl.program_id(0) * tile_rows, tile_rows)

    # 1) Kick off the token-row gather (HBM -> VMEM scratch), one small DMA per row.
    def _issue(r, carry):
        tid = ids_ref[base + r]
        pltpu.make_async_copy(tok_hbm_ref.at[tid], gbuf.at[r], sem).start()
        return carry
    jax.lax.fori_loop(0, tile_rows, _issue, 0)

    # 2) While the gather is in flight, do all work that does not need the tokens.
    feats = feats_ref[...]
    age = feats[:, 0:1]         # (T, 1)
    pos = feats[:, 1:2]
    segf = feats[:, 2:3]
    keep = feats[:, 3:4]        # 0.0 for global seq positions < 5 (and padded rows)

    w_age = ptab_ref[4:5, :]    # (1, H) packed [w | w0]
    b_age = ptab_ref[5:6, :]    # (1, H) packed [b | b0]
    w_abs = ptab_ref[6:7, :]
    b_abs = ptab_ref[7:8, :]

    a_age = alpha_ref[0]
    a_abs = alpha_ref[1]
    a_seg = alpha_ref[2]

    lin_age = age * w_age + b_age                       # (T, H)
    lin_abs = pos * w_abs + b_abs                       # (T, H)
    trig = a_age * jnp.cos(lin_age) + a_abs * jnp.sin(lin_abs)   # EUP
    lin = a_age * lin_age + a_abs * lin_abs
    # Time2Vec: periodic features in the first H-1 columns, linear comp in the last.
    is_last_col = jax.lax.broadcasted_iota(jnp.int32, (1, H), 1) == (H - 1)
    pe = jnp.where(is_last_col, lin, trig) * keep       # (T, H)

    # Segment embedding: 4-way VPU select from the 4-row mini-table (no MXU).
    seg = jnp.zeros_like(pe)
    for k in range(4):
        seg = seg + jnp.where(segf == float(k), ptab_ref[k:k + 1, :], 0.0)

    acc = pe + a_seg * seg

    # 3) Wait for the gathered token rows, add, and do one lane-dense store.
    def _wait(r, carry):
        pltpu.make_async_copy(tok_hbm_ref.at[0], gbuf.at[0], sem).wait()
        return carry
    jax.lax.fori_loop(0, tile_rows, _wait, 0)

    out_ref[...] = (gbuf[...] + acc).astype(out_ref.dtype)


@functools.partial(jax.jit, static_argnames=("tile_rows", "out_dtype"))
def embeddings_forward(tokens, position, age, segment, params, *,
                       tile_rows=128, out_dtype=jnp.float32):
    """Pallas-backed forward pass. Returns (embeddings, None) like the module."""
    B, S = tokens.shape
    V, H = params["tok_table"].shape
    N = B * S
    num_tiles = (N + tile_rows - 1) // tile_rows
    N_pad = num_tiles * tile_rows

    # Token ids (padded rows point at row 0, a valid index; their outputs are dropped).
    tok_ids = jnp.pad(tokens.reshape(N).astype(jnp.int32), (0, N_pad - N))

    # Packed per-row features: age, abspos, segment-as-float, keep mask (seq pos >= 5).
    seq_idx = jnp.tile(jnp.arange(S, dtype=jnp.int32), (B,))
    keep = (seq_idx >= 5).astype(jnp.float32)
    feats = jnp.stack([age.reshape(N).astype(jnp.float32),
                       position.reshape(N).astype(jnp.float32),
                       segment.reshape(N).astype(jnp.float32),
                       keep], axis=1)                       # (N, 4)
    feats = jnp.pad(feats, ((0, N_pad - N), (0, 0)))

    # (8, H) parameter block: rows 0..3 segment table, rows 4..7 = [w|w0],[b|b0] x2.
    w_age = jnp.concatenate([params["age_w"], params["age_w0"]], axis=1)
    b_age = jnp.concatenate([params["age_b"], params["age_b0"]], axis=1)
    w_abs = jnp.concatenate([params["abs_w"], params["abs_w0"]], axis=1)
    b_abs = jnp.concatenate([params["abs_b"], params["abs_b0"]], axis=1)
    ptab = jnp.concatenate([params["seg_table"].astype(jnp.float32),
                            w_age, b_age, w_abs, b_abs], axis=0).astype(jnp.float32)

    alphas = jnp.stack([params["a_age"], params["a_abs"], params["a_seg"]]
                       ).astype(jnp.float32)                # (3,) ReZero scalars

    grid_spec = pltpu.PrefetchScalarGridSpec(
        num_scalar_prefetch=1,                              # token ids -> SMEM
        grid=(num_tiles,),
        in_specs=[
            pl.BlockSpec((tile_rows, 4), lambda i, ids: (i, 0)),  # packed features
            pl.BlockSpec((8, H), lambda i, ids: (0, 0)),          # seg rows + t2v params
            pl.BlockSpec(memory_space=pltpu.MemorySpace.SMEM),    # ReZero alphas
            pl.BlockSpec(memory_space=pl.ANY),                    # token table in HBM
        ],
        out_specs=pl.BlockSpec((tile_rows, H), lambda i, ids: (i, 0)),
        scratch_shapes=[
            pltpu.VMEM((tile_rows, H), jnp.float32),              # gathered token rows
            pltpu.SemaphoreType.DMA,                              # gather completion sem
        ],
    )

    itemsize_out = jnp.dtype(out_dtype).itemsize
    cost = pl.CostEstimate(
        flops=24 * N_pad * H,
        transcendentals=2 * N_pad * H,
        bytes_accessed=N_pad * H * (4 + itemsize_out) + N_pad * 20 + 8 * H * 4,
    )

    out = pl.pallas_call(
        embeddings_kernel,
        out_shape=jax.ShapeDtypeStruct((N_pad, H), out_dtype),
        grid_spec=grid_spec,
        compiler_params=pltpu.CompilerParams(
            dimension_semantics=("parallel",),
            vmem_limit_bytes=32 * 1024 * 1024,
        ),
        cost_estimate=cost,
    )(tok_ids, feats, ptab, alphas, params["tok_table"].astype(jnp.float32))

    out = out[:N].reshape(B, S, H)
    # Dropout is identity at inference time.
    return out, None


def reference_forward(tokens, position, age, segment, params):
    """Pure-JAX mirror of the PyTorch forward (for validation)."""
    def t2v(tau, f, w, b, w0, b0):
        v1 = f(jnp.matmul(tau, w) + b)
        v2 = jnp.matmul(tau, w0) + b0
        return jnp.concatenate([v1, v2], axis=-1)

    tok = params["tok_table"][tokens]
    pe = t2v(age.astype(jnp.float32)[..., None], jnp.cos,
             params["age_w"], params["age_b"], params["age_w0"], params["age_b0"])
    pe = pe.at[:, :5].multiply(0.0)
    tok = tok + params["a_age"] * pe
    pe = t2v(position.astype(jnp.float32)[..., None], jnp.sin,
             params["abs_w"], params["abs_b"], params["abs_w0"], params["abs_b0"])
    pe = pe.at[:, :5].multiply(0.0)
    tok = tok + params["a_abs"] * pe
    seg = params["seg_table"][segment]
    tok = tok + params["a_seg"] * seg
    return tok


def init_params(key, vocab_size, hidden_size, rezero_fill=0.0):
    d = 0.01
    ks = jax.random.split(key, 10)
    u = lambda k, shape: jax.random.uniform(k, shape, jnp.float32, minval=-d, maxval=d)
    return {
        "tok_table": u(ks[0], (vocab_size, hidden_size)),
        "seg_table": u(ks[1], (4, hidden_size)),
        "age_w":  u(ks[2], (1, hidden_size - 1)),
        "age_b":  u(ks[3], (1, hidden_size - 1)),
        "age_w0": u(ks[4], (1, 1)),
        "age_b0": u(ks[5], (1, 1)),
        "abs_w":  u(ks[6], (1, hidden_size - 1)),
        "abs_b":  u(ks[7], (1, hidden_size - 1)),
        "abs_w0": u(ks[8], (1, 1)),
        "abs_b0": u(ks[9], (1, 1)),
        # ReZero(simple=True, fill=0) scalars
        "a_age": jnp.float32(rezero_fill),
        "a_abs": jnp.float32(rezero_fill),
        "a_seg": jnp.float32(rezero_fill),
    }


def _run_case(key, B, S, H, V, tile_rows, check_bf16=False):
    k_tok, k_seg, k_age, k_par = jax.random.split(key, 4)
    tokens = jax.random.randint(k_tok, (B, S), 0, V, dtype=jnp.int32)
    segment = jax.random.randint(k_seg, (B, S), 0, 4, dtype=jnp.int32)
    age = jax.random.randint(k_age, (B, S), 0, 90, dtype=jnp.int32).astype(jnp.float32)
    position = jnp.tile(jnp.arange(S, dtype=jnp.float32)[None, :], (B, 1))

    # Faithful init (ReZero alphas = 0, per fill=0 in the module).
    params = init_params(k_par, V, H, rezero_fill=0.0)
    out, _ = embeddings_forward(tokens, position, age, segment, params,
                                tile_rows=tile_rows)
    out = jax.block_until_ready(out)
    ref = reference_forward(tokens, position, age, segment, params)
    np.testing.assert_allclose(np.asarray(out), np.asarray(ref), rtol=1e-5, atol=1e-5)

    # Non-zero ReZero scalars exercise the Time2Vec / segment / keep-mask paths.
    params_nz = dict(params, a_age=jnp.float32(0.1), a_abs=jnp.float32(0.2),
                     a_seg=jnp.float32(0.3))
    out_nz, _ = embeddings_forward(tokens, position, age, segment, params_nz,
                                   tile_rows=tile_rows)
    out_nz = jax.block_until_ready(out_nz)
    ref_nz = reference_forward(tokens, position, age, segment, params_nz)
    np.testing.assert_allclose(np.asarray(out_nz), np.asarray(ref_nz),
                               rtol=1e-5, atol=1e-5)

    if check_bf16:
        out_bf, _ = embeddings_forward(tokens, position, age, segment, params_nz,
                                       tile_rows=tile_rows, out_dtype=jnp.bfloat16)
        out_bf = jax.block_until_ready(out_bf)
        np.testing.assert_allclose(np.asarray(out_bf).astype(np.float32),
                                   np.asarray(ref_nz), rtol=2e-2, atol=2e-2)


if __name__ == "__main__":
    key = jax.random.PRNGKey(0)
    k1, k2 = jax.random.split(key)
    # Small case: lane-dense hidden (H multiple of 128), single row tile.
    _run_case(k1, B=2, S=8, H=128, V=64, tile_rows=128)
    # Multi-tile case: row padding, keep-mask across tiles, bf16 output path.
    _run_case(k2, B=3, S=50, H=128, V=300, tile_rows=64, check_bf16=True)
    print("KERNEL_OK")
</pallas_src>

<mosaic_0001>
module attributes {stable_mosaic.version = 11 : i64} {
  func.func @embeddings_kernel(%arg0: i32, %arg1: memref<128xi32, #tpu.memory_space<smem>>, %arg2: memref<128x4xf32, #tpu.memory_space<vmem>>, %arg3: memref<8x128xf32, #tpu.memory_space<vmem>>, %arg4: memref<3xf32, #tpu.memory_space<smem>>, %arg5: memref<64x128xf32, #tpu.memory_space<any>>, %arg6: memref<128x128xf32, #tpu.memory_space<vmem>>, %arg7: memref<128x128xf32, #tpu.memory_space<vmem>>, %arg8: memref<!tpu.dma_semaphore, #tpu.memory_space<semaphore_mem>>) attributes {dimension_semantics = [#tpu.dimension_semantics<parallel>], iteration_bounds = array<i64: 1>, scalar_prefetch = 1 : i64, scratch_operands = 2 : i64, tpu.core_type = #tpu.core_type<tc>, window_params = [{transform_indices = @transform_0, window_bounds = array<i64: 128, 4>}, {pipeline_mode = #tpu.pipeline_mode<synchronous>, transform_indices = @transform_1, window_bounds = array<i64: 8, 128>}, {transform_indices = @transform_2, window_bounds = array<i64: 3>}, {}, {transform_indices = @transform_4, window_bounds = array<i64: 128, 128>}]} {
    %c128_i32 = arith.constant 128 : i32
    %0 = arith.muli %arg0, %c128_i32 : i32
    %1 = tpu.assume_multiple %0, 128 : i32
    %c0_i32 = arith.constant 0 : i32
    %c128_i32_0 = arith.constant 128 : i32
    %2 = arith.addi %c0_i32, %c128_i32_0 : i32
    %c1_i32 = arith.constant 1 : i32
    scf.for %arg9 = %c0_i32 to %2 step %c1_i32  : i32 {
      %93 = arith.addi %1, %arg9 : i32
      %94 = arith.index_cast %93 : i32 to index
      %95 = memref.load %arg1[%94] : memref<128xi32, #tpu.memory_space<smem>>
      %c0_i32_30 = arith.constant 0 : i32
      %96 = tpu.memref_slice %arg5[%95, %c0_i32_30] : memref<64x128xf32, #tpu.memory_space<any>> -> memref<1x128xf32, #tpu.memory_space<any>>
      %97 = tpu.memref_squeeze %96 : memref<1x128xf32, #tpu.memory_space<any>> -> memref<128xf32, #tpu.memory_space<any>>
      %c0_i32_31 = arith.constant 0 : i32
      %98 = tpu.memref_slice %arg7[%arg9, %c0_i32_31] : memref<128x128xf32, #tpu.memory_space<vmem>> -> memref<1x128xf32, #tpu.memory_space<vmem>>
      %99 = tpu.memref_squeeze %98 : memref<1x128xf32, #tpu.memory_space<vmem>> -> memref<128xf32, #tpu.memory_space<vmem>>
      tpu.enqueue_dma source(%97 : memref<128xf32, #tpu.memory_space<any>>) target(%99 : memref<128xf32, #tpu.memory_space<vmem>>) target_semaphore(%arg8 : memref<!tpu.dma_semaphore, #tpu.memory_space<semaphore_mem>>)
    }
    %c128_i32_1 = arith.constant 128 : i32
    %c0 = arith.constant 0 : index
    %c0_2 = arith.constant 0 : index
    %3 = vector.load %arg2[%c0, %c0_2] : memref<128x4xf32, #tpu.memory_space<vmem>>, vector<128x4xf32>
    %4 = vector.extract_strided_slice %3 {offsets = [0, 0], sizes = [128, 1], strides = [1, 1]} : vector<128x4xf32> to vector<128x1xf32>
    %5 = vector.extract_strided_slice %3 {offsets = [0, 1], sizes = [128, 1], strides = [1, 1]} : vector<128x4xf32> to vector<128x1xf32>
    %6 = vector.extract_strided_slice %3 {offsets = [0, 2], sizes = [128, 1], strides = [1, 1]} : vector<128x4xf32> to vector<128x1xf32>
    %7 = vector.extract_strided_slice %3 {offsets = [0, 3], sizes = [128, 1], strides = [1, 1]} : vector<128x4xf32> to vector<128x1xf32>
    %c4 = arith.constant 4 : index
    %c0_3 = arith.constant 0 : index
    %8 = vector.load %arg3[%c4, %c0_3] : memref<8x128xf32, #tpu.memory_space<vmem>>, vector<1x128xf32>
    %c5 = arith.constant 5 : index
    %c0_4 = arith.constant 0 : index
    %9 = vector.load %arg3[%c5, %c0_4] : memref<8x128xf32, #tpu.memory_space<vmem>>, vector<1x128xf32>
    %c6 = arith.constant 6 : index
    %c0_5 = arith.constant 0 : index
    %10 = vector.load %arg3[%c6, %c0_5] : memref<8x128xf32, #tpu.memory_space<vmem>>, vector<1x128xf32>
    %c7 = arith.constant 7 : index
    %c0_6 = arith.constant 0 : index
    %11 = vector.load %arg3[%c7, %c0_6] : memref<8x128xf32, #tpu.memory_space<vmem>>, vector<1x128xf32>
    %c0_7 = arith.constant 0 : index
    %12 = memref.load %arg4[%c0_7] : memref<3xf32, #tpu.memory_space<smem>>
    %c1 = arith.constant 1 : index
    %13 = memref.load %arg4[%c1] : memref<3xf32, #tpu.memory_space<smem>>
    %c2 = arith.constant 2 : index
    %14 = memref.load %arg4[%c2] : memref<3xf32, #tpu.memory_space<smem>>
    %15 = vector.broadcast %4 : vector<128x1xf32> to vector<128x128xf32>
    %16 = vector.broadcast %8 : vector<1x128xf32> to vector<128x128xf32>
    %17 = arith.mulf %15, %16 : vector<128x128xf32>
    %18 = vector.broadcast %9 : vector<1x128xf32> to vector<128x128xf32>
    %19 = arith.addf %17, %18 : vector<128x128xf32>
    %20 = vector.broadcast %5 : vector<128x1xf32> to vector<128x128xf32>
    %21 = vector.broadcast %10 : vector<1x128xf32> to vector<128x128xf32>
    %22 = arith.mulf %20, %21 : vector<128x128xf32>
    %23 = vector.broadcast %11 : vector<1x128xf32> to vector<128x128xf32>
    %24 = arith.addf %22, %23 : vector<128x128xf32>
    %25 = math.cos %19 : vector<128x128xf32>
    %26 = vector.broadcast %12 : f32 to vector<128x128xf32>
    %27 = arith.mulf %26, %25 : vector<128x128xf32>
    %28 = math.sin %24 : vector<128x128xf32>
    %29 = vector.broadcast %13 : f32 to vector<128x128xf32>
    %30 = arith.mulf %29, %28 : vector<128x128xf32>
    %31 = arith.addf %27, %30 : vector<128x128xf32>
    %32 = vector.broadcast %12 : f32 to vector<128x128xf32>
    %33 = arith.mulf %32, %19 : vector<128x128xf32>
    %34 = vector.broadcast %13 : f32 to vector<128x128xf32>
    %35 = arith.mulf %34, %24 : vector<128x128xf32>
    %36 = arith.addf %33, %35 : vector<128x128xf32>
    %37 = tpu.iota {dimensions = array<i32: 1>} : vector<1x128xi32>
    %c127_i32 = arith.constant 127 : i32
    %38 = vector.broadcast %c127_i32 : i32 to vector<1x128xi32>
    %39 = arith.cmpi eq, %37, %38 : vector<1x128xi32>
    %40 = vector.shape_cast %39 : vector<1x128xi1> to vector<1x128xi1>
    %41 = vector.broadcast %40 : vector<1x128xi1> to vector<128x128xi1>
    %42 = arith.select %41, %36, %31 : vector<128x128xi1>, vector<128x128xf32>
    %43 = vector.broadcast %7 : vector<128x1xf32> to vector<128x128xf32>
    %44 = arith.mulf %42, %43 : vector<128x128xf32>
    %cst = arith.constant 0.000000e+00 : f32
    %45 = vector.broadcast %cst : f32 to vector<128x128xf32>
    %cst_8 = arith.constant 0.000000e+00 : f32
    %46 = vector.broadcast %cst_8 : f32 to vector<128x1xf32>
    %47 = arith.cmpf oeq, %6, %46 : vector<128x1xf32>
    %c0_9 = arith.constant 0 : index
    %c0_10 = arith.constant 0 : index
    %48 = vector.load %arg3[%c0_9, %c0_10] : memref<8x128xf32, #tpu.memory_space<vmem>>, vector<1x128xf32>
    %cst_11 = arith.constant 0.000000e+00 : f32
    %49 = vector.shape_cast %47 : vector<128x1xi1> to vector<128x1xi1>
    %50 = vector.broadcast %49 : vector<128x1xi1> to vector<128x128xi1>
    %51 = vector.shape_cast %48 : vector<1x128xf32> to vector<1x128xf32>
    %52 = vector.broadcast %51 : vector<1x128xf32> to vector<128x128xf32>
    %53 = vector.broadcast %cst_11 : f32 to vector<128x128xf32>
    %54 = arith.select %50, %52, %53 : vector<128x128xi1>, vector<128x128xf32>
    %55 = arith.addf %45, %54 : vector<128x128xf32>
    %cst_12 = arith.constant 1.000000e+00 : f32
    %56 = vector.broadcast %cst_12 : f32 to vector<128x1xf32>
    %57 = arith.cmpf oeq, %6, %56 : vector<128x1xf32>
    %c1_13 = arith.constant 1 : index
    %c0_14 = arith.constant 0 : index
    %58 = vector.load %arg3[%c1_13, %c0_14] : memref<8x128xf32, #tpu.memory_space<vmem>>, vector<1x128xf32>
    %cst_15 = arith.constant 0.000000e+00 : f32
    %59 = vector.shape_cast %57 : vector<128x1xi1> to vector<128x1xi1>
    %60 = vector.broadcast %59 : vector<128x1xi1> to vector<128x128xi1>
    %61 = vector.shape_cast %58 : vector<1x128xf32> to vector<1x128xf32>
    %62 = vector.broadcast %61 : vector<1x128xf32> to vector<128x128xf32>
    %63 = vector.broadcast %cst_15 : f32 to vector<128x128xf32>
    %64 = arith.select %60, %62, %63 : vector<128x128xi1>, vector<128x128xf32>
    %65 = arith.addf %55, %64 : vector<128x128xf32>
    %cst_16 = arith.constant 2.000000e+00 : f32
    %66 = vector.broadcast %cst_16 : f32 to vector<128x1xf32>
    %67 = arith.cmpf oeq, %6, %66 : vector<128x1xf32>
    %c2_17 = arith.constant 2 : index
    %c0_18 = arith.constant 0 : index
    %68 = vector.load %arg3[%c2_17, %c0_18] : memref<8x128xf32, #tpu.memory_space<vmem>>, vector<1x128xf32>
    %cst_19 = arith.constant 0.000000e+00 : f32
    %69 = vector.shape_cast %67 : vector<128x1xi1> to vector<128x1xi1>
    %70 = vector.broadcast %69 : vector<128x1xi1> to vector<128x128xi1>
    %71 = vector.shape_cast %68 : vector<1x128xf32> to vector<1x128xf32>
    %72 = vector.broadcast %71 : vector<1x128xf32> to vector<128x128xf32>
    %73 = vector.broadcast %cst_19 : f32 to vector<128x128xf32>
    %74 = arith.select %70, %72, %73 : vector<128x128xi1>, vector<128x128xf32>
    %75 = arith.addf %65, %74 : vector<128x128xf32>
    %cst_20 = arith.constant 3.000000e+00 : f32
    %76 = vector.broadcast %cst_20 : f32 to vector<128x1xf32>
    %77 = arith.cmpf oeq, %6, %76 : vector<128x1xf32>
    %c3 = arith.constant 3 : index
    %c0_21 = arith.constant 0 : index
    %78 = vector.load %arg3[%c3, %c0_21] : memref<8x128xf32, #tpu.memory_space<vmem>>, vector<1x128xf32>
    %cst_22 = arith.constant 0.000000e+00 : f32
    %79 = vector.shape_cast %77 : vector<128x1xi1> to vector<128x1xi1>
    %80 = vector.broadcast %79 : vector<128x1xi1> to vector<128x128xi1>
    %81 = vector.shape_cast %78 : vector<1x128xf32> to vector<1x128xf32>
    %82 = vector.broadcast %81 : vector<1x128xf32> to vector<128x128xf32>
    %83 = vector.broadcast %cst_22 : f32 to vector<128x128xf32>
    %84 = arith.select %80, %82, %83 : vector<128x128xi1>, vector<128x128xf32>
    %85 = arith.addf %75, %84 : vector<128x128xf32>
    %86 = vector.broadcast %14 : f32 to vector<128x128xf32>
    %87 = arith.mulf %86, %85 : vector<128x128xf32>
    %88 = arith.addf %44, %87 : vector<128x128xf32>
    %c0_i32_23 = arith.constant 0 : i32
    %c128_i32_24 = arith.constant 128 : i32
    %89 = arith.addi %c0_i32_23, %c128_i32_24 : i32
    %c1_i32_25 = arith.constant 1 : i32
    scf.for %arg9 = %c0_i32_23 to %89 step %c1_i32_25  : i32 {
      %c0_i32_30 = arith.constant 0 : i32
      %c0_i32_31 = arith.constant 0 : i32
      %c0_i32_32 = arith.constant 0 : i32
      %93 = tpu.memref_slice %arg5[%c0_i32_30, %c0_i32_32] : memref<64x128xf32, #tpu.memory_space<any>> -> memref<1x128xf32, #tpu.memory_space<any>>
      %94 = tpu.memref_squeeze %93 : memref<1x128xf32, #tpu.memory_space<any>> -> memref<128xf32, #tpu.memory_space<any>>
      %c0_i32_33 = arith.constant 0 : i32
      %95 = tpu.memref_slice %arg7[%c0_i32_31, %c0_i32_33] : memref<128x128xf32, #tpu.memory_space<vmem>> -> memref<1x128xf32, #tpu.memory_space<vmem>>
      %96 = tpu.memref_squeeze %95 : memref<1x128xf32, #tpu.memory_space<vmem>> -> memref<128xf32, #tpu.memory_space<vmem>>
      tpu.wait_dma2 semaphore(%arg8 : memref<!tpu.dma_semaphore, #tpu.memory_space<semaphore_mem>>) src(%94 : memref<128xf32, #tpu.memory_space<any>>) dst(%96 : memref<128xf32, #tpu.memory_space<vmem>>)
    }
    %c0_26 = arith.constant 0 : index
    %c0_27 = arith.constant 0 : index
    %90 = vector.load %arg7[%c0_26, %c0_27] : memref<128x128xf32, #tpu.memory_space<vmem>>, vector<128x128xf32>
    %91 = arith.addf %90, %88 : vector<128x128xf32>
    %c0_28 = arith.constant 0 : index
    %c0_29 = arith.constant 0 : index
    %92 = vector.load %arg6[%c0_28, %c0_29] : memref<128x128xf32, #tpu.memory_space<vmem>>, vector<128x128xf32>
    tpu.vector_store %arg6[%c0_28, %c0_29], %91 {strides = array<i32>} : memref<128x128xf32, #tpu.memory_space<vmem>>, vector<128x128xf32>,
    return
  }
  func.func @transform_0(%arg0: i32, %arg1: memref<128xi32, #tpu.memory_space<smem>>) -> (i32, i32) {
    %c0_i32 = arith.constant 0 : i32
    %c0_i32_0 = arith.constant 0 : i32
    return %arg0, %c0_i32 : i32, i32
  }
  func.func @transform_1(%arg0: i32, %arg1: memref<128xi32, #tpu.memory_space<smem>>) -> (i32, i32) {
    %c0_i32 = arith.constant 0 : i32
    %c0_i32_0 = arith.constant 0 : i32
    %c0_i32_1 = arith.constant 0 : i32
    return %c0_i32, %c0_i32_0 : i32, i32
  }
  func.func @transform_2(%arg0: i32, %arg1: memref<128xi32, #tpu.memory_space<smem>>) -> i32 {
    %c0_i32 = arith.constant 0 : i32
    %c0_i32_0 = arith.constant 0 : i32
    return %c0_i32 : i32
  }
  func.func @transform_4(%arg0: i32, %arg1: memref<128xi32, #tpu.memory_space<smem>>) -> (i32, i32) {
    %c0_i32 = arith.constant 0 : i32
    %c0_i32_0 = arith.constant 0 : i32
    return %arg0, %c0_i32 : i32, i32
  }
}

</mosaic_0001>

<llo_original>
// kernel: embeddings_forward.1
$region0: #{embeddings_forward.1}
  #allocation0 [shape = 'u32[]', space=smem, size = 0x4, offset = 0x4, fixed_abs, tag = 'smem constant byte address 0x4 - core index']
  #allocation1 [shape = 'u32[144,128]{1,0:T(1,128)}', space=vmem, size = 0x12000, scoped, tag = 'internal scratch']
  #allocation2 [shape = 'f32[128,128]{1,0:T(8,128)}', space=vmem, size = 0x10000, scoped, tag = 'scratch operand']
  #allocation3 [shape = 's32[1]{0}', space=sflag, size = 0x4, scoped, tag = 'scratch operand']
  #allocation4 [shape = 's32[1]{0}', space=sflag, size = 0x4, scoped, tag = 'scoped memory for embeddings_forward.1']
  #allocation5 [shape = 'u8[512]{0}', space=smem, size = 0x200, scoped, tag = 'prefetched SMEM operand 0']
  #allocation8 [shape = 's32[]', space=sflag, size = 0x4, offset = 0, fixed_abs, tag = 'sflag constant byte address 0x0 - dummy sync flag']
  %s0 = inlined_call_operand.vmem [shape: s32[128], index: 0, kind: input, shape index: {}]
  %s1 = inlined_call_operand.vmem [shape: f32[128,4], index: 1, kind: input, shape index: {}]
  %s2 = inlined_call_operand.vmem [shape: f32[8,128], index: 2, kind: input, shape index: {}]
  %s3 = inlined_call_operand.vmem [shape: f32[3], index: 3, kind: input, shape index: {}]
  %s4 = inlined_call_operand.vmem [shape: f32[64,128], index: 4, kind: input, shape index: {}]
  %s5 = inlined_call_operand.vmem [shape: f32[128,128], index: 5, kind: output, shape index: {}]
  %s6 = sld [smem:[#allocation0]]
  $region70: #{embeddings_forward.1} parent=0
    _
  %s8 = ssub.s32 1, %s6
  %s9 = scalar_select 0, %s8, %s6
  %s10 = sshll.u32 %s0, 4
  %s11 = int_to_ptr.vmem [resolvable:$true] %s10
  %13 = dma.vmem_to_smem %s11, 16, [#allocation5], [#allocation4]
  %14 = dma.done [#allocation4], 16
  %15 = sfence
  $region1: #{embeddings_forward.1} parent=0
    #allocation6 [shape = 'u8[512]{0}', space=smem, size = 0x200, scoped, tag = 'input window, operand 3, single buffered']
    #allocation7 [shape = 's32[1]{0}', space=sflag, size = 0x4, scoped, tag = 'scoped memory for embeddings_forward.1']
    %16 = vsyncpa [#allocation7], 0
    // Predicated region
    $region2: #{embeddings_forward.1} parent=1 // pred_check
      _
    $region3: #{embeddings_forward.1} parent=1 // pred_check_branch
      %18 = sbr.rel (0) target = $region5
    $region4: #{embeddings_forward.1} parent=1 // pred_region
      _
    $region5: #{embeddings_forward.1} parent=1 // pred_fallthru
      _
    // Predicated region
    $region6: #{embeddings_forward.1} parent=1 // pred_check
      _
    $region7: #{embeddings_forward.1} parent=1 // pred_check_branch
      %20 = sbr.rel (0) target = $region9
    $region8: #{embeddings_forward.1} parent=1 // pred_region
      _
    $region9: #{embeddings_forward.1} parent=1 // pred_fallthru
      _
    // Predicated region
    $region10: #{embeddings_forward.1} parent=1 // pred_check
      _
    $region11: #{embeddings_forward.1} parent=1 // pred_check_branch
      %22 = sbr.rel (0) target = $region13
    $region12: #{embeddings_forward.1} parent=1 // pred_region
      %s24 = ssub.s32 16, 16
      %25 = vsyncadd [#allocation7], %s24
      %s27 = sshll.u32 %s3, 4
      %s28 = int_to_ptr.vmem [resolvable:$true] %s27
      %30 = dma.vmem_to_smem %s28, 16, [#allocation6], [#allocation7]
    $region13: #{embeddings_forward.1} parent=1 // pred_fallthru
      _
    // Predicated region
    $region14: #{embeddings_forward.1} parent=1 // pred_check
      _
    $region15: #{embeddings_forward.1} parent=1 // pred_check_branch
      %32 = sbr.rel (0) target = $region17
    $region16: #{embeddings_forward.1} parent=1 // pred_region
      %33 = dma.done [#allocation7], 16
    $region17: #{embeddings_forward.1} parent=1 // pred_fallthru
      _
    %34 = sfence
    %s35 = smul.u32 0, 128
    loop: start=0, step=1, limit=128
    $region18: #{embeddings_forward.1} parent=1 // loop_pre_header
      _
    $region19: #{embeddings_forward.1} parent=1 // loop_header
      %s37 = sphi 0, %s41
      %p38 = scmp.ge.s32.totalorder %s37, 128
    $region20: #{embeddings_forward.1} parent=1 // loop_header_branch
      %40 = sbr.rel (%p38) target = $region24
    $region21: #{embeddings_forward.1} parent=1 // loop_body
      %s42 = sadd.s32 %s35, %s37
      %s43 = sld [smem:[#allocation5 + %s42]]
      %s44 = scalar_lea.vmem %s4, %s43
      %s45 = scalar_lea.vmem [#allocation2], %s37
      %p47 = scmp.lt.u32.totalorder 1, 8
      %p48 = pneg %p47
      // Predicated region
      $region25: #{embeddings_forward.1} parent=21 // pred_check
        _
      $region26: #{embeddings_forward.1} parent=21 // pred_check_branch
        %50 = sbr.rel (%p47) target = $region28
      $region27: #{embeddings_forward.1} parent=21 // pred_region
        %s65 = sand.u32 1, 7
        %p66 = scmp.eq.s32.totalorder %s65, 0
        %p67 = pneg %p66
        // Predicated region
        $region40: #{embeddings_forward.1} parent=27 // pred_check
          _
        $region41: #{embeddings_forward.1} parent=27 // pred_check_branch
          %69 = sbr.rel (%p66) target = $region43
        $region42: #{embeddings_forward.1} parent=27 // pred_region
          %s70 = sand.u32 1, 7
          %s71 = ssub.s32 1, %s70
          %s72 = scalar_lea.vmem %s44, %s71
          %s73 = ssub.s32 1, %s70
          %s74 = scalar_lea.vmem %s45, %s73 [#allocation2]
          %s75 = sshllo.u32 0, %s70
          loop: start=0, step=1, limit=1
          $region44: #{embeddings_forward.1} parent=42 // loop_pre_header
            _
          $region45: #{embeddings_forward.1} parent=42 // loop_header
            %s77 = sphi 0, %s81
            %p78 = scmp.ge.s32.totalorder %s77, 1
            %s82 = sphi %s72, %s72
            %s83 = sphi %s74, %s74
          $region46: #{embeddings_forward.1} parent=42 // loop_header_branch
            %80 = sbr.rel (%p78) target = $region50
          $region47: #{embeddings_forward.1} parent=42 // loop_body
            %v84 = vld [vmem:[%s82] sm:%s75]
            %85 = vst [vmem:[%s83] sm:%s75] %v84
          $region48: #{embeddings_forward.1} parent=42 // loop_footer
            %s81 = sadd.s32 1, %s77
          $region49: #{embeddings_forward.1} parent=42 // loop_footer_branch
            %76 = sbr.rel target = $region45
          $region50: #{embeddings_forward.1} parent=42 // loop_exit
            _
        $region43: #{embeddings_forward.1} parent=27 // pred_fallthru
          _
      $region28: #{embeddings_forward.1} parent=21 // pred_fallthru
        _
      // Predicated region
      $region29: #{embeddings_forward.1} parent=21 // pred_check
        %p51 = pneg %p47
      $region30: #{embeddings_forward.1} parent=21 // pred_check_branch
        %53 = sbr.rel (%p51) target = $region32
      $region31: #{embeddings_forward.1} parent=21 // pred_region
        %s54 = sshllo.u32 0, 1
        loop: start=0, step=1, limit=1
        $region33: #{embeddings_forward.1} parent=31 // loop_pre_header
          _
        $region34: #{embeddings_forward.1} parent=31 // loop_header
          %s56 = sphi 0, %s60
          %p57 = scmp.ge.s32.totalorder %s56, 1
          %s61 = sphi %s44, %s44
          %s62 = sphi %s45, %s45
        $region35: #{embeddings_forward.1} parent=31 // loop_header_branch
          %59 = sbr.rel (%p57) target = $region39
        $region36: #{embeddings_forward.1} parent=31 // loop_body
          %v63 = vld [vmem:[%s61] sm:%s54]
          %64 = vst [vmem:[%s62] sm:%s54] %v63
        $region37: #{embeddings_forward.1} parent=31 // loop_footer
          %s60 = sadd.s32 1, %s56
        $region38: #{embeddings_forward.1} parent=31 // loop_footer_branch
          %55 = sbr.rel target = $region34
        $region39: #{embeddings_forward.1} parent=31 // loop_exit
          _
      $region32: #{embeddings_forward.1} parent=21 // pred_fallthru
        _
      // Predicated region
      $region51: #{embeddings_forward.1} parent=21 // pred_check
        _
      $region52: #{embeddings_forward.1} parent=21 // pred_check_branch
        %88 = sbr.rel (0) target = $region54
      $region53: #{embeddings_forward.1} parent=21 // pred_region
        %89 = vsyncadd [#allocation3], 16
      $region54: #{embeddings_forward.1} parent=21 // pred_fallthru
        _
    $region22: #{embeddings_forward.1} parent=1 // loop_footer
      %s41 = sadd.s32 1, %s37
    $region23: #{embeddings_forward.1} parent=1 // loop_footer_branch
      %36 = sbr.rel target = $region19
    $region24: #{embeddings_forward.1} parent=1 // loop_exit
      _
    %v90 = vld [vmem:[%s1] sm:$0xff]
    %v91 = vld [vmem:[%s1 + $0x8] sm:$0xff]
    %v92 = vld [vmem:[%s1 + $0x10] sm:$0xff]
    %v93 = vld [vmem:[%s1 + $0x18] sm:$0xff]
    %v94 = vld [vmem:[%s1 + $0x20] sm:$0xff]
    %v95 = vld [vmem:[%s1 + $0x28] sm:$0xff]
    %v96 = vld [vmem:[%s1 + $0x30] sm:$0xff]
    %v97 = vld [vmem:[%s1 + $0x38] sm:$0xff]
    %v98 = vld [vmem:[%s1 + $0x40] sm:$0xff]
    %v99 = vld [vmem:[%s1 + $0x48] sm:$0xff]
    %v100 = vld [vmem:[%s1 + $0x50] sm:$0xff]
    %v101 = vld [vmem:[%s1 + $0x58] sm:$0xff]
    %v102 = vld [vmem:[%s1 + $0x60] sm:$0xff]
    %v103 = vld [vmem:[%s1 + $0x68] sm:$0xff]
    %v104 = vld [vmem:[%s1 + $0x70] sm:$0xff]
    %v105 = vld [vmem:[%s1 + $0x78] sm:$0xff]
    %v106 = vld [vmem:[%s2 + $0x4] sm:$0x1]
    %v107 = vld [vmem:[%s2 + $0x5] sm:$0x1]
    %v108 = vld [vmem:[%s2 + $0x6] sm:$0x1]
    %v109 = vld [vmem:[%s2 + $0x7] sm:$0x1]
    %s110 = sld [smem:[#allocation6]]
    %s111 = sld [smem:[#allocation6 + $0x1]]
    %s112 = sld [smem:[#allocation6 + $0x2]]
    %114 = vset.pattern.permute.xlu0 0
    %115 = vperm.xlu0 %114, %v90
    %v116 = vpop.permute.xlu0 %115
    %119 = vset.pattern.permute.xlu0 0
    %120 = vperm.xlu0 %119, %v91
    %v121 = vpop.permute.xlu0 %120
    %124 = vset.pattern.permute.xlu0 0
    %125 = vperm.xlu0 %124, %v92
    %v126 = vpop.permute.xlu0 %125
    %129 = vset.pattern.permute.xlu0 0
    %130 = vperm.xlu0 %129, %v93
    %v131 = vpop.permute.xlu0 %130
    %134 = vset.pattern.permute.xlu0 0
    %135 = vperm.xlu0 %134, %v94
    %v136 = vpop.permute.xlu0 %135
    %139 = vset.pattern.permute.xlu0 0
    %140 = vperm.xlu0 %139, %v95
    %v141 = vpop.permute.xlu0 %140
    %144 = vset.pattern.permute.xlu0 0
    %145 = vperm.xlu0 %144, %v96
    %v146 = vpop.permute.xlu0 %145
    %149 = vset.pattern.permute.xlu0 0
    %150 = vperm.xlu0 %149, %v97
    %v151 = vpop.permute.xlu0 %150
    %154 = vset.pattern.permute.xlu0 0
    %155 = vperm.xlu0 %154, %v98
    %v156 = vpop.permute.xlu0 %155
    %159 = vset.pattern.permute.xlu0 0
    %160 = vperm.xlu0 %159, %v99
    %v161 = vpop.permute.xlu0 %160
    %164 = vset.pattern.permute.xlu0 0
    %165 = vperm.xlu0 %164, %v100
    %v166 = vpop.permute.xlu0 %165
    %169 = vset.pattern.permute.xlu0 0
    %170 = vperm.xlu0 %169, %v101
    %v171 = vpop.permute.xlu0 %170
    %174 = vset.pattern.permute.xlu0 0
    %175 = vperm.xlu0 %174, %v102
    %v176 = vpop.permute.xlu0 %175
    %179 = vset.pattern.permute.xlu0 0
    %180 = vperm.xlu0 %179, %v103
    %v181 = vpop.permute.xlu0 %180
    %184 = vset.pattern.permute.xlu0 0
    %185 = vperm.xlu0 %184, %v104
    %v186 = vpop.permute.xlu0 %185
    %189 = vset.pattern.permute.xlu0 0
    %190 = vperm.xlu0 %189, %v105
    %v191 = vpop.permute.xlu0 %190
    %v193 = vlaneseq
    %v194 = vshrl.u32 %v193, 7
    %v195 = vsub.s32 0, %v194
    %v196 = vrot.slane %v106, %v195
    %v197 = vmul.f32 %v116, %v196
    %v198 = vmul.f32 %v121, %v196
    %v199 = vmul.f32 %v126, %v196
    %v200 = vmul.f32 %v131, %v196
    %v201 = vmul.f32 %v136, %v196
    %v202 = vmul.f32 %v141, %v196
    %v203 = vmul.f32 %v146, %v196
    %v204 = vmul.f32 %v151, %v196
    %v205 = vmul.f32 %v156, %v196
    %v206 = vmul.f32 %v161, %v196
    %v207 = vmul.f32 %v166, %v196
    %v208 = vmul.f32 %v171, %v196
    %v209 = vmul.f32 %v176, %v196
    %v210 = vmul.f32 %v181, %v196
    %v211 = vmul.f32 %v186, %v196
    %v212 = vmul.f32 %v191, %v196
    %v213 = vlaneseq
    %v214 = vshrl.u32 %v213, 7
    %v215 = vsub.s32 0, %v214
    %v216 = vrot.slane %v107, %v215
    %v217 = vadd.f32 %v197, %v216
    %v218 = vadd.f32 %v198, %v216
    %v219 = vadd.f32 %v199, %v216
    %v220 = vadd.f32 %v200, %v216
    %v221 = vadd.f32 %v201, %v216
    %v222 = vadd.f32 %v202, %v216
    %v223 = vadd.f32 %v203, %v216
    %v224 = vadd.f32 %v204, %v216
    %v225 = vadd.f32 %v205, %v216
    %v226 = vadd.f32 %v206, %v216
    %v227 = vadd.f32 %v207, %v216
    %v228 = vadd.f32 %v208, %v216
    %v229 = vadd.f32 %v209, %v216
    %v230 = vadd.f32 %v210, %v216
    %v231 = vadd.f32 %v211, %v216
    %v232 = vadd.f32 %v212, %v216
    %233 = vset.pattern.permute.xlu0 1
    %234 = vperm.xlu0 %233, %v90
    %v235 = vpop.permute.xlu0 %234
    %237 = vset.pattern.permute.xlu0 1
    %238 = vperm.xlu0 %237, %v91
    %v239 = vpop.permute.xlu0 %238
    %241 = vset.pattern.permute.xlu0 1
    %242 = vperm.xlu0 %241, %v92
    %v243 = vpop.permute.xlu0 %242
    %245 = vset.pattern.permute.xlu0 1
    %246 = vperm.xlu0 %245, %v93
    %v247 = vpop.permute.xlu0 %246
    %249 = vset.pattern.permute.xlu0 1
    %250 = vperm.xlu0 %249, %v94
    %v251 = vpop.permute.xlu0 %250
    %253 = vset.pattern.permute.xlu0 1
    %254 = vperm.xlu0 %253, %v95
    %v255 = vpop.permute.xlu0 %254
    %257 = vset.pattern.permute.xlu0 1
    %258 = vperm.xlu0 %257, %v96
    %v259 = vpop.permute.xlu0 %258
    %261 = vset.pattern.permute.xlu0 1
    %262 = vperm.xlu0 %261, %v97
    %v263 = vpop.permute.xlu0 %262
    %265 = vset.pattern.permute.xlu0 1
    %266 = vperm.xlu0 %265, %v98
    %v267 = vpop.permute.xlu0 %266
    %269 = vset.pattern.permute.xlu0 1
    %270 = vperm.xlu0 %269, %v99
    %v271 = vpop.permute.xlu0 %270
    %273 = vset.pattern.permute.xlu0 1
    %274 = vperm.xlu0 %273, %v100
    %v275 = vpop.permute.xlu0 %274
    %277 = vset.pattern.permute.xlu0 1
    %278 = vperm.xlu0 %277, %v101
    %v279 = vpop.permute.xlu0 %278
    %281 = vset.pattern.permute.xlu0 1
    %282 = vperm.xlu0 %281, %v102
    %v283 = vpop.permute.xlu0 %282
    %285 = vset.pattern.permute.xlu0 1
    %286 = vperm.xlu0 %285, %v103
    %v287 = vpop.permute.xlu0 %286
    %289 = vset.pattern.permute.xlu0 1
    %290 = vperm.xlu0 %289, %v104
    %v291 = vpop.permute.xlu0 %290
    %293 = vset.pattern.permute.xlu0 1
    %294 = vperm.xlu0 %293, %v105
    %v295 = vpop.permute.xlu0 %294
    %v297 = vlaneseq
    %v298 = vshrl.u32 %v297, 7
    %v299 = vsub.s32 0, %v298
    %v300 = vrot.slane %v108, %v299
    %v301 = vmul.f32 %v235, %v300
    %v302 = vmul.f32 %v239, %v300
    %v303 = vmul.f32 %v243, %v300
    %v304 = vmul.f32 %v247, %v300
    %v305 = vmul.f32 %v251, %v300
    %v306 = vmul.f32 %v255, %v300
    %v307 = vmul.f32 %v259, %v300
    %v308 = vmul.f32 %v263, %v300
    %v309 = vmul.f32 %v267, %v300
    %v310 = vmul.f32 %v271, %v300
    %v311 = vmul.f32 %v275, %v300
    %v312 = vmul.f32 %v279, %v300
    %v313 = vmul.f32 %v283, %v300
    %v314 = vmul.f32 %v287, %v300
    %v315 = vmul.f32 %v291, %v300
    %v316 = vmul.f32 %v295, %v300
    %v317 = vlaneseq
    %v318 = vshrl.u32 %v317, 7
    %v319 = vsub.s32 0, %v318
    %v320 = vrot.slane %v109, %v319
    %v321 = vadd.f32 %v301, %v320
    %v322 = vadd.f32 %v302, %v320
    %v323 = vadd.f32 %v303, %v320
    %v324 = vadd.f32 %v304, %v320
    %v325 = vadd.f32 %v305, %v320
    %v326 = vadd.f32 %v306, %v320
    %v327 = vadd.f32 %v307, %v320
    %v328 = vadd.f32 %v308, %v320
    %v329 = vadd.f32 %v309, %v320
    %v330 = vadd.f32 %v310, %v320
    %v331 = vadd.f32 %v311, %v320
    %v332 = vadd.f32 %v312, %v320
    %v333 = vadd.f32 %v313, %v320
    %v334 = vadd.f32 %v314, %v320
    %v335 = vadd.f32 %v315, %v320
    %v336 = vadd.f32 %v316, %v320
    %v337 = vand.u32 2147483647, %v217
    %vm338 = vcmp.le.f32.partialorder %v337, 0.7853982
    %vm339 = vcmp.lt.s32.totalorder %v217, 0
    %v340 = vand.u32 %v217, 2139095040
    %v341 = vshrl.u32 %v340, 23
    %v342 = vsub.s32 %v341, 127
    %v343 = vand.u32 2147483647, %v217
    %v344 = vand.u32 %v343, 8388607
    %v345 = vor.u32 %v344, 8388608
    %v346 = vsub.s32 0, %v345
    %v347 = vadd.s32 %v342, 1
    %vm348 = vcmp.gt.s32.totalorder %v347, 0
    %v349 = vsel %vm348, %v347, 0
    %v350 = vshrl.u32 %v349, 5
    %v351 = vand.u32 %v349, 31
    %v352 = vsub.s32 32, %v351
    %v353 = vshrl.u32 683565275, %v352
    %v354 = vshll.u32 683565275, %v351
    %v355 = vshrl.u32 2475754826, %v352
    %v356 = vor.u32 %v354, %v355
    %v357 = vshll.u32 2475754826, %v351
    %v358 = vshrl.u32 2131351028, %v352
    %v359 = vor.u32 %v357, %v358
    %v360 = vshll.u32 2131351028, %v351
    %v361 = vshrl.u32 2102212464, %v352
    %v362 = vor.u32 %v360, %v361
    %v363 = vshll.u32 2102212464, %v351
    %v364 = vshrl.u32 920167782, %v352
    %v365 = vor.u32 %v363, %v364
    %v366 = vshll.u32 920167782, %v351
    %v367 = vshrl.u32 1326507024, %v352
    %v368 = vor.u32 %v366, %v367
    %vm369 = vcmp.lt.s32.totalorder %v350, 1
    %vm370 = vcmp.lt.s32.totalorder %v350, 2
    %vm371 = vcmp.lt.s32.totalorder %v350, 3
    %vm372 = vcmp.lt.s32.totalorder %v350, 4
    %v373 = vsel %vm369, %v353, %v356
    %v374 = vsel %vm372, %v362, 2102212464
    %v375 = vsel %vm371, %v359, %v374
    %v376 = vsel %vm370, %v373, %v375
    %v377 = vsel %vm369, %v356, %v359
    %v378 = vsel %vm372, %v365, 920167782
    %v379 = vsel %vm371, %v362, %v378
    %v380 = vsel %vm370, %v377, %v379
    %v381 = vsel %vm369, %v359, %v362
    %v382 = vsel %vm372, %v368, 1326507024
    %v383 = vsel %vm371, %v365, %v382
    %v384 = vsel %vm370, %v381, %v383
    %v385 = vshll.u32 %v345, 8
    %v386 = vmul.u32.u64.compose %v385, %v384
    %v387 = vextract.low.u32 %v386
    %v388 = vextract.high.u32 %v386
    %v389 = vmul.u32.u64.compose %v385, %v380
    %v390 = vextract.low.u32 %v389
    %v391 = vextract.high.u32 %v389
    %v392 = vmul.u32 %v385, %v376
    %v393 = vadd.s32 %v388, %v390
    %vm394 = vc.u32 %v388, %v390
    %v395 = vadd.s32 %v391, 1
    %v396 = vsel %vm394, %v395, %v391
    %v397 = vadd.s32 %v392, %v396
    %v398 = vadd.s32 %v397, 536870912
    %v399 = vshrl.u32 %v398, 30
    %v400 = vshll.u32 %v399, 30
    %v401 = vsub.s32 %v397, %v400
    %vm402 = vcmp.lt.s32.totalorder %v401, 0
    %v403 = vsub.s32 0, %v401
    %v404 = vsel %vm402, %v403, %v401
    %v405 = vclz %v404
    %v406 = vsub.s32 %v405, 2
    %vm407 = vcmp.gt.s32.totalorder 0, %v406
    %v408 = vsel %vm407, 0, %v406
    %v409 = vsub.s32 32, %v408
    %v410 = vshll.u32 %v401, %v408
    %v411 = vshrl.u32 %v393, %v409
    %v412 = vor.u32 %v410, %v411
    %v413 = vsub.s32 4294967266, %v408
    %v414 = vadd.s32 %v413, 127
    %v415 = vshll.u32 %v414, 23
    %v416 = vor.u32 4788187, %v415
    %v417 = vand.u32 2147483647, %v416
    %v419 = vcvt.s32.f32 %v412
    %v420 = vmul.f32 %v419, %v417
    %v421 = vxor.u32 %v420, 2147483648
    %v422 = vsel %vm339, %v421, %v420
    %v423 = vsub.s32 4, %v399
    %v424 = vsel %vm339, %v423, %v399
    %v425 = vsel %vm338, %v217, %v422
    %v426 = vsel %vm338, 0, %v424
    %v427 = vcosq.f32.pop %v425
    %v428 = vsinq.f32.pop %v425
    %vm429 = vweird.f32 %v217
    %v430 = vand.u32 %v426, 3
    %vm431 = vcmp.lt.s32.totalorder %v430, 2
    %vm432 = vcmp.eq.s32.totalorder %v430, 0
    %v433 = vxor.u32 %v428, 2147483648
    %v434 = vsel %vm432, %v427, %v433
    %vm435 = vcmp.eq.s32.totalorder %v430, 2
    %v436 = vxor.u32 %v427, 2147483648
    %v437 = vsel %vm435, %v436, %v428
    %v438 = vsel %vm431, %v434, %v437
    %v439 = vsel %vm429, nan, %v438
    %v440 = vand.u32 2147483647, %v218
    %vm441 = vcmp.le.f32.partialorder %v440, 0.7853982
    %vm442 = vcmp.lt.s32.totalorder %v218, 0
    %v443 = vand.u32 %v218, 2139095040
    %v444 = vshrl.u32 %v443, 23
    %v445 = vsub.s32 %v444, 127
    %v446 = vand.u32 2147483647, %v218
    %v447 = vand.u32 %v446, 8388607
    %v448 = vor.u32 %v447, 8388608
    %v449 = vsub.s32 0, %v448
    %v450 = vadd.s32 %v445, 1
    %vm451 = vcmp.gt.s32.totalorder %v450, 0
    %v452 = vsel %vm451, %v450, 0
    %v453 = vshrl.u32 %v452, 5
    %v454 = vand.u32 %v452, 31
    %v455 = vsub.s32 32, %v454
    %v456 = vshrl.u32 683565275, %v455
    %v457 = vshll.u32 683565275, %v454
    %v458 = vshrl.u32 2475754826, %v455
    %v459 = vor.u32 %v457, %v458
    %v460 = vshll.u32 2475754826, %v454
    %v461 = vshrl.u32 2131351028, %v455
    %v462 = vor.u32 %v460, %v461
    %v463 = vshll.u32 2131351028, %v454
    %v464 = vshrl.u32 2102212464, %v455
    %v465 = vor.u32 %v463, %v464
    %v466 = vshll.u32 2102212464, %v454
    %v467 = vshrl.u32 920167782, %v455
    %v468 = vor.u32 %v466, %v467
    %v469 = vshll.u32 920167782, %v454
    %v470 = vshrl.u32 1326507024, %v455
    %v471 = vor.u32 %v469, %v470
    %vm472 = vcmp.lt.s32.totalorder %v453, 1
    %vm473 = vcmp.lt.s32.totalorder %v453, 2
    %vm474 = vcmp.lt.s32.totalorder %v453, 3
    %vm475 = vcmp.lt.s32.totalorder %v453, 4
    %v476 = vsel %vm472, %v456, %v459
    %v477 = vsel %vm475, %v465, 2102212464
    %v478 = vsel %vm474, %v462, %v477
    %v479 = vsel %vm473, %v476, %v478
    %v480 = vsel %vm472, %v459, %v462
    %v481 = vsel %vm475, %v468, 920167782
    %v482 = vsel %vm474, %v465, %v481
    %v483 = vsel %vm473, %v480, %v482
    %v484 = vsel %vm472, %v462, %v465
    %v485 = vsel %vm475, %v471, 1326507024
    %v486 = vsel %vm474, %v468, %v485
    %v487 = vsel %vm473, %v484, %v486
    %v488 = vshll.u32 %v448, 8
    %v489 = vmul.u32.u64.compose %v488, %v487
    %v490 = vextract.low.u32 %v489
    %v491 = vextract.high.u32 %v489
    %v492 = vmul.u32.u64.compose %v488, %v483
    %v493 = vextract.low.u32 %v492
    %v494 = vextract.high.u32 %v492
    %v495 = vmul.u32 %v488, %v479
    %v496 = vadd.s32 %v491, %v493
    %vm497 = vc.u32 %v491, %v493
    %v498 = vadd.s32 %v494, 1
    %v499 = vsel %vm497, %v498, %v494
    %v500 = vadd.s32 %v495, %v499
    %v501 = vadd.s32 %v500, 536870912
    %v502 = vshrl.u32 %v501, 30
    %v503 = vshll.u32 %v502, 30
    %v504 = vsub.s32 %v500, %v503
    %vm505 = vcmp.lt.s32.totalorder %v504, 0
    %v506 = vsub.s32 0, %v504
    %v507 = vsel %vm505, %v506, %v504
    %v508 = vclz %v507
    %v509 = vsub.s32 %v508, 2
    %vm510 = vcmp.gt.s32.totalorder 0, %v509
    %v511 = vsel %vm510, 0, %v509
    %v512 = vsub.s32 32, %v511
    %v513 = vshll.u32 %v504, %v511
    %v514 = vshrl.u32 %v496, %v512
    %v515 = vor.u32 %v513, %v514
    %v516 = vsub.s32 4294967266, %v511
    %v517 = vadd.s32 %v516, 127
    %v518 = vshll.u32 %v517, 23
    %v519 = vor.u32 4788187, %v518
    %v520 = vand.u32 2147483647, %v519
    %v522 = vcvt.s32.f32 %v515
    %v523 = vmul.f32 %v522, %v520
    %v524 = vxor.u32 %v523, 2147483648
    %v525 = vsel %vm442, %v524, %v523
    %v526 = vsub.s32 4, %v502
    %v527 = vsel %vm442, %v526, %v502
    %v528 = vsel %vm441, %v218, %v525
    %v529 = vsel %vm441, 0, %v527
    %v530 = vcosq.f32.pop %v528
    %v531 = vsinq.f32.pop %v528
    %vm532 = vweird.f32 %v218
    %v533 = vand.u32 %v529, 3
    %vm534 = vcmp.lt.s32.totalorder %v533, 2
    %vm535 = vcmp.eq.s32.totalorder %v533, 0
    %v536 = vxor.u32 %v531, 2147483648
    %v537 = vsel %vm535, %v530, %v536
    %vm538 = vcmp.eq.s32.totalorder %v533, 2
    %v539 = vxor.u32 %v530, 2147483648
    %v540 = vsel %vm538, %v539, %v531
    %v541 = vsel %vm534, %v537, %v540
    %v542 = vsel %vm532, nan, %v541
    %v543 = vand.u32 2147483647, %v219
    %vm544 = vcmp.le.f32.partialorder %v543, 0.7853982
    %vm545 = vcmp.lt.s32.totalorder %v219, 0
    %v546 = vand.u32 %v219, 2139095040
    %v547 = vshrl.u32 %v546, 23
    %v548 = vsub.s32 %v547, 127
    %v549 = vand.u32 2147483647, %v219
    %v550 = vand.u32 %v549, 8388607
    %v551 = vor.u32 %v550, 8388608
    %v552 = vsub.s32 0, %v551
    %v553 = vadd.s32 %v548, 1
    %vm554 = vcmp.gt.s32.totalorder %v553, 0
    %v555 = vsel %vm554, %v553, 0
    %v556 = vshrl.u32 %v555, 5
    %v557 = vand.u32 %v555, 31
    %v558 = vsub.s32 32, %v557
    %v559 = vshrl.u32 683565275, %v558
    %v560 = vshll.u32 683565275, %v557
    %v561 = vshrl.u32 2475754826, %v558
    %v562 = vor.u32 %v560, %v561
    %v563 = vshll.u32 2475754826, %v557
    %v564 = vshrl.u32 2131351028, %v558
    %v565 = vor.u32 %v563, %v564
    %v566 = vshll.u32 2131351028, %v557
    %v567 = vshrl.u32 2102212464, %v558
    %v568 = vor.u32 %v566, %v567
    %v569 = vshll.u32 2102212464, %v557
    %v570 = vshrl.u32 920167782, %v558
    %v571 = vor.u32 %v569, %v570
    %v572 = vshll.u32 920167782, %v557
    %v573 = vshrl.u32 1326507024, %v558
    %v574 = vor.u32 %v572, %v573
    %vm575 = vcmp.lt.s32.totalorder %v556, 1
    %vm576 = vcmp.lt.s32.totalorder %v556, 2
    %vm577 = vcmp.lt.s32.totalorder %v556, 3
    %vm578 = vcmp.lt.s32.totalorder %v556, 4
    %v579 = vsel %vm575, %v559, %v562
    %v580 = vsel %vm578, %v568, 2102212464
    %v581 = vsel %vm577, %v565, %v580
    %v582 = vsel %vm576, %v579, %v581
    %v583 = vsel %vm575, %v562, %v565
    %v584 = vsel %vm578, %v571, 920167782
    %v585 = vsel %vm577, %v568, %v584
    %v586 = vsel %vm576, %v583, %v585
    %v587 = vsel %vm575, %v565, %v568
    %v588 = vsel %vm578, %v574, 1326507024
    %v589 = vsel %vm577, %v571, %v588
    %v590 = vsel %vm576, %v587, %v589
    %v591 = vshll.u32 %v551, 8
    %v592 = vmul.u32.u64.compose %v591, %v590
    %v593 = vextract.low.u32 %v592
    %v594 = vextract.high.u32 %v592
    %v595 = vmul.u32.u64.compose %v591, %v586
    %v596 = vextract.low.u32 %v595
    %v597 = vextract.high.u32 %v595
    %v598 = vmul.u32 %v591, %v582
    %v599 = vadd.s32 %v594, %v596
    %vm600 = vc.u32 %v594, %v596
    %v601 = vadd.s32 %v597, 1
    %v602 = vsel %vm600, %v601, %v597
    %v603 = vadd.s32 %v598, %v602
    %v604 = vadd.s32 %v603, 536870912
    %v605 = vshrl.u32 %v604, 30
    %v606 = vshll.u32 %v605, 30
    %v607 = vsub.s32 %v603, %v606
    %vm608 = vcmp.lt.s32.totalorder %v607, 0
    %v609 = vsub.s32 0, %v607
    %v610 = vsel %vm608, %v609, %v607
    %v611 = vclz %v610
    %v612 = vsub.s32 %v611, 2
    %vm613 = vcmp.gt.s32.totalorder 0, %v612
    %v614 = vsel %vm613, 0, %v612
    %v615 = vsub.s32 32, %v614
    %v616 = vshll.u32 %v607, %v614
    %v617 = vshrl.u32 %v599, %v615
    %v618 = vor.u32 %v616, %v617
    %v619 = vsub.s32 4294967266, %v614
    %v620 = vadd.s32 %v619, 127
    %v621 = vshll.u32 %v620, 23
    %v622 = vor.u32 4788187, %v621
    %v623 = vand.u32 2147483647, %v622
    %v625 = vcvt.s32.f32 %v618
    %v626 = vmul.f32 %v625, %v623
    %v627 = vxor.u32 %v626, 2147483648
    %v628 = vsel %vm545, %v627, %v626
    %v629 = vsub.s32 4, %v605
    %v630 = vsel %vm545, %v629, %v605
    %v631 = vsel %vm544, %v219, %v628
    %v632 = vsel %vm544, 0, %v630
    %v633 = vcosq.f32.pop %v631
    %v634 = vsinq.f32.pop %v631
    %vm635 = vweird.f32 %v219
    %v636 = vand.u32 %v632, 3
    %vm637 = vcmp.lt.s32.totalorder %v636, 2
    %vm638 = vcmp.eq.s32.totalorder %v636, 0
    %v639 = vxor.u32 %v634, 2147483648
    %v640 = vsel %vm638, %v633, %v639
    %vm641 = vcmp.eq.s32.totalorder %v636, 2
    %v642 = vxor.u32 %v633, 2147483648
    %v643 = vsel %vm641, %v642, %v634
    %v644 = vsel %vm637, %v640, %v643
    %v645 = vsel %vm635, nan, %v644
    %v646 = vand.u32 2147483647, %v220
    %vm647 = vcmp.le.f32.partialorder %v646, 0.7853982
    %vm648 = vcmp.lt.s32.totalorder %v220, 0
    %v649 = vand.u32 %v220, 2139095040
    %v650 = vshrl.u32 %v649, 23
    %v651 = vsub.s32 %v650, 127
    %v652 = vand.u32 2147483647, %v220
    %v653 = vand.u32 %v652, 8388607
    %v654 = vor.u32 %v653, 8388608
    %v655 = vsub.s32 0, %v654
    %v656 = vadd.s32 %v651, 1
    %vm657 = vcmp.gt.s32.totalorder %v656, 0
    %v658 = vsel %vm657, %v656, 0
    %v659 = vshrl.u32 %v658, 5
    %v660 = vand.u32 %v658, 31
    %v661 = vsub.s32 32, %v660
    %v662 = vshrl.u32 683565275, %v661
    %v663 = vshll.u32 683565275, %v660
    %v664 = vshrl.u32 2475754826, %v661
    %v665 = vor.u32 %v663, %v664
    %v666 = vshll.u32 2475754826, %v660
    %v667 = vshrl.u32 2131351028, %v661
    %v668 = vor.u32 %v666, %v667
    %v669 = vshll.u32 2131351028, %v660
    %v670 = vshrl.u32 2102212464, %v661
    %v671 = vor.u32 %v669, %v670
    %v672 = vshll.u32 2102212464, %v660
    %v673 = vshrl.u32 920167782, %v661
    %v674 = vor.u32 %v672, %v673
    %v675 = vshll.u32 920167782, %v660
    %v676 = vshrl.u32 1326507024, %v661
    %v677 = vor.u32 %v675, %v676
    %vm678 = vcmp.lt.s32.totalorder %v659, 1
    %vm679 = vcmp.lt.s32.totalorder %v659, 2
    %vm680 = vcmp.lt.s32.totalorder %v659, 3
    %vm681 = vcmp.lt.s32.totalorder %v659, 4
    %v682 = vsel %vm678, %v662, %v665
    %v683 = vsel %vm681, %v671, 2102212464
    %v684 = vsel %vm680, %v668, %v683
    %v685 = vsel %vm679, %v682, %v684
    %v686 = vsel %vm678, %v665, %v668
    %v687 = vsel %vm681, %v674, 920167782
    %v688 = vsel %vm680, %v671, %v687
    %v689 = vsel %vm679, %v686, %v688
    %v690 = vsel %vm678, %v668, %v671
    %v691 = vsel %vm681, %v677, 1326507024
    %v692 = vsel %vm680, %v674, %v691
    %v693 = vsel %vm679, %v690, %v692
    %v694 = vshll.u32 %v654, 8
    %v695 = vmul.u32.u64.compose %v694, %v693
    %v696 = vextract.low.u32 %v695
    %v697 = vextract.high.u32 %v695
    %v698 = vmul.u32.u64.compose %v694, %v689
    %v699 = vextract.low.u32 %v698
    %v700 = vextract.high.u32 %v698
    %v701 = vmul.u32 %v694, %v685
    %v702 = vadd.s32 %v697, %v699
    %vm703 = vc.u32 %v697, %v699
    %v704 = vadd.s32 %v700, 1
    %v705 = vsel %vm703, %v704, %v700
    %v706 = vadd.s32 %v701, %v705
    %v707 = vadd.s32 %v706, 536870912
    %v708 = vshrl.u32 %v707, 30
    %v709 = vshll.u32 %v708, 30
    %v710 = vsub.s32 %v706, %v709
    %vm711 = vcmp.lt.s32.totalorder %v710, 0
    %v712 = vsub.s32 0, %v710
    %v713 = vsel %vm711, %v712, %v710
    %v714 = vclz %v713
    %v715 = vsub.s32 %v714, 2
    %vm716 = vcmp.gt.s32.totalorder 0, %v715
    %v717 = vsel %vm716, 0, %v715
    %v718 = vsub.s32 32, %v717
    %v719 = vshll.u32 %v710, %v717
    %v720 = vshrl.u32 %v702, %v718
    %v721 = vor.u32 %v719, %v720
    %v722 = vsub.s32 4294967266, %v717
    %v723 = vadd.s32 %v722, 127
    %v724 = vshll.u32 %v723, 23
    %v725 = vor.u32 4788187, %v724
    %v726 = vand.u32 2147483647, %v725
    %v728 = vcvt.s32.f32 %v721
    %v729 = vmul.f32 %v728, %v726
    %v730 = vxor.u32 %v729, 2147483648
    %v731 = vsel %vm648, %v730, %v729
    %v732 = vsub.s32 4, %v708
    %v733 = vsel %vm648, %v732, %v708
    %v734 = vsel %vm647, %v220, %v731
    %v735 = vsel %vm647, 0, %v733
    %v736 = vcosq.f32.pop %v734
    %v737 = vsinq.f32.pop %v734
    %vm738 = vweird.f32 %v220
    %v739 = vand.u32 %v735, 3
    %vm740 = vcmp.lt.s32.totalorder %v739, 2
    %vm741 = vcmp.eq.s32.totalorder %v739, 0
    %v742 = vxor.u32 %v737, 2147483648
    %v743 = vsel %vm741, %v736, %v742
    %vm744 = vcmp.eq.s32.totalorder %v739, 2
    %v745 = vxor.u32 %v736, 2147483648
    %v746 = vsel %vm744, %v745, %v737
    %v747 = vsel %vm740, %v743, %v746
    %v748 = vsel %vm738, nan, %v747
    %v749 = vand.u32 2147483647, %v221
    %vm750 = vcmp.le.f32.partialorder %v749, 0.7853982
    %vm751 = vcmp.lt.s32.totalorder %v221, 0
    %v752 = vand.u32 %v221, 2139095040
    %v753 = vshrl.u32 %v752, 23
    %v754 = vsub.s32 %v753, 127
    %v755 = vand.u32 2147483647, %v221
    %v756 = vand.u32 %v755, 8388607
    %v757 = vor.u32 %v756, 8388608
    %v758 = vsub.s32 0, %v757
    %v759 = vadd.s32 %v754, 1
    %vm760 = vcmp.gt.s32.totalorder %v759, 0
    %v761 = vsel %vm760, %v759, 0
    %v762 = vshrl.u32 %v761, 5
    %v763 = vand.u32 %v761, 31
    %v764 = vsub.s32 32, %v763
    %v765 = vshrl.u32 683565275, %v764
    %v766 = vshll.u32 683565275, %v763
    %v767 = vshrl.u32 2475754826, %v764
    %v768 = vor.u32 %v766, %v767
    %v769 = vshll.u32 2475754826, %v763
    %v770 = vshrl.u32 2131351028, %v764
    %v771 = vor.u32 %v769, %v770
    %v772 = vshll.u32 2131351028, %v763
    %v773 = vshrl.u32 2102212464, %v764
    %v774 = vor.u32 %v772, %v773
    %v775 = vshll.u32 2102212464, %v763
    %v776 = vshrl.u32 920167782, %v764
    %v777 = vor.u32 %v775, %v776
    %v778 = vshll.u32 920167782, %v763
    %v779 = vshrl.u32 1326507024, %v764
    %v780 = vor.u32 %v778, %v779
    %vm781 = vcmp.lt.s32.totalorder %v762, 1
    %vm782 = vcmp.lt.s32.totalorder %v762, 2
    %vm783 = vcmp.lt.s32.totalorder %v762, 3
    %vm784 = vcmp.lt.s32.totalorder %v762, 4
    %v785 = vsel %vm781, %v765, %v768
    %v786 = vsel %vm784, %v774, 2102212464
    %v787 = vsel %vm783, %v771, %v786
    %v788 = vsel %vm782, %v785, %v787
    %v789 = vsel %vm781, %v768, %v771
    %v790 = vsel %vm784, %v777, 920167782
    %v791 = vsel %vm783, %v774, %v790
    %v792 = vsel %vm782, %v789, %v791
    %v793 = vsel %vm781, %v771, %v774
    %v794 = vsel %vm784, %v780, 1326507024
    %v795 = vsel %vm783, %v777, %v794
    %v796 = vsel %vm782, %v793, %v795
    %v797 = vshll.u32 %v757, 8
    %v798 = vmul.u32.u64.compose %v797, %v796
    %v799 = vextract.low.u32 %v798
    %v800 = vextract.high.u32 %v798
    %v801 = vmul.u32.u64.compose %v797, %v792
    %v802 = vextract.low.u32 %v801
    %v803 = vextract.high.u32 %v801
    %v804 = vmul.u32 %v797, %v788
    %v805 = vadd.s32 %v800, %v802
    %vm806 = vc.u32 %v800, %v802
    %v807 = vadd.s32 %v803, 1
    %v808 = vsel %vm806, %v807, %v803
    %v809 = vadd.s32 %v804, %v808
    %v810 = vadd.s32 %v809, 536870912
    %v811 = vshrl.u32 %v810, 30
    %v812 = vshll.u32 %v811, 30
    %v813 = vsub.s32 %v809, %v812
    %vm814 = vcmp.lt.s32.totalorder %v813, 0
    %v815 = vsub.s32 0, %v813
    %v816 = vsel %vm814, %v815, %v813
    %v817 = vclz %v816
    %v818 = vsub.s32 %v817, 2
    %vm819 = vcmp.gt.s32.totalorder 0, %v818
    %v820 = vsel %vm819, 0, %v818
    %v821 = vsub.s32 32, %v820
    %v822 = vshll.u32 %v813, %v820
    %v823 = vshrl.u32 %v805, %v821
    %v824 = vor.u32 %v822, %v823
    %v825 = vsub.s32 4294967266, %v820
    %v826 = vadd.s32 %v825, 127
    %v827 = vshll.u32 %v826, 23
    %v828 = vor.u32 4788187, %v827
    %v829 = vand.u32 2147483647, %v828
    %v831 = vcvt.s32.f32 %v824
    %v832 = vmul.f32 %v831, %v829
    %v833 = vxor.u32 %v832, 2147483648
    %v834 = vsel %vm751, %v833, %v832
    %v835 = vsub.s32 4, %v811
    %v836 = vsel %vm751, %v835, %v811
    %v837 = vsel %vm750, %v221, %v834
    %v838 = vsel %vm750, 0, %v836
    %v839 = vcosq.f32.pop %v837
    %v840 = vsinq.f32.pop %v837
    %vm841 = vweird.f32 %v221
    %v842 = vand.u32 %v838, 3
    %vm843 = vcmp.lt.s32.totalorder %v842, 2
    %vm844 = vcmp.eq.s32.totalorder %v842, 0
    %v845 = vxor.u32 %v840, 2147483648
    %v846 = vsel %vm844, %v839, %v845
    %vm847 = vcmp.eq.s32.totalorder %v842, 2
    %v848 = vxor.u32 %v839, 2147483648
    %v849 = vsel %vm847, %v848, %v840
    %v850 = vsel %vm843, %v846, %v849
    %v851 = vsel %vm841, nan, %v850
    %v852 = vand.u32 2147483647, %v222
    %vm853 = vcmp.le.f32.partialorder %v852, 0.7853982
    %vm854 = vcmp.lt.s32.totalorder %v222, 0
    %v855 = vand.u32 %v222, 2139095040
    %v856 = vshrl.u32 %v855, 23
    %v857 = vsub.s32 %v856, 127
    %v858 = vand.u32 2147483647, %v222
    %v859 = vand.u32 %v858, 8388607
    %v860 = vor.u32 %v859, 8388608
    %v861 = vsub.s32 0, %v860
    %v862 = vadd.s32 %v857, 1
    %vm863 = vcmp.gt.s32.totalorder %v862, 0
    %v864 = vsel %vm863, %v862, 0
    %v865 = vshrl.u32 %v864, 5
    %v866 = vand.u32 %v864, 31
    %v867 = vsub.s32 32, %v866
    %v868 = vshrl.u32 683565275, %v867
    %v869 = vshll.u32 683565275, %v866
    %v870 = vshrl.u32 2475754826, %v867
    %v871 = vor.u32 %v869, %v870
    %v872 = vshll.u32 2475754826, %v866
    %v873 = vshrl.u32 2131351028, %v867
    %v874 = vor.u32 %v872, %v873
    %v875 = vshll.u32 2131351028, %v866
    %v876 = vshrl.u32 2102212464, %v867
    %v877 = vor.u32 %v875, %v876
    %v878 = vshll.u32 2102212464, %v866
    %v879 = vshrl.u32 920167782, %v867
    %v880 = vor.u32 %v878, %v879
    %v881 = vshll.u32 920167782, %v866
    %v882 = vshrl.u32 1326507024, %v867
    %v883 = vor.u32 %v881, %v882
    %vm884 = vcmp.lt.s32.totalorder %v865, 1
    %vm885 = vcmp.lt.s32.totalorder %v865, 2
    %vm886 = vcmp.lt.s32.totalorder %v865, 3
    %vm887 = vcmp.lt.s32.totalorder %v865, 4
    %v888 = vsel %vm884, %v868, %v871
    %v889 = vsel %vm887, %v877, 2102212464
    %v890 = vsel %vm886, %v874, %v889
    %v891 = vsel %vm885, %v888, %v890
    %v892 = vsel %vm884, %v871, %v874
    %v893 = vsel %vm887, %v880, 920167782
    %v894 = vsel %vm886, %v877, %v893
    %v895 = vsel %vm885, %v892, %v894
    %v896 = vsel %vm884, %v874, %v877
    %v897 = vsel %vm887, %v883, 1326507024
    %v898 = vsel %vm886, %v880, %v897
    %v899 = vsel %vm885, %v896, %v898
    %v900 = vshll.u32 %v860, 8
    %v901 = vmul.u32.u64.compose %v900, %v899
    %v902 = vextract.low.u32 %v901
    %v903 = vextract.high.u32 %v901
    %v904 = vmul.u32.u64.compose %v900, %v895
    %v905 = vextract.low.u32 %v904
    %v906 = vextract.high.u32 %v904
    %v907 = vmul.u32 %v900, %v891
    %v908 = vadd.s32 %v903, %v905
    %vm909 = vc.u32 %v903, %v905
    %v910 = vadd.s32 %v906, 1
    %v911 = vsel %vm909, %v910, %v906
    %v912 = vadd.s32 %v907, %v911
    %v913 = vadd.s32 %v912, 536870912
    %v914 = vshrl.u32 %v913, 30
    %v915 = vshll.u32 %v914, 30
    %v916 = vsub.s32 %v912, %v915
    %vm917 = vcmp.lt.s32.totalorder %v916, 0
    %v918 = vsub.s32 0, %v916
    %v919 = vsel %vm917, %v918, %v916
    %v920 = vclz %v919
    %v921 = vsub.s32 %v920, 2
    %vm922 = vcmp.gt.s32.totalorder 0, %v921
    %v923 = vsel %vm922, 0, %v921
    %v924 = vsub.s32 32, %v923
    %v925 = vshll.u32 %v916, %v923
    %v926 = vshrl.u32 %v908, %v924
    %v927 = vor.u32 %v925, %v926
    %v928 = vsub.s32 4294967266, %v923
    %v929 = vadd.s32 %v928, 127
    %v930 = vshll.u32 %v929, 23
    %v931 = vor.u32 4788187, %v930
    %v932 = vand.u32 2147483647, %v931
    %v934 = vcvt.s32.f32 %v927
    %v935 = vmul.f32 %v934, %v932
    %v936 = vxor.u32 %v935, 2147483648
    %v937 = vsel %vm854, %v936, %v935
    %v938 = vsub.s32 4, %v914
    %v939 = vsel %vm854, %v938, %v914
    %v940 = vsel %vm853, %v222, %v937
    %v941 = vsel %vm853, 0, %v939
    %v942 = vcosq.f32.pop %v940
    %v943 = vsinq.f32.pop %v940
    %vm944 = vweird.f32 %v222
    %v945 = vand.u32 %v941, 3
    %vm946 = vcmp.lt.s32.totalorder %v945, 2
    %vm947 = vcmp.eq.s32.totalorder %v945, 0
    %v948 = vxor.u32 %v943, 2147483648
    %v949 = vsel %vm947, %v942, %v948
    %vm950 = vcmp.eq.s32.totalorder %v945, 2
    %v951 = vxor.u32 %v942, 2147483648
    %v952 = vsel %vm950, %v951, %v943
    %v953 = vsel %vm946, %v949, %v952
    %v954 = vsel %vm944, nan, %v953
    %v955 = vand.u32 2147483647, %v223
    %vm956 = vcmp.le.f32.partialorder %v955, 0.7853982
    %vm957 = vcmp.lt.s32.totalorder %v223, 0
    %v958 = vand.u32 %v223, 2139095040
    %v959 = vshrl.u32 %v958, 23
    %v960 = vsub.s32 %v959, 127
    %v961 = vand.u32 2147483647, %v223
    %v962 = vand.u32 %v961, 8388607
    %v963 = vor.u32 %v962, 8388608
    %v964 = vsub.s32 0, %v963
    %v965 = vadd.s32 %v960, 1
    %vm966 = vcmp.gt.s32.totalorder %v965, 0
    %v967 = vsel %vm966, %v965, 0
    %v968 = vshrl.u32 %v967, 5
    %v969 = vand.u32 %v967, 31
    %v970 = vsub.s32 32, %v969
    %v971 = vshrl.u32 683565275, %v970
    %v972 = vshll.u32 683565275, %v969
    %v973 = vshrl.u32 2475754826, %v970
    %v974 = vor.u32 %v972, %v973
    %v975 = vshll.u32 2475754826, %v969
    %v976 = vshrl.u32 2131351028, %v970
    %v977 = vor.u32 %v975, %v976
    %v978 = vshll.u32 2131351028, %v969
    %v979 = vshrl.u32 2102212464, %v970
    %v980 = vor.u32 %v978, %v979
    %v981 = vshll.u32 2102212464, %v969
    %v982 = vshrl.u32 920167782, %v970
    %v983 = vor.u32 %v981, %v982
    %v984 = vshll.u32 920167782, %v969
    %v985 = vshrl.u32 1326507024, %v970
    %v986 = vor.u32 %v984, %v985
    %vm987 = vcmp.lt.s32.totalorder %v968, 1
    %vm988 = vcmp.lt.s32.totalorder %v968, 2
    %vm989 = vcmp.lt.s32.totalorder %v968, 3
    %vm990 = vcmp.lt.s32.totalorder %v968, 4
    %v991 = vsel %vm987, %v971, %v974
    %v992 = vsel %vm990, %v980, 2102212464
    %v993 = vsel %vm989, %v977, %v992
    %v994 = vsel %vm988, %v991, %v993
    %v995 = vsel %vm987, %v974, %v977
    %v996 = vsel %vm990, %v983, 920167782
    %v997 = vsel %vm989, %v980, %v996
    %v998 = vsel %vm988, %v995, %v997
    %v999 = vsel %vm987, %v977, %v980
    %v1000 = vsel %vm990, %v986, 1326507024
    %v1001 = vsel %vm989, %v983, %v1000
    %v1002 = vsel %vm988, %v999, %v1001
    %v1003 = vshll.u32 %v963, 8
    %v1004 = vmul.u32.u64.compose %v1003, %v1002
    %v1005 = vextract.low.u32 %v1004
    %v1006 = vextract.high.u32 %v1004
    %v1007 = vmul.u32.u64.compose %v1003, %v998
    %v1008 = vextract.low.u32 %v1007
    %v1009 = vextract.high.u32 %v1007
    %v1010 = vmul.u32 %v1003, %v994
    %v1011 = vadd.s32 %v1006, %v1008
    %vm1012 = vc.u32 %v1006, %v1008
    %v1013 = vadd.s32 %v1009, 1
    %v1014 = vsel %vm1012, %v1013, %v1009
    %v1015 = vadd.s32 %v1010, %v1014
    %v1016 = vadd.s32 %v1015, 536870912
    %v1017 = vshrl.u32 %v1016, 30
    %v1018 = vshll.u32 %v1017, 30
    %v1019 = vsub.s32 %v1015, %v1018
    %vm1020 = vcmp.lt.s32.totalorder %v1019, 0
    %v1021 = vsub.s32 0, %v1019
    %v1022 = vsel %vm1020, %v1021, %v1019
    %v1023 = vclz %v1022
    %v1024 = vsub.s32 %v1023, 2
    %vm1025 = vcmp.gt.s32.totalorder 0, %v1024
    %v1026 = vsel %vm1025, 0, %v1024
    %v1027 = vsub.s32 32, %v1026
    %v1028 = vshll.u32 %v1019, %v1026
    %v1029 = vshrl.u32 %v1011, %v1027
    %v1030 = vor.u32 %v1028, %v1029
    %v1031 = vsub.s32 4294967266, %v1026
    %v1032 = vadd.s32 %v1031, 127
    %v1033 = vshll.u32 %v1032, 23
    %v1034 = vor.u32 4788187, %v1033
    %v1035 = vand.u32 2147483647, %v1034
    %v1037 = vcvt.s32.f32 %v1030
    %v1038 = vmul.f32 %v1037, %v1035
    %v1039 = vxor.u32 %v1038, 2147483648
    %v1040 = vsel %vm957, %v1039, %v1038
    %v1041 = vsub.s32 4, %v1017
    %v1042 = vsel %vm957, %v1041, %v1017
    %v1043 = vsel %vm956, %v223, %v1040
    %v1044 = vsel %vm956, 0, %v1042
    %v1045 = vcosq.f32.pop %v1043
    %v1046 = vsinq.f32.pop %v1043
    %vm1047 = vweird.f32 %v223
    %v1048 = vand.u32 %v1044, 3
    %vm1049 = vcmp.lt.s32.totalorder %v1048, 2
    %vm1050 = vcmp.eq.s32.totalorder %v1048, 0
    %v1051 = vxor.u32 %v1046, 2147483648
    %v1052 = vsel %vm1050, %v1045, %v1051
    %vm1053 = vcmp.eq.s32.totalorder %v1048, 2
    %v1054 = vxor.u32 %v1045, 2147483648
    %v1055 = vsel %vm1053, %v1054, %v1046
    %v1056 = vsel %vm1049, %v1052, %v1055
    %v1057 = vsel %vm1047, nan, %v1056
    %v1058 = vand.u32 2147483647, %v224
    %vm1059 = vcmp.le.f32.partialorder %v1058, 0.7853982
    %vm1060 = vcmp.lt.s32.totalorder %v224, 0
    %v1061 = vand.u32 %v224, 2139095040
    %v1062 = vshrl.u32 %v1061, 23
    %v1063 = vsub.s32 %v1062, 127
    %v1064 = vand.u32 2147483647, %v224
    %v1065 = vand.u32 %v1064, 8388607
    %v1066 = vor.u32 %v1065, 8388608
    %v1067 = vsub.s32 0, %v1066
    %v1068 = vadd.s32 %v1063, 1
    %vm1069 = vcmp.gt.s32.totalorder %v1068, 0
    %v1070 = vsel %vm1069, %v1068, 0
    %v1071 = vshrl.u32 %v1070, 5
    %v1072 = vand.u32 %v1070, 31
    %v1073 = vsub.s32 32, %v1072
    %v1074 = vshrl.u32 683565275, %v1073
    %v1075 = vshll.u32 683565275, %v1072
    %v1076 = vshrl.u32 2475754826, %v1073
    %v1077 = vor.u32 %v1075, %v1076
    %v1078 = vshll.u32 2475754826, %v1072
    %v1079 = vshrl.u32 2131351028, %v1073
    %v1080 = vor.u32 %v1078, %v1079
    %v1081 = vshll.u32 2131351028, %v1072
    %v1082 = vshrl.u32 2102212464, %v1073
    %v1083 = vor.u32 %v1081, %v1082
    %v1084 = vshll.u32 2102212464, %v1072
    %v1085 = vshrl.u32 920167782, %v1073
    %v1086 = vor.u32 %v1084, %v1085
    %v1087 = vshll.u32 920167782, %v1072
    %v1088 = vshrl.u32 1326507024, %v1073
    %v1089 = vor.u32 %v1087, %v1088
    %vm1090 = vcmp.lt.s32.totalorder %v1071, 1
    %vm1091 = vcmp.lt.s32.totalorder %v1071, 2
    %vm1092 = vcmp.lt.s32.totalorder %v1071, 3
    %vm1093 = vcmp.lt.s32.totalorder %v1071, 4
    %v1094 = vsel %vm1090, %v1074, %v1077
    %v1095 = vsel %vm1093, %v1083, 2102212464
    %v1096 = vsel %vm1092, %v1080, %v1095
    %v1097 = vsel %vm1091, %v1094, %v1096
    %v1098 = vsel %vm1090, %v1077, %v1080
    %v1099 = vsel %vm1093, %v1086, 920167782
    %v1100 = vsel %vm1092, %v1083, %v1099
    %v1101 = vsel %vm1091, %v1098, %v1100
    %v1102 = vsel %vm1090, %v1080, %v1083
    %v1103 = vsel %vm1093, %v1089, 1326507024
    %v1104 = vsel %vm1092, %v1086, %v1103
    %v1105 = vsel %vm1091, %v1102, %v1104
    %v1106 = vshll.u32 %v1066, 8
    %v1107 = vmul.u32.u64.compose %v1106, %v1105
    %v1108 = vextract.low.u32 %v1107
    %v1109 = vextract.high.u32 %v1107
    %v1110 = vmul.u32.u64.compose %v1106, %v1101
    %v1111 = vextract.low.u32 %v1110
    %v1112 = vextract.high.u32 %v1110
    %v1113 = vmul.u32 %v1106, %v1097
    %v1114 = vadd.s32 %v1109, %v1111
    %vm1115 = vc.u32 %v1109, %v1111
    %v1116 = vadd.s32 %v1112, 1
    %v1117 = vsel %vm1115, %v1116, %v1112
    %v1118 = vadd.s32 %v1113, %v1117
    %v1119 = vadd.s32 %v1118, 536870912
    %v1120 = vshrl.u32 %v1119, 30
    %v1121 = vshll.u32 %v1120, 30
    %v1122 = vsub.s32 %v1118, %v1121
    %vm1123 = vcmp.lt.s32.totalorder %v1122, 0
    %v1124 = vsub.s32 0, %v1122
    %v1125 = vsel %vm1123, %v1124, %v1122
    %v1126 = vclz %v1125
    %v1127 = vsub.s32 %v1126, 2
    %vm1128 = vcmp.gt.s32.totalorder 0, %v1127
    %v1129 = vsel %vm1128, 0, %v1127
    %v1130 = vsub.s32 32, %v1129
    %v1131 = vshll.u32 %v1122, %v1129
    %v1132 = vshrl.u32 %v1114, %v1130
    %v1133 = vor.u32 %v1131, %v1132
    %v1134 = vsub.s32 4294967266, %v1129
    %v1135 = vadd.s32 %v1134, 127
    %v1136 = vshll.u32 %v1135, 23
    %v1137 = vor.u32 4788187, %v1136
    %v1138 = vand.u32 2147483647, %v1137
    %v1140 = vcvt.s32.f32 %v1133
    %v1141 = vmul.f32 %v1140, %v1138
    %v1142 = vxor.u32 %v1141, 2147483648
    %v1143 = vsel %vm1060, %v1142, %v1141
    %v1144 = vsub.s32 4, %v1120
    %v1145 = vsel %vm1060, %v1144, %v1120
    %v1146 = vsel %vm1059, %v224, %v1143
    %v1147 = vsel %vm1059, 0, %v1145
    %v1148 = vcosq.f32.pop %v1146
    %v1149 = vsinq.f32.pop %v1146
    %vm1150 = vweird.f32 %v224
    %v1151 = vand.u32 %v1147, 3
    %vm1152 = vcmp.lt.s32.totalorder %v1151, 2
    %vm1153 = vcmp.eq.s32.totalorder %v1151, 0
    %v1154 = vxor.u32 %v1149, 2147483648
    %v1155 = vsel %vm1153, %v1148, %v1154
    %vm1156 = vcmp.eq.s32.totalorder %v1151, 2
    %v1157 = vxor.u32 %v1148, 2147483648
    %v1158 = vsel %vm1156, %v1157, %v1149
    %v1159 = vsel %vm1152, %v1155, %v1158
    %v1160 = vsel %vm1150, nan, %v1159
    %v1161 = vand.u32 2147483647, %v225
    %vm1162 = vcmp.le.f32.partialorder %v1161, 0.7853982
    %vm1163 = vcmp.lt.s32.totalorder %v225, 0
    %v1164 = vand.u32 %v225, 2139095040
    %v1165 = vshrl.u32 %v1164, 23
    %v1166 = vsub.s32 %v1165, 127
    %v1167 = vand.u32 2147483647, %v225
    %v1168 = vand.u32 %v1167, 8388607
    %v1169 = vor.u32 %v1168, 8388608
    %v1170 = vsub.s32 0, %v1169
    %v1171 = vadd.s32 %v1166, 1
    %vm1172 = vcmp.gt.s32.totalorder %v1171, 0
    %v1173 = vsel %vm1172, %v1171, 0
    %v1174 = vshrl.u32 %v1173, 5
    %v1175 = vand.u32 %v1173, 31
    %v1176 = vsub.s32 32, %v1175
    %v1177 = vshrl.u32 683565275, %v1176
    %v1178 = vshll.u32 683565275, %v1175
    %v1179 = vshrl.u32 2475754826, %v1176
    %v1180 = vor.u32 %v1178, %v1179
    %v1181 = vshll.u32 2475754826, %v1175
    %v1182 = vshrl.u32 2131351028, %v1176
    %v1183 = vor.u32 %v1181, %v1182
    %v1184 = vshll.u32 2131351028, %v1175
    %v1185 = vshrl.u32 2102212464, %v1176
    %v1186 = vor.u32 %v1184, %v1185
    %v1187 = vshll.u32 2102212464, %v1175
    %v1188 = vshrl.u32 920167782, %v1176
    %v1189 = vor.u32 %v1187, %v1188
    %v1190 = vshll.u32 920167782, %v1175
    %v1191 = vshrl.u32 1326507024, %v1176
    %v1192 = vor.u32 %v1190, %v1191
    %vm1193 = vcmp.lt.s32.totalorder %v1174, 1
    %vm1194 = vcmp.lt.s32.totalorder %v1174, 2
    %vm1195 = vcmp.lt.s32.totalorder %v1174, 3
    %vm1196 = vcmp.lt.s32.totalorder %v1174, 4
    %v1197 = vsel %vm1193, %v1177, %v1180
    %v1198 = vsel %vm1196, %v1186, 2102212464
    %v1199 = vsel %vm1195, %v1183, %v1198
    %v1200 = vsel %vm1194, %v1197, %v1199
    %v1201 = vsel %vm1193, %v1180, %v1183
    %v1202 = vsel %vm1196, %v1189, 920167782
    %v1203 = vsel %vm1195, %v1186, %v1202
    %v1204 = vsel %vm1194, %v1201, %v1203
    %v1205 = vsel %vm1193, %v1183, %v1186
    %v1206 = vsel %vm1196, %v1192, 1326507024
    %v1207 = vsel %vm1195, %v1189, %v1206
    %v1208 = vsel %vm1194, %v1205, %v1207
    %v1209 = vshll.u32 %v1169, 8
    %v1210 = vmul.u32.u64.compose %v1209, %v1208
    %v1211 = vextract.low.u32 %v1210
    %v1212 = vextract.high.u32 %v1210
    %v1213 = vmul.u32.u64.compose %v1209, %v1204
    %v1214 = vextract.low.u32 %v1213
    %v1215 = vextract.high.u32 %v1213
    %v1216 = vmul.u32 %v1209, %v1200
    %v1217 = vadd.s32 %v1212, %v1214
    %vm1218 = vc.u32 %v1212, %v1214
    %v1219 = vadd.s32 %v1215, 1
    %v1220 = vsel %vm1218, %v1219, %v1215
    %v1221 = vadd.s32 %v1216, %v1220
    %v1222 = vadd.s32 %v1221, 536870912
    %v1223 = vshrl.u32 %v1222, 30
    %v1224 = vshll.u32 %v1223, 30
    %v1225 = vsub.s32 %v1221, %v1224
    %vm1226 = vcmp.lt.s32.totalorder %v1225, 0
    %v1227 = vsub.s32 0, %v1225
    %v1228 = vsel %vm1226, %v1227, %v1225
    %v1229 = vclz %v1228
    %v1230 = vsub.s32 %v1229, 2
    %vm1231 = vcmp.gt.s32.totalorder 0, %v1230
    %v1232 = vsel %vm1231, 0, %v1230
    %v1233 = vsub.s32 32, %v1232
    %v1234 = vshll.u32 %v1225, %v1232
    %v1235 = vshrl.u32 %v1217, %v1233
    %v1236 = vor.u32 %v1234, %v1235
    %v1237 = vsub.s32 4294967266, %v1232
    %v1238 = vadd.s32 %v1237, 127
    %v1239 = vshll.u32 %v1238, 23
    %v1240 = vor.u32 4788187, %v1239
    %v1241 = vand.u32 2147483647, %v1240
    %v1243 = vcvt.s32.f32 %v1236
    %v1244 = vmul.f32 %v1243, %v1241
    %v1245 = vxor.u32 %v1244, 2147483648
    %v1246 = vsel %vm1163, %v1245, %v1244
    %v1247 = vsub.s32 4, %v1223
    %v1248 = vsel %vm1163, %v1247, %v1223
    %v1249 = vsel %vm1162, %v225, %v1246
    %v1250 = vsel %vm1162, 0, %v1248
    %v1251 = vcosq.f32.pop %v1249
    %v1252 = vsinq.f32.pop %v1249
    %vm1253 = vweird.f32 %v225
    %v1254 = vand.u32 %v1250, 3
    %vm1255 = vcmp.lt.s32.totalorder %v1254, 2
    %vm1256 = vcmp.eq.s32.totalorder %v1254, 0
    %v1257 = vxor.u32 %v1252, 2147483648
    %v1258 = vsel %vm1256, %v1251, %v1257
    %vm1259 = vcmp.eq.s32.totalorder %v1254, 2
    %v1260 = vxor.u32 %v1251, 2147483648
    %v1261 = vsel %vm1259, %v1260, %v1252
    %v1262 = vsel %vm1255, %v1258, %v1261
    %v1263 = vsel %vm1253, nan, %v1262
    %v1264 = vand.u32 2147483647, %v226
    %vm1265 = vcmp.le.f32.partialorder %v1264, 0.7853982
    %vm1266 = vcmp.lt.s32.totalorder %v226, 0
    %v1267 = vand.u32 %v226, 2139095040
    %v1268 = vshrl.u32 %v1267, 23
    %v1269 = vsub.s32 %v1268, 127
    %v1270 = vand.u32 2147483647, %v226
    %v1271 = vand.u32 %v1270, 8388607
    %v1272 = vor.u32 %v1271, 8388608
    %v1273 = vsub.s32 0, %v1272
    %v1274 = vadd.s32 %v1269, 1
    %vm1275 = vcmp.gt.s32.totalorder %v1274, 0
    %v1276 = vsel %vm1275, %v1274, 0
    %v1277 = vshrl.u32 %v1276, 5
    %v1278 = vand.u32 %v1276, 31
    %v1279 = vsub.s32 32, %v1278
    %v1280 = vshrl.u32 683565275, %v1279
    %v1281 = vshll.u32 683565275, %v1278
    %v1282 = vshrl.u32 2475754826, %v1279
    %v1283 = vor.u32 %v1281, %v1282
    %v1284 = vshll.u32 2475754826, %v1278
    %v1285 = vshrl.u32 2131351028, %v1279
    %v1286 = vor.u32 %v1284, %v1285
    %v1287 = vshll.u32 2131351028, %v1278
    %v1288 = vshrl.u32 2102212464, %v1279
    %v1289 = vor.u32 %v1287, %v1288
    %v1290 = vshll.u32 2102212464, %v1278
    %v1291 = vshrl.u32 920167782, %v1279
    %v1292 = vor.u32 %v1290, %v1291
    %v1293 = vshll.u32 920167782, %v1278
    %v1294 = vshrl.u32 1326507024, %v1279
    %v1295 = vor.u32 %v1293, %v1294
    %vm1296 = vcmp.lt.s32.totalorder %v1277, 1
    %vm1297 = vcmp.lt.s32.totalorder %v1277, 2
    %vm1298 = vcmp.lt.s32.totalorder %v1277, 3
    %vm1299 = vcmp.lt.s32.totalorder %v1277, 4
    %v1300 = vsel %vm1296, %v1280, %v1283
    %v1301 = vsel %vm1299, %v1289, 2102212464
    %v1302 = vsel %vm1298, %v1286, %v1301
    %v1303 = vsel %vm1297, %v1300, %v1302
    %v1304 = vsel %vm1296, %v1283, %v1286
    %v1305 = vsel %vm1299, %v1292, 920167782
    %v1306 = vsel %vm1298, %v1289, %v1305
    %v1307 = vsel %vm1297, %v1304, %v1306
    %v1308 = vsel %vm1296, %v1286, %v1289
    %v1309 = vsel %vm1299, %v1295, 1326507024
    %v1310 = vsel %vm1298, %v1292, %v1309
    %v1311 = vsel %vm1297, %v1308, %v1310
    %v1312 = vshll.u32 %v1272, 8
    %v1313 = vmul.u32.u64.compose %v1312, %v1311
    %v1314 = vextract.low.u32 %v1313
    %v1315 = vextract.high.u32 %v1313
    %v1316 = vmul.u32.u64.compose %v1312, %v1307
    %v1317 = vextract.low.u32 %v1316
    %v1318 = vextract.high.u32 %v1316
    %v1319 = vmul.u32 %v1312, %v1303
    %v1320 = vadd.s32 %v1315, %v1317
    %vm1321 = vc.u32 %v1315, %v1317
    %v1322 = vadd.s32 %v1318, 1
    %v1323 = vsel %vm1321, %v1322, %v1318
    %v1324 = vadd.s32 %v1319, %v1323
    %v1325 = vadd.s32 %v1324, 536870912
    %v1326 = vshrl.u32 %v1325, 30
    %v1327 = vshll.u32 %v1326, 30
    %v1328 = vsub.s32 %v1324, %v1327
    %vm1329 = vcmp.lt.s32.totalorder %v1328, 0
    %v1330 = vsub.s32 0, %v1328
    %v1331 = vsel %vm1329, %v1330, %v1328
    %v1332 = vclz %v1331
    %v1333 = vsub.s32 %v1332, 2
    %vm1334 = vcmp.gt.s32.totalorder 0, %v1333
    %v1335 = vsel %vm1334, 0, %v1333
    %v1336 = vsub.s32 32, %v1335
    %v1337 = vshll.u32 %v1328, %v1335
    %v1338 = vshrl.u32 %v1320, %v1336
    %v1339 = vor.u32 %v1337, %v1338
    %v1340 = vsub.s32 4294967266, %v1335
    %v1341 = vadd.s32 %v1340, 127
    %v1342 = vshll.u32 %v1341, 23
    %v1343 = vor.u32 4788187, %v1342
    %v1344 = vand.u32 2147483647, %v1343
    %v1346 = vcvt.s32.f32 %v1339
    %v1347 = vmul.f32 %v1346, %v1344
    %v1348 = vxor.u32 %v1347, 2147483648
    %v1349 = vsel %vm1266, %v1348, %v1347
    %v1350 = vsub.s32 4, %v1326
    %v1351 = vsel %vm1266, %v1350, %v1326
    %v1352 = vsel %vm1265, %v226, %v1349
    %v1353 = vsel %vm1265, 0, %v1351
    %v1354 = vcosq.f32.pop %v1352
    %v1355 = vsinq.f32.pop %v1352
    %vm1356 = vweird.f32 %v226
    %v1357 = vand.u32 %v1353, 3
    %vm1358 = vcmp.lt.s32.totalorder %v1357, 2
    %vm1359 = vcmp.eq.s32.totalorder %v1357, 0
    %v1360 = vxor.u32 %v1355, 2147483648
    %v1361 = vsel %vm1359, %v1354, %v1360
    %vm1362 = vcmp.eq.s32.totalorder %v1357, 2
    %v1363 = vxor.u32 %v1354, 2147483648
    %v1364 = vsel %vm1362, %v1363, %v1355
    %v1365 = vsel %vm1358, %v1361, %v1364
    %v1366 = vsel %vm1356, nan, %v1365
    %v1367 = vand.u32 2147483647, %v227
    %vm1368 = vcmp.le.f32.partialorder %v1367, 0.7853982
    %vm1369 = vcmp.lt.s32.totalorder %v227, 0
    %v1370 = vand.u32 %v227, 2139095040
    %v1371 = vshrl.u32 %v1370, 23
    %v1372 = vsub.s32 %v1371, 127
    %v1373 = vand.u32 2147483647, %v227
    %v1374 = vand.u32 %v1373, 8388607
    %v1375 = vor.u32 %v1374, 8388608
    %v1376 = vsub.s32 0, %v1375
    %v1377 = vadd.s32 %v1372, 1
    %vm1378 = vcmp.gt.s32.totalorder %v1377, 0
    %v1379 = vsel %vm1378, %v1377, 0
    %v1380 = vshrl.u32 %v1379, 5
    %v1381 = vand.u32 %v1379, 31
    %v1382 = vsub.s32 32, %v1381
    %v1383 = vshrl.u32 683565275, %v1382
    %v1384 = vshll.u32 683565275, %v1381
    %v1385 = vshrl.u32 2475754826, %v1382
    %v1386 = vor.u32 %v1384, %v1385
    %v1387 = vshll.u32 2475754826, %v1381
    %v1388 = vshrl.u32 2131351028, %v1382
    %v1389 = vor.u32 %v1387, %v1388
    %v1390 = vshll.u32 2131351028, %v1381
    %v1391 = vshrl.u32 2102212464, %v1382
    %v1392 = vor.u32 %v1390, %v1391
    %v1393 = vshll.u32 2102212464, %v1381
    %v1394 = vshrl.u32 920167782, %v1382
    %v1395 = vor.u32 %v1393, %v1394
    %v1396 = vshll.u32 920167782, %v1381
    %v1397 = vshrl.u32 1326507024, %v1382
    %v1398 = vor.u32 %v1396, %v1397
    %vm1399 = vcmp.lt.s32.totalorder %v1380, 1
    %vm1400 = vcmp.lt.s32.totalorder %v1380, 2
    %vm1401 = vcmp.lt.s32.totalorder %v1380, 3
    %vm1402 = vcmp.lt.s32.totalorder %v1380, 4
    %v1403 = vsel %vm1399, %v1383, %v1386
    %v1404 = vsel %vm1402, %v1392, 2102212464
    %v1405 = vsel %vm1401, %v1389, %v1404
    %v1406 = vsel %vm1400, %v1403, %v1405
    %v1407 = vsel %vm1399, %v1386, %v1389
    %v1408 = vsel %vm1402, %v1395, 920167782
    %v1409 = vsel %vm1401, %v1392, %v1408
    %v1410 = vsel %vm1400, %v1407, %v1409
    %v1411 = vsel %vm1399, %v1389, %v1392
    %v1412 = vsel %vm1402, %v1398, 1326507024
    %v1413 = vsel %vm1401, %v1395, %v1412
    %v1414 = vsel %vm1400, %v1411, %v1413
    %v1415 = vshll.u32 %v1375, 8
    %v1416 = vmul.u32.u64.compose %v1415, %v1414
    %v1417 = vextract.low.u32 %v1416
    %v1418 = vextract.high.u32 %v1416
    %v1419 = vmul.u32.u64.compose %v1415, %v1410
    %v1420 = vextract.low.u32 %v1419
    %v1421 = vextract.high.u32 %v1419
    %v1422 = vmul.u32 %v1415, %v1406
    %v1423 = vadd.s32 %v1418, %v1420
    %vm1424 = vc.u32 %v1418, %v1420
    %v1425 = vadd.s32 %v1421, 1
    %v1426 = vsel %vm1424, %v1425, %v1421
    %v1427 = vadd.s32 %v1422, %v1426
    %v1428 = vadd.s32 %v1427, 536870912
    %v1429 = vshrl.u32 %v1428, 30
    %v1430 = vshll.u32 %v1429, 30
    %v1431 = vsub.s32 %v1427, %v1430
    %vm1432 = vcmp.lt.s32.totalorder %v1431, 0
    %v1433 = vsub.s32 0, %v1431
    %v1434 = vsel %vm1432, %v1433, %v1431
    %v1435 = vclz %v1434
    %v1436 = vsub.s32 %v1435, 2
    %vm1437 = vcmp.gt.s32.totalorder 0, %v1436
    %v1438 = vsel %vm1437, 0, %v1436
    %v1439 = vsub.s32 32, %v1438
    %v1440 = vshll.u32 %v1431, %v1438
    %v1441 = vshrl.u32 %v1423, %v1439
    %v1442 = vor.u32 %v1440, %v1441
    %v1443 = vsub.s32 4294967266, %v1438
    %v1444 = vadd.s32 %v1443, 127
    %v1445 = vshll.u32 %v1444, 23
    %v1446 = vor.u32 4788187, %v1445
    %v1447 = vand.u32 2147483647, %v1446
    %v1449 = vcvt.s32.f32 %v1442
    %v1450 = vmul.f32 %v1449, %v1447
    %v1451 = vxor.u32 %v1450, 2147483648
    %v1452 = vsel %vm1369, %v1451, %v1450
    %v1453 = vsub.s32 4, %v1429
    %v1454 = vsel %vm1369, %v1453, %v1429
    %v1455 = vsel %vm1368, %v227, %v1452
    %v1456 = vsel %vm1368, 0, %v1454
    %v1457 = vcosq.f32.pop %v1455
    %v1458 = vsinq.f32.pop %v1455
    %vm1459 = vweird.f32 %v227
    %v1460 = vand.u32 %v1456, 3
    %vm1461 = vcmp.lt.s32.totalorder %v1460, 2
    %vm1462 = vcmp.eq.s32.totalorder %v1460, 0
    %v1463 = vxor.u32 %v1458, 2147483648
    %v1464 = vsel %vm1462, %v1457, %v1463
    %vm1465 = vcmp.eq.s32.totalorder %v1460, 2
    %v1466 = vxor.u32 %v1457, 2147483648
    %v1467 = vsel %vm1465, %v1466, %v1458
    %v1468 = vsel %vm1461, %v1464, %v1467
    %v1469 = vsel %vm1459, nan, %v1468
    %v1470 = vand.u32 2147483647, %v228
    %vm1471 = vcmp.le.f32.partialorder %v1470, 0.7853982
    %vm1472 = vcmp.lt.s32.totalorder %v228, 0
    %v1473 = vand.u32 %v228, 2139095040
    %v1474 = vshrl.u32 %v1473, 23
    %v1475 = vsub.s32 %v1474, 127
    %v1476 = vand.u32 2147483647, %v228
    %v1477 = vand.u32 %v1476, 8388607
    %v1478 = vor.u32 %v1477, 8388608
    %v1479 = vsub.s32 0, %v1478
    %v1480 = vadd.s32 %v1475, 1
    %vm1481 = vcmp.gt.s32.totalorder %v1480, 0
    %v1482 = vsel %vm1481, %v1480, 0
    %v1483 = vshrl.u32 %v1482, 5
    %v1484 = vand.u32 %v1482, 31
    %v1485 = vsub.s32 32, %v1484
    %v1486 = vshrl.u32 683565275, %v1485
    %v1487 = vshll.u32 683565275, %v1484
    %v1488 = vshrl.u32 2475754826, %v1485
    %v1489 = vor.u32 %v1487, %v1488
    %v1490 = vshll.u32 2475754826, %v1484
    %v1491 = vshrl.u32 2131351028, %v1485
    %v1492 = vor.u32 %v1490, %v1491
    %v1493 = vshll.u32 2131351028, %v1484
    %v1494 = vshrl.u32 2102212464, %v1485
    %v1495 = vor.u32 %v1493, %v1494
    %v1496 = vshll.u32 2102212464, %v1484
    %v1497 = vshrl.u32 920167782, %v1485
    %v1498 = vor.u32 %v1496, %v1497
    %v1499 = vshll.u32 920167782, %v1484
    %v1500 = vshrl.u32 1326507024, %v1485
    %v1501 = vor.u32 %v1499, %v1500
    %vm1502 = vcmp.lt.s32.totalorder %v1483, 1
    %vm1503 = vcmp.lt.s32.totalorder %v1483, 2
    %vm1504 = vcmp.lt.s32.totalorder %v1483, 3
    %vm1505 = vcmp.lt.s32.totalorder %v1483, 4
    %v1506 = vsel %vm1502, %v1486, %v1489
    %v1507 = vsel %vm1505, %v1495, 2102212464
    %v1508 = vsel %vm1504, %v1492, %v1507
    %v1509 = vsel %vm1503, %v1506, %v1508
    %v1510 = vsel %vm1502, %v1489, %v1492
    %v1511 = vsel %vm1505, %v1498, 920167782
    %v1512 = vsel %vm1504, %v1495, %v1511
    %v1513 = vsel %vm1503, %v1510, %v1512
    %v1514 = vsel %vm1502, %v1492, %v1495
    %v1515 = vsel %vm1505, %v1501, 1326507024
    %v1516 = vsel %vm1504, %v1498, %v1515
    %v1517 = vsel %vm1503, %v1514, %v1516
    %v1518 = vshll.u32 %v1478, 8
    %v1519 = vmul.u32.u64.compose %v1518, %v1517
    %v1520 = vextract.low.u32 %v1519
    %v1521 = vextract.high.u32 %v1519
    %v1522 = vmul.u32.u64.compose %v1518, %v1513
    %v1523 = vextract.low.u32 %v1522
    %v1524 = vextract.high.u32 %v1522
    %v1525 = vmul.u32 %v1518, %v1509
    %v1526 = vadd.s32 %v1521, %v1523
    %vm1527 = vc.u32 %v1521, %v1523
    %v1528 = vadd.s32 %v1524, 1
    %v1529 = vsel %vm1527, %v1528, %v1524
    %v1530 = vadd.s32 %v1525, %v1529
    %v1531 = vadd.s32 %v1530, 536870912
    %v1532 = vshrl.u32 %v1531, 30
    %v1533 = vshll.u32 %v1532, 30
    %v1534 = vsub.s32 %v1530, %v1533
    %vm1535 = vcmp.lt.s32.totalorder %v1534, 0
    %v1536 = vsub.s32 0, %v1534
    %v1537 = vsel %vm1535, %v1536, %v1534
    %v1538 = vclz %v1537
    %v1539 = vsub.s32 %v1538, 2
    %vm1540 = vcmp.gt.s32.totalorder 0, %v1539
    %v1541 = vsel %vm1540, 0, %v1539
    %v1542 = vsub.s32 32, %v1541
    %v1543 = vshll.u32 %v1534, %v1541
    %v1544 = vshrl.u32 %v1526, %v1542
    %v1545 = vor.u32 %v1543, %v1544
    %v1546 = vsub.s32 4294967266, %v1541
    %v1547 = vadd.s32 %v1546, 127
    %v1548 = vshll.u32 %v1547, 23
    %v1549 = vor.u32 4788187, %v1548
    %v1550 = vand.u32 2147483647, %v1549
    %v1552 = vcvt.s32.f32 %v1545
    %v1553 = vmul.f32 %v1552, %v1550
    %v1554 = vxor.u32 %v1553, 2147483648
    %v1555 = vsel %vm1472, %v1554, %v1553
    %v1556 = vsub.s32 4, %v1532
    %v1557 = vsel %vm1472, %v1556, %v1532
    %v1558 = vsel %vm1471, %v228, %v1555
    %v1559 = vsel %vm1471, 0, %v1557
    %v1560 = vcosq.f32.pop %v1558
    %v1561 = vsinq.f32.pop %v1558
    %vm1562 = vweird.f32 %v228
    %v1563 = vand.u32 %v1559, 3
    %vm1564 = vcmp.lt.s32.totalorder %v1563, 2
    %vm1565 = vcmp.eq.s32.totalorder %v1563, 0
    %v1566 = vxor.u32 %v1561, 2147483648
    %v1567 = vsel %vm1565, %v1560, %v1566
    %vm1568 = vcmp.eq.s32.totalorder %v1563, 2
    %v1569 = vxor.u32 %v1560, 2147483648
    %v1570 = vsel %vm1568, %v1569, %v1561
    %v1571 = vsel %vm1564, %v1567, %v1570
    %v1572 = vsel %vm1562, nan, %v1571
    %v1573 = vand.u32 2147483647, %v229
    %vm1574 = vcmp.le.f32.partialorder %v1573, 0.7853982
    %vm1575 = vcmp.lt.s32.totalorder %v229, 0
    %v1576 = vand.u32 %v229, 2139095040
    %v1577 = vshrl.u32 %v1576, 23
    %v1578 = vsub.s32 %v1577, 127
    %v1579 = vand.u32 2147483647, %v229
    %v1580 = vand.u32 %v1579, 8388607
    %v1581 = vor.u32 %v1580, 8388608
    %v1582 = vsub.s32 0, %v1581
    %v1583 = vadd.s32 %v1578, 1
    %vm1584 = vcmp.gt.s32.totalorder %v1583, 0
    %v1585 = vsel %vm1584, %v1583, 0
    %v1586 = vshrl.u32 %v1585, 5
    %v1587 = vand.u32 %v1585, 31
    %v1588 = vsub.s32 32, %v1587
    %v1589 = vshrl.u32 683565275, %v1588
    %v1590 = vshll.u32 683565275, %v1587
    %v1591 = vshrl.u32 2475754826, %v1588
    %v1592 = vor.u32 %v1590, %v1591
    %v1593 = vshll.u32 2475754826, %v1587
    %v1594 = vshrl.u32 2131351028, %v1588
    %v1595 = vor.u32 %v1593, %v1594
    %v1596 = vshll.u32 2131351028, %v1587
    %v1597 = vshrl.u32 2102212464, %v1588
    %v1598 = vor.u32 %v1596, %v1597
    %v1599 = vshll.u32 2102212464, %v1587
    %v1600 = vshrl.u32 920167782, %v1588
    %v1601 = vor.u32 %v1599, %v1600
    %v1602 = vshll.u32 920167782, %v1587
    %v1603 = vshrl.u32 1326507024, %v1588
    %v1604 = vor.u32 %v1602, %v1603
    %vm1605 = vcmp.lt.s32.totalorder %v1586, 1
    %vm1606 = vcmp.lt.s32.totalorder %v1586, 2
    %vm1607 = vcmp.lt.s32.totalorder %v1586, 3
    %vm1608 = vcmp.lt.s32.totalorder %v1586, 4
    %v1609 = vsel %vm1605, %v1589, %v1592
    %v1610 = vsel %vm1608, %v1598, 2102212464
    %v1611 = vsel %vm1607, %v1595, %v1610
    %v1612 = vsel %vm1606, %v1609, %v1611
    %v1613 = vsel %vm1605, %v1592, %v1595
    %v1614 = vsel %vm1608, %v1601, 920167782
    %v1615 = vsel %vm1607, %v1598, %v1614
    %v1616 = vsel %vm1606, %v1613, %v1615
    %v1617 = vsel %vm1605, %v1595, %v1598
    %v1618 = vsel %vm1608, %v1604, 1326507024
    %v1619 = vsel %vm1607, %v1601, %v1618
    %v1620 = vsel %vm1606, %v1617, %v1619
    %v1621 = vshll.u32 %v1581, 8
    %v1622 = vmul.u32.u64.compose %v1621, %v1620
    %v1623 = vextract.low.u32 %v1622
    %v1624 = vextract.high.u32 %v1622
    %v1625 = vmul.u32.u64.compose %v1621, %v1616
    %v1626 = vextract.low.u32 %v1625
    %v1627 = vextract.high.u32 %v1625
    %v1628 = vmul.u32 %v1621, %v1612
    %v1629 = vadd.s32 %v1624, %v1626
    %vm1630 = vc.u32 %v1624, %v1626
    %v1631 = vadd.s32 %v1627, 1
    %v1632 = vsel %vm1630, %v1631, %v1627
    %v1633 = vadd.s32 %v1628, %v1632
    %v1634 = vadd.s32 %v1633, 536870912
    %v1635 = vshrl.u32 %v1634, 30
    %v1636 = vshll.u32 %v1635, 30
    %v1637 = vsub.s32 %v1633, %v1636
    %vm1638 = vcmp.lt.s32.totalorder %v1637, 0
    %v1639 = vsub.s32 0, %v1637
    %v1640 = vsel %vm1638, %v1639, %v1637
    %v1641 = vclz %v1640
    %v1642 = vsub.s32 %v1641, 2
    %vm1643 = vcmp.gt.s32.totalorder 0, %v1642
    %v1644 = vsel %vm1643, 0, %v1642
    %v1645 = vsub.s32 32, %v1644
    %v1646 = vshll.u32 %v1637, %v1644
    %v1647 = vshrl.u32 %v1629, %v1645
    %v1648 = vor.u32 %v1646, %v1647
    %v1649 = vsub.s32 4294967266, %v1644
    %v1650 = vadd.s32 %v1649, 127
    %v1651 = vshll.u32 %v1650, 23
    %v1652 = vor.u32 4788187, %v1651
    %v1653 = vand.u32 2147483647, %v1652
    %v1655 = vcvt.s32.f32 %v1648
    %v1656 = vmul.f32 %v1655, %v1653
    %v1657 = vxor.u32 %v1656, 2147483648
    %v1658 = vsel %vm1575, %v1657, %v1656
    %v1659 = vsub.s32 4, %v1635
    %v1660 = vsel %vm1575, %v1659, %v1635
    %v1661 = vsel %vm1574, %v229, %v1658
    %v1662 = vsel %vm1574, 0, %v1660
    %v1663 = vcosq.f32.pop %v1661
    %v1664 = vsinq.f32.pop %v1661
    %vm1665 = vweird.f32 %v229
    %v1666 = vand.u32 %v1662, 3
    %vm1667 = vcmp.lt.s32.totalorder %v1666, 2
    %vm1668 = vcmp.eq.s32.totalorder %v1666, 0
    %v1669 = vxor.u32 %v1664, 2147483648
    %v1670 = vsel %vm1668, %v1663, %v1669
    %vm1671 = vcmp.eq.s32.totalorder %v1666, 2
    %v1672 = vxor.u32 %v1663, 2147483648
    %v1673 = vsel %vm1671, %v1672, %v1664
    %v1674 = vsel %vm1667, %v1670, %v1673
    %v1675 = vsel %vm1665, nan, %v1674
    %v1676 = vand.u32 2147483647, %v230
    %vm1677 = vcmp.le.f32.partialorder %v1676, 0.7853982
    %vm1678 = vcmp.lt.s32.totalorder %v230, 0
    %v1679 = vand.u32 %v230, 2139095040
    %v1680 = vshrl.u32 %v1679, 23
    %v1681 = vsub.s32 %v1680, 127
    %v1682 = vand.u32 2147483647, %v230
    %v1683 = vand.u32 %v1682, 8388607
    %v1684 = vor.u32 %v1683, 8388608
    %v1685 = vsub.s32 0, %v1684
    %v1686 = vadd.s32 %v1681, 1
    %vm1687 = vcmp.gt.s32.totalorder %v1686, 0
    %v1688 = vsel %vm1687, %v1686, 0
    %v1689 = vshrl.u32 %v1688, 5
    %v1690 = vand.u32 %v1688, 31
    %v1691 = vsub.s32 32, %v1690
    %v1692 = vshrl.u32 683565275, %v1691
    %v1693 = vshll.u32 683565275, %v1690
    %v1694 = vshrl.u32 2475754826, %v1691
    %v1695 = vor.u32 %v1693, %v1694
    %v1696 = vshll.u32 2475754826, %v1690
    %v1697 = vshrl.u32 2131351028, %v1691
    %v1698 = vor.u32 %v1696, %v1697
    %v1699 = vshll.u32 2131351028, %v1690
    %v1700 = vshrl.u32 2102212464, %v1691
    %v1701 = vor.u32 %v1699, %v1700
    %v1702 = vshll.u32 2102212464, %v1690
    %v1703 = vshrl.u32 920167782, %v1691
    %v1704 = vor.u32 %v1702, %v1703
    %v1705 = vshll.u32 920167782, %v1690
    %v1706 = vshrl.u32 1326507024, %v1691
    %v1707 = vor.u32 %v1705, %v1706
    %vm1708 = vcmp.lt.s32.totalorder %v1689, 1
    %vm1709 = vcmp.lt.s32.totalorder %v1689, 2
    %vm1710 = vcmp.lt.s32.totalorder %v1689, 3
    %vm1711 = vcmp.lt.s32.totalorder %v1689, 4
    %v1712 = vsel %vm1708, %v1692, %v1695
    %v1713 = vsel %vm1711, %v1701, 2102212464
    %v1714 = vsel %vm1710, %v1698, %v1713
    %v1715 = vsel %vm1709, %v1712, %v1714
    %v1716 = vsel %vm1708, %v1695, %v1698
    %v1717 = vsel %vm1711, %v1704, 920167782
    %v1718 = vsel %vm1710, %v1701, %v1717
    %v1719 = vsel %vm1709, %v1716, %v1718
    %v1720 = vsel %vm1708, %v1698, %v1701
    %v1721 = vsel %vm1711, %v1707, 1326507024
    %v1722 = vsel %vm1710, %v1704, %v1721
    %v1723 = vsel %vm1709, %v1720, %v1722
    %v1724 = vshll.u32 %v1684, 8
    %v1725 = vmul.u32.u64.compose %v1724, %v1723
    %v1726 = vextract.low.u32 %v1725
    %v1727 = vextract.high.u32 %v1725
    %v1728 = vmul.u32.u64.compose %v1724, %v1719
    %v1729 = vextract.low.u32 %v1728
    %v1730 = vextract.high.u32 %v1728
    %v1731 = vmul.u32 %v1724, %v1715
    %v1732 = vadd.s32 %v1727, %v1729
    %vm1733 = vc.u32 %v1727, %v1729
    %v1734 = vadd.s32 %v1730, 1
    %v1735 = vsel %vm1733, %v1734, %v1730
    %v1736 = vadd.s32 %v1731, %v1735
    %v1737 = vadd.s32 %v1736, 536870912
    %v1738 = vshrl.u32 %v1737, 30
    %v1739 = vshll.u32 %v1738, 30
    %v1740 = vsub.s32 %v1736, %v1739
    %vm1741 = vcmp.lt.s32.totalorder %v1740, 0
    %v1742 = vsub.s32 0, %v1740
    %v1743 = vsel %vm1741, %v1742, %v1740
    %v1744 = vclz %v1743
    %v1745 = vsub.s32 %v1744, 2
    %vm1746 = vcmp.gt.s32.totalorder 0, %v1745
    %v1747 = vsel %vm1746, 0, %v1745
    %v1748 = vsub.s32 32, %v1747
    %v1749 = vshll.u32 %v1740, %v1747
    %v1750 = vshrl.u32 %v1732, %v1748
    %v1751 = vor.u32 %v1749, %v1750
    %v1752 = vsub.s32 4294967266, %v1747
    %v1753 = vadd.s32 %v1752, 127
    %v1754 = vshll.u32 %v1753, 23
    %v1755 = vor.u32 4788187, %v1754
    %v1756 = vand.u32 2147483647, %v1755
    %v1758 = vcvt.s32.f32 %v1751
    %v1759 = vmul.f32 %v1758, %v1756
    %v1760 = vxor.u32 %v1759, 2147483648
    %v1761 = vsel %vm1678, %v1760, %v1759
    %v1762 = vsub.s32 4, %v1738
    %v1763 = vsel %vm1678, %v1762, %v1738
    %v1764 = vsel %vm1677, %v230, %v1761
    %v1765 = vsel %vm1677, 0, %v1763
    %v1766 = vcosq.f32.pop %v1764
    %v1767 = vsinq.f32.pop %v1764
    %vm1768 = vweird.f32 %v230
    %v1769 = vand.u32 %v1765, 3
    %vm1770 = vcmp.lt.s32.totalorder %v1769, 2
    %vm1771 = vcmp.eq.s32.totalorder %v1769, 0
    %v1772 = vxor.u32 %v1767, 2147483648
    %v1773 = vsel %vm1771, %v1766, %v1772
    %vm1774 = vcmp.eq.s32.totalorder %v1769, 2
    %v1775 = vxor.u32 %v1766, 2147483648
    %v1776 = vsel %vm1774, %v1775, %v1767
    %v1777 = vsel %vm1770, %v1773, %v1776
    %v1778 = vsel %vm1768, nan, %v1777
    %v1779 = vand.u32 2147483647, %v231
    %vm1780 = vcmp.le.f32.partialorder %v1779, 0.7853982
    %vm1781 = vcmp.lt.s32.totalorder %v231, 0
    %v1782 = vand.u32 %v231, 2139095040
    %v1783 = vshrl.u32 %v1782, 23
    %v1784 = vsub.s32 %v1783, 127
    %v1785 = vand.u32 2147483647, %v231
    %v1786 = vand.u32 %v1785, 8388607
    %v1787 = vor.u32 %v1786, 8388608
    %v1788 = vsub.s32 0, %v1787
    %v1789 = vadd.s32 %v1784, 1
    %vm1790 = vcmp.gt.s32.totalorder %v1789, 0
    %v1791 = vsel %vm1790, %v1789, 0
    %v1792 = vshrl.u32 %v1791, 5
    %v1793 = vand.u32 %v1791, 31
    %v1794 = vsub.s32 32, %v1793
    %v1795 = vshrl.u32 683565275, %v1794
    %v1796 = vshll.u32 683565275, %v1793
    %v1797 = vshrl.u32 2475754826, %v1794
    %v1798 = vor.u32 %v1796, %v1797
    %v1799 = vshll.u32 2475754826, %v1793
    %v1800 = vshrl.u32 2131351028, %v1794
    %v1801 = vor.u32 %v1799, %v1800
    %v1802 = vshll.u32 2131351028, %v1793
    %v1803 = vshrl.u32 2102212464, %v1794
    %v1804 = vor.u32 %v1802, %v1803
    %v1805 = vshll.u32 2102212464, %v1793
    %v1806 = vshrl.u32 920167782, %v1794
    %v1807 = vor.u32 %v1805, %v1806
    %v1808 = vshll.u32 920167782, %v1793
    %v1809 = vshrl.u32 1326507024, %v1794
    %v1810 = vor.u32 %v1808, %v1809
    %vm1811 = vcmp.lt.s32.totalorder %v1792, 1
    %vm1812 = vcmp.lt.s32.totalorder %v1792, 2
    %vm1813 = vcmp.lt.s32.totalorder %v1792, 3
    %vm1814 = vcmp.lt.s32.totalorder %v1792, 4
    %v1815 = vsel %vm1811, %v1795, %v1798
    %v1816 = vsel %vm1814, %v1804, 2102212464
    %v1817 = vsel %vm1813, %v1801, %v1816
    %v1818 = vsel %vm1812, %v1815, %v1817
    %v1819 = vsel %vm1811, %v1798, %v1801
    %v1820 = vsel %vm1814, %v1807, 920167782
    %v1821 = vsel %vm1813, %v1804, %v1820
    %v1822 = vsel %vm1812, %v1819, %v1821
    %v1823 = vsel %vm1811, %v1801, %v1804
    %v1824 = vsel %vm1814, %v1810, 1326507024
    %v1825 = vsel %vm1813, %v1807, %v1824
    %v1826 = vsel %vm1812, %v1823, %v1825
    %v1827 = vshll.u32 %v1787, 8
    %v1828 = vmul.u32.u64.compose %v1827, %v1826
    %v1829 = vextract.low.u32 %v1828
    %v1830 = vextract.high.u32 %v1828
    %v1831 = vmul.u32.u64.compose %v1827, %v1822
    %v1832 = vextract.low.u32 %v1831
    %v1833 = vextract.high.u32 %v1831
    %v1834 = vmul.u32 %v1827, %v1818
    %v1835 = vadd.s32 %v1830, %v1832
    %vm1836 = vc.u32 %v1830, %v1832
    %v1837 = vadd.s32 %v1833, 1
    %v1838 = vsel %vm1836, %v1837, %v1833
    %v1839 = vadd.s32 %v1834, %v1838
    %v1840 = vadd.s32 %v1839, 536870912
    %v1841 = vshrl.u32 %v1840, 30
    %v1842 = vshll.u32 %v1841, 30
    %v1843 = vsub.s32 %v1839, %v1842
    %vm1844 = vcmp.lt.s32.totalorder %v1843, 0
    %v1845 = vsub.s32 0, %v1843
    %v1846 = vsel %vm1844, %v1845, %v1843
    %v1847 = vclz %v1846
    %v1848 = vsub.s32 %v1847, 2
    %vm1849 = vcmp.gt.s32.totalorder 0, %v1848
    %v1850 = vsel %vm1849, 0, %v1848
    %v1851 = vsub.s32 32, %v1850
    %v1852 = vshll.u32 %v1843, %v1850
    %v1853 = vshrl.u32 %v1835, %v1851
    %v1854 = vor.u32 %v1852, %v1853
    %v1855 = vsub.s32 4294967266, %v1850
    %v1856 = vadd.s32 %v1855, 127
    %v1857 = vshll.u32 %v1856, 23
    %v1858 = vor.u32 4788187, %v1857
    %v1859 = vand.u32 2147483647, %v1858
    %v1861 = vcvt.s32.f32 %v1854
    %v1862 = vmul.f32 %v1861, %v1859
    %v1863 = vxor.u32 %v1862, 2147483648
    %v1864 = vsel %vm1781, %v1863, %v1862
    %v1865 = vsub.s32 4, %v1841
    %v1866 = vsel %vm1781, %v1865, %v1841
    %v1867 = vsel %vm1780, %v231, %v1864
    %v1868 = vsel %vm1780, 0, %v1866
    %v1869 = vcosq.f32.pop %v1867
    %v1870 = vsinq.f32.pop %v1867
    %vm1871 = vweird.f32 %v231
    %v1872 = vand.u32 %v1868, 3
    %vm1873 = vcmp.lt.s32.totalorder %v1872, 2
    %vm1874 = vcmp.eq.s32.totalorder %v1872, 0
    %v1875 = vxor.u32 %v1870, 2147483648
    %v1876 = vsel %vm1874, %v1869, %v1875
    %vm1877 = vcmp.eq.s32.totalorder %v1872, 2
    %v1878 = vxor.u32 %v1869, 2147483648
    %v1879 = vsel %vm1877, %v1878, %v1870
    %v1880 = vsel %vm1873, %v1876, %v1879
    %v1881 = vsel %vm1871, nan, %v1880
    %v1882 = vand.u32 2147483647, %v232
    %vm1883 = vcmp.le.f32.partialorder %v1882, 0.7853982
    %vm1884 = vcmp.lt.s32.totalorder %v232, 0
    %v1885 = vand.u32 %v232, 2139095040
    %v1886 = vshrl.u32 %v1885, 23
    %v1887 = vsub.s32 %v1886, 127
    %v1888 = vand.u32 2147483647, %v232
    %v1889 = vand.u32 %v1888, 8388607
    %v1890 = vor.u32 %v1889, 8388608
    %v1891 = vsub.s32 0, %v1890
    %v1892 = vadd.s32 %v1887, 1
    %vm1893 = vcmp.gt.s32.totalorder %v1892, 0
    %v1894 = vsel %vm1893, %v1892, 0
    %v1895 = vshrl.u32 %v1894, 5
    %v1896 = vand.u32 %v1894, 31
    %v1897 = vsub.s32 32, %v1896
    %v1898 = vshrl.u32 683565275, %v1897
    %v1899 = vshll.u32 683565275, %v1896
    %v1900 = vshrl.u32 2475754826, %v1897
    %v1901 = vor.u32 %v1899, %v1900
    %v1902 = vshll.u32 2475754826, %v1896
    %v1903 = vshrl.u32 2131351028, %v1897
    %v1904 = vor.u32 %v1902, %v1903
    %v1905 = vshll.u32 2131351028, %v1896
    %v1906 = vshrl.u32 2102212464, %v1897
    %v1907 = vor.u32 %v1905, %v1906
    %v1908 = vshll.u32 2102212464, %v1896
    %v1909 = vshrl.u32 920167782, %v1897
    %v1910 = vor.u32 %v1908, %v1909
    %v1911 = vshll.u32 920167782, %v1896
    %v1912 = vshrl.u32 1326507024, %v1897
    %v1913 = vor.u32 %v1911, %v1912
    %vm1914 = vcmp.lt.s32.totalorder %v1895, 1
    %vm1915 = vcmp.lt.s32.totalorder %v1895, 2
    %vm1916 = vcmp.lt.s32.totalorder %v1895, 3
    %vm1917 = vcmp.lt.s32.totalorder %v1895, 4
    %v1918 = vsel %vm1914, %v1898, %v1901
    %v1919 = vsel %vm1917, %v1907, 2102212464
    %v1920 = vsel %vm1916, %v1904, %v1919
    %v1921 = vsel %vm1915, %v1918, %v1920
    %v1922 = vsel %vm1914, %v1901, %v1904
    %v1923 = vsel %vm1917, %v1910, 920167782
    %v1924 = vsel %vm1916, %v1907, %v1923
    %v1925 = vsel %vm1915, %v1922, %v1924
    %v1926 = vsel %vm1914, %v1904, %v1907
    %v1927 = vsel %vm1917, %v1913, 1326507024
    %v1928 = vsel %vm1916, %v1910, %v1927
    %v1929 = vsel %vm1915, %v1926, %v1928
    %v1930 = vshll.u32 %v1890, 8
    %v1931 = vmul.u32.u64.compose %v1930, %v1929
    %v1932 = vextract.low.u32 %v1931
    %v1933 = vextract.high.u32 %v1931
    %v1934 = vmul.u32.u64.compose %v1930, %v1925
    %v1935 = vextract.low.u32 %v1934
    %v1936 = vextract.high.u32 %v1934
    %v1937 = vmul.u32 %v1930, %v1921
    %v1938 = vadd.s32 %v1933, %v1935
    %vm1939 = vc.u32 %v1933, %v1935
    %v1940 = vadd.s32 %v1936, 1
    %v1941 = vsel %vm1939, %v1940, %v1936
    %v1942 = vadd.s32 %v1937, %v1941
    %v1943 = vadd.s32 %v1942, 536870912
    %v1944 = vshrl.u32 %v1943, 30
    %v1945 = vshll.u32 %v1944, 30
    %v1946 = vsub.s32 %v1942, %v1945
    %vm1947 = vcmp.lt.s32.totalorder %v1946, 0
    %v1948 = vsub.s32 0, %v1946
    %v1949 = vsel %vm1947, %v1948, %v1946
    %v1950 = vclz %v1949
    %v1951 = vsub.s32 %v1950, 2
    %vm1952 = vcmp.gt.s32.totalorder 0, %v1951
    %v1953 = vsel %vm1952, 0, %v1951
    %v1954 = vsub.s32 32, %v1953
    %v1955 = vshll.u32 %v1946, %v1953
    %v1956 = vshrl.u32 %v1938, %v1954
    %v1957 = vor.u32 %v1955, %v1956
    %v1958 = vsub.s32 4294967266, %v1953
    %v1959 = vadd.s32 %v1958, 127
    %v1960 = vshll.u32 %v1959, 23
    %v1961 = vor.u32 4788187, %v1960
    %v1962 = vand.u32 2147483647, %v1961
    %v1964 = vcvt.s32.f32 %v1957
    %v1965 = vmul.f32 %v1964, %v1962
    %v1966 = vxor.u32 %v1965, 2147483648
    %v1967 = vsel %vm1884, %v1966, %v1965
    %v1968 = vsub.s32 4, %v1944
    %v1969 = vsel %vm1884, %v1968, %v1944
    %v1970 = vsel %vm1883, %v232, %v1967
    %v1971 = vsel %vm1883, 0, %v1969
    %v1972 = vcosq.f32.pop %v1970
    %v1973 = vsinq.f32.pop %v1970
    %vm1974 = vweird.f32 %v232
    %v1975 = vand.u32 %v1971, 3
    %vm1976 = vcmp.lt.s32.totalorder %v1975, 2
    %vm1977 = vcmp.eq.s32.totalorder %v1975, 0
    %v1978 = vxor.u32 %v1973, 2147483648
    %v1979 = vsel %vm1977, %v1972, %v1978
    %vm1980 = vcmp.eq.s32.totalorder %v1975, 2
    %v1981 = vxor.u32 %v1972, 2147483648
    %v1982 = vsel %vm1980, %v1981, %v1973
    %v1983 = vsel %vm1976, %v1979, %v1982
    %v1984 = vsel %vm1974, nan, %v1983
    %v1985 = vstv %s110
    %v1986 = vmul.f32 %v1985, %v439
    %v1987 = vmul.f32 %v1985, %v542
    %v1988 = vmul.f32 %v1985, %v645
    %v1989 = vmul.f32 %v1985, %v748
    %v1990 = vmul.f32 %v1985, %v851
    %v1991 = vmul.f32 %v1985, %v954
    %v1992 = vmul.f32 %v1985, %v1057
    %v1993 = vmul.f32 %v1985, %v1160
    %v1994 = vmul.f32 %v1985, %v1263
    %v1995 = vmul.f32 %v1985, %v1366
    %v1996 = vmul.f32 %v1985, %v1469
    %v1997 = vmul.f32 %v1985, %v1572
    %v1998 = vmul.f32 %v1985, %v1675
    %v1999 = vmul.f32 %v1985, %v1778
    %v2000 = vmul.f32 %v1985, %v1881
    %v2001 = vmul.f32 %v1985, %v1984
    %v2002 = vand.u32 2147483647, %v321
    %vm2003 = vcmp.le.f32.partialorder %v2002, 0.7853982
    %vm2004 = vcmp.lt.s32.totalorder %v321, 0
    %v2005 = vand.u32 %v321, 2139095040
    %v2006 = vshrl.u32 %v2005, 23
    %v2007 = vsub.s32 %v2006, 127
    %v2008 = vand.u32 2147483647, %v321
    %v2009 = vand.u32 %v2008, 8388607
    %v2010 = vor.u32 %v2009, 8388608
    %v2011 = vsub.s32 0, %v2010
    %v2012 = vadd.s32 %v2007, 1
    %vm2013 = vcmp.gt.s32.totalorder %v2012, 0
    %v2014 = vsel %vm2013, %v2012, 0
    %v2015 = vshrl.u32 %v2014, 5
    %v2016 = vand.u32 %v2014, 31
    %v2017 = vsub.s32 32, %v2016
    %v2018 = vshrl.u32 683565275, %v2017
    %v2019 = vshll.u32 683565275, %v2016
    %v2020 = vshrl.u32 2475754826, %v2017
    %v2021 = vor.u32 %v2019, %v2020
    %v2022 = vshll.u32 2475754826, %v2016
    %v2023 = vshrl.u32 2131351028, %v2017
    %v2024 = vor.u32 %v2022, %v2023
    %v2025 = vshll.u32 2131351028, %v2016
    %v2026 = vshrl.u32 2102212464, %v2017
    %v2027 = vor.u32 %v2025, %v2026
    %v2028 = vshll.u32 2102212464, %v2016
    %v2029 = vshrl.u32 920167782, %v2017
    %v2030 = vor.u32 %v2028, %v2029
    %v2031 = vshll.u32 920167782, %v2016
    %v2032 = vshrl.u32 1326507024, %v2017
    %v2033 = vor.u32 %v2031, %v2032
    %vm2034 = vcmp.lt.s32.totalorder %v2015, 1
    %vm2035 = vcmp.lt.s32.totalorder %v2015, 2
    %vm2036 = vcmp.lt.s32.totalorder %v2015, 3
    %vm2037 = vcmp.lt.s32.totalorder %v2015, 4
    %v2038 = vsel %vm2034, %v2018, %v2021
    %v2039 = vsel %vm2037, %v2027, 2102212464
    %v2040 = vsel %vm2036, %v2024, %v2039
    %v2041 = vsel %vm2035, %v2038, %v2040
    %v2042 = vsel %vm2034, %v2021, %v2024
    %v2043 = vsel %vm2037, %v2030, 920167782
    %v2044 = vsel %vm2036, %v2027, %v2043
    %v2045 = vsel %vm2035, %v2042, %v2044
    %v2046 = vsel %vm2034, %v2024, %v2027
    %v2047 = vsel %vm2037, %v2033, 1326507024
    %v2048 = vsel %vm2036, %v2030, %v2047
    %v2049 = vsel %vm2035, %v2046, %v2048
    %v2050 = vshll.u32 %v2010, 8
    %v2051 = vmul.u32.u64.compose %v2050, %v2049
    %v2052 = vextract.low.u32 %v2051
    %v2053 = vextract.high.u32 %v2051
    %v2054 = vmul.u32.u64.compose %v2050, %v2045
    %v2055 = vextract.low.u32 %v2054
    %v2056 = vextract.high.u32 %v2054
    %v2057 = vmul.u32 %v2050, %v2041
    %v2058 = vadd.s32 %v2053, %v2055
    %vm2059 = vc.u32 %v2053, %v2055
    %v2060 = vadd.s32 %v2056, 1
    %v2061 = vsel %vm2059, %v2060, %v2056
    %v2062 = vadd.s32 %v2057, %v2061
    %v2063 = vadd.s32 %v2062, 536870912
    %v2064 = vshrl.u32 %v2063, 30
    %v2065 = vshll.u32 %v2064, 30
    %v2066 = vsub.s32 %v2062, %v2065
    %vm2067 = vcmp.lt.s32.totalorder %v2066, 0
    %v2068 = vsub.s32 0, %v2066
    %v2069 = vsel %vm2067, %v2068, %v2066
    %v2070 = vclz %v2069
    %v2071 = vsub.s32 %v2070, 2
    %vm2072 = vcmp.gt.s32.totalorder 0, %v2071
    %v2073 = vsel %vm2072, 0, %v2071
    %v2074 = vsub.s32 32, %v2073
    %v2075 = vshll.u32 %v2066, %v2073
    %v2076 = vshrl.u32 %v2058, %v2074
    %v2077 = vor.u32 %v2075, %v2076
    %v2078 = vsub.s32 4294967266, %v2073
    %v2079 = vadd.s32 %v2078, 127
    %v2080 = vshll.u32 %v2079, 23
    %v2081 = vor.u32 4788187, %v2080
    %v2082 = vand.u32 2147483647, %v2081
    %v2084 = vcvt.s32.f32 %v2077
    %v2085 = vmul.f32 %v2084, %v2082
    %v2086 = vxor.u32 %v2085, 2147483648
    %v2087 = vsel %vm2004, %v2086, %v2085
    %v2088 = vsub.s32 4, %v2064
    %v2089 = vsel %vm2004, %v2088, %v2064
    %v2090 = vsel %vm2003, %v321, %v2087
    %v2091 = vsel %vm2003, 0, %v2089
    %v2092 = vcosq.f32.pop %v2090
    %v2093 = vsinq.f32.pop %v2090
    %vm2094 = vweird.f32 %v321
    %v2095 = vadd.s32 %v2091, 3
    %v2096 = vand.u32 %v2095, 3
    %vm2097 = vcmp.lt.s32.totalorder %v2096, 2
    %vm2098 = vcmp.eq.s32.totalorder %v2096, 0
    %v2099 = vxor.u32 %v2093, 2147483648
    %v2100 = vsel %vm2098, %v2092, %v2099
    %vm2101 = vcmp.eq.s32.totalorder %v2096, 2
    %v2102 = vxor.u32 %v2092, 2147483648
    %v2103 = vsel %vm2101, %v2102, %v2093
    %v2104 = vsel %vm2097, %v2100, %v2103
    %v2105 = vsel %vm2094, nan, %v2104
    %v2106 = vand.u32 2147483647, %v322
    %vm2107 = vcmp.le.f32.partialorder %v2106, 0.7853982
    %vm2108 = vcmp.lt.s32.totalorder %v322, 0
    %v2109 = vand.u32 %v322, 2139095040
    %v2110 = vshrl.u32 %v2109, 23
    %v2111 = vsub.s32 %v2110, 127
    %v2112 = vand.u32 2147483647, %v322
    %v2113 = vand.u32 %v2112, 8388607
    %v2114 = vor.u32 %v2113, 8388608
    %v2115 = vsub.s32 0, %v2114
    %v2116 = vadd.s32 %v2111, 1
    %vm2117 = vcmp.gt.s32.totalorder %v2116, 0
    %v2118 = vsel %vm2117, %v2116, 0
    %v2119 = vshrl.u32 %v2118, 5
    %v2120 = vand.u32 %v2118, 31
    %v2121 = vsub.s32 32, %v2120
    %v2122 = vshrl.u32 683565275, %v2121
    %v2123 = vshll.u32 683565275, %v2120
    %v2124 = vshrl.u32 2475754826, %v2121
    %v2125 = vor.u32 %v2123, %v2124
    %v2126 = vshll.u32 2475754826, %v2120
    %v2127 = vshrl.u32 2131351028, %v2121
    %v2128 = vor.u32 %v2126, %v2127
    %v2129 = vshll.u32 2131351028, %v2120
    %v2130 = vshrl.u32 2102212464, %v2121
    %v2131 = vor.u32 %v2129, %v2130
    %v2132 = vshll.u32 2102212464, %v2120
    %v2133 = vshrl.u32 920167782, %v2121
    %v2134 = vor.u32 %v2132, %v2133
    %v2135 = vshll.u32 920167782, %v2120
    %v2136 = vshrl.u32 1326507024, %v2121
    %v2137 = vor.u32 %v2135, %v2136
    %vm2138 = vcmp.lt.s32.totalorder %v2119, 1
    %vm2139 = vcmp.lt.s32.totalorder %v2119, 2
    %vm2140 = vcmp.lt.s32.totalorder %v2119, 3
    %vm2141 = vcmp.lt.s32.totalorder %v2119, 4
    %v2142 = vsel %vm2138, %v2122, %v2125
    %v2143 = vsel %vm2141, %v2131, 2102212464
    %v2144 = vsel %vm2140, %v2128, %v2143
    %v2145 = vsel %vm2139, %v2142, %v2144
    %v2146 = vsel %vm2138, %v2125, %v2128
    %v2147 = vsel %vm2141, %v2134, 920167782
    %v2148 = vsel %vm2140, %v2131, %v2147
    %v2149 = vsel %vm2139, %v2146, %v2148
    %v2150 = vsel %vm2138, %v2128, %v2131
    %v2151 = vsel %vm2141, %v2137, 1326507024
    %v2152 = vsel %vm2140, %v2134, %v2151
    %v2153 = vsel %vm2139, %v2150, %v2152
    %v2154 = vshll.u32 %v2114, 8
    %v2155 = vmul.u32.u64.compose %v2154, %v2153
    %v2156 = vextract.low.u32 %v2155
    %v2157 = vextract.high.u32 %v2155
    %v2158 = vmul.u32.u64.compose %v2154, %v2149
    %v2159 = vextract.low.u32 %v2158
    %v2160 = vextract.high.u32 %v2158
    %v2161 = vmul.u32 %v2154, %v2145
    %v2162 = vadd.s32 %v2157, %v2159
    %vm2163 = vc.u32 %v2157, %v2159
    %v2164 = vadd.s32 %v2160, 1
    %v2165 = vsel %vm2163, %v2164, %v2160
    %v2166 = vadd.s32 %v2161, %v2165
    %v2167 = vadd.s32 %v2166, 536870912
    %v2168 = vshrl.u32 %v2167, 30
    %v2169 = vshll.u32 %v2168, 30
    %v2170 = vsub.s32 %v2166, %v2169
    %vm2171 = vcmp.lt.s32.totalorder %v2170, 0
    %v2172 = vsub.s32 0, %v2170
    %v2173 = vsel %vm2171, %v2172, %v2170
    %v2174 = vclz %v2173
    %v2175 = vsub.s32 %v2174, 2
    %vm2176 = vcmp.gt.s32.totalorder 0, %v2175
    %v2177 = vsel %vm2176, 0, %v2175
    %v2178 = vsub.s32 32, %v2177
    %v2179 = vshll.u32 %v2170, %v2177
    %v2180 = vshrl.u32 %v2162, %v2178
    %v2181 = vor.u32 %v2179, %v2180
    %v2182 = vsub.s32 4294967266, %v2177
    %v2183 = vadd.s32 %v2182, 127
    %v2184 = vshll.u32 %v2183, 23
    %v2185 = vor.u32 4788187, %v2184
    %v2186 = vand.u32 2147483647, %v2185
    %v2188 = vcvt.s32.f32 %v2181
    %v2189 = vmul.f32 %v2188, %v2186
    %v2190 = vxor.u32 %v2189, 2147483648
    %v2191 = vsel %vm2108, %v2190, %v2189
    %v2192 = vsub.s32 4, %v2168
    %v2193 = vsel %vm2108, %v2192, %v2168
    %v2194 = vsel %vm2107, %v322, %v2191
    %v2195 = vsel %vm2107, 0, %v2193
    %v2196 = vcosq.f32.pop %v2194
    %v2197 = vsinq.f32.pop %v2194
    %vm2198 = vweird.f32 %v322
    %v2199 = vadd.s32 %v2195, 3
    %v2200 = vand.u32 %v2199, 3
    %vm2201 = vcmp.lt.s32.totalorder %v2200, 2
    %vm2202 = vcmp.eq.s32.totalorder %v2200, 0
    %v2203 = vxor.u32 %v2197, 2147483648
    %v2204 = vsel %vm2202, %v2196, %v2203
    %vm2205 = vcmp.eq.s32.totalorder %v2200, 2
    %v2206 = vxor.u32 %v2196, 2147483648
    %v2207 = vsel %vm2205, %v2206, %v2197
    %v2208 = vsel %vm2201, %v2204, %v2207
    %v2209 = vsel %vm2198, nan, %v2208
    %v2210 = vand.u32 2147483647, %v323
    %vm2211 = vcmp.le.f32.partialorder %v2210, 0.7853982
    %vm2212 = vcmp.lt.s32.totalorder %v323, 0
    %v2213 = vand.u32 %v323, 2139095040
    %v2214 = vshrl.u32 %v2213, 23
    %v2215 = vsub.s32 %v2214, 127
    %v2216 = vand.u32 2147483647, %v323
    %v2217 = vand.u32 %v2216, 8388607
    %v2218 = vor.u32 %v2217, 8388608
    %v2219 = vsub.s32 0, %v2218
    %v2220 = vadd.s32 %v2215, 1
    %vm2221 = vcmp.gt.s32.totalorder %v2220, 0
    %v2222 = vsel %vm2221, %v2220, 0
    %v2223 = vshrl.u32 %v2222, 5
    %v2224 = vand.u32 %v2222, 31
    %v2225 = vsub.s32 32, %v2224
    %v2226 = vshrl.u32 683565275, %v2225
    %v2227 = vshll.u32 683565275, %v2224
    %v2228 = vshrl.u32 2475754826, %v2225
    %v2229 = vor.u32 %v2227, %v2228
    %v2230 = vshll.u32 2475754826, %v2224
    %v2231 = vshrl.u32 2131351028, %v2225
    %v2232 = vor.u32 %v2230, %v2231
    %v2233 = vshll.u32 2131351028, %v2224
    %v2234 = vshrl.u32 2102212464, %v2225
    %v2235 = vor.u32 %v2233, %v2234
    %v2236 = vshll.u32 2102212464, %v2224
    %v2237 = vshrl.u32 920167782, %v2225
    %v2238 = vor.u32 %v2236, %v2237
    %v2239 = vshll.u32 920167782, %v2224
    %v2240 = vshrl.u32 1326507024, %v2225
    %v2241 = vor.u32 %v2239, %v2240
    %vm2242 = vcmp.lt.s32.totalorder %v2223, 1
    %vm2243 = vcmp.lt.s32.totalorder %v2223, 2
    %vm2244 = vcmp.lt.s32.totalorder %v2223, 3
    %vm2245 = vcmp.lt.s32.totalorder %v2223, 4
    %v2246 = vsel %vm2242, %v2226, %v2229
    %v2247 = vsel %vm2245, %v2235, 2102212464
    %v2248 = vsel %vm2244, %v2232, %v2247
    %v2249 = vsel %vm2243, %v2246, %v2248
    %v2250 = vsel %vm2242, %v2229, %v2232
    %v2251 = vsel %vm2245, %v2238, 920167782
    %v2252 = vsel %vm2244, %v2235, %v2251
    %v2253 = vsel %vm2243, %v2250, %v2252
    %v2254 = vsel %vm2242, %v2232, %v2235
    %v2255 = vsel %vm2245, %v2241, 1326507024
    %v2256 = vsel %vm2244, %v2238, %v2255
    %v2257 = vsel %vm2243, %v2254, %v2256
    %v2258 = vshll.u32 %v2218, 8
    %v2259 = vmul.u32.u64.compose %v2258, %v2257
    %v2260 = vextract.low.u32 %v2259
    %v2261 = vextract.high.u32 %v2259
    %v2262 = vmul.u32.u64.compose %v2258, %v2253
    %v2263 = vextract.low.u32 %v2262
    %v2264 = vextract.high.u32 %v2262
    %v2265 = vmul.u32 %v2258, %v2249
    %v2266 = vadd.s32 %v2261, %v2263
    %vm2267 = vc.u32 %v2261, %v2263
    %v2268 = vadd.s32 %v2264, 1
    %v2269 = vsel %vm2267, %v2268, %v2264
    %v2270 = vadd.s32 %v2265, %v2269
    %v2271 = vadd.s32 %v2270, 536870912
    %v2272 = vshrl.u32 %v2271, 30
    %v2273 = vshll.u32 %v2272, 30
    %v2274 = vsub.s32 %v2270, %v2273
    %vm2275 = vcmp.lt.s32.totalorder %v2274, 0
    %v2276 = vsub.s32 0, %v2274
    %v2277 = vsel %vm2275, %v2276, %v2274
    %v2278 = vclz %v2277
    %v2279 = vsub.s32 %v2278, 2
    %vm2280 = vcmp.gt.s32.totalorder 0, %v2279
    %v2281 = vsel %vm2280, 0, %v2279
    %v2282 = vsub.s32 32, %v2281
    %v2283 = vshll.u32 %v2274, %v2281
    %v2284 = vshrl.u32 %v2266, %v2282
    %v2285 = vor.u32 %v2283, %v2284
    %v2286 = vsub.s32 4294967266, %v2281
    %v2287 = vadd.s32 %v2286, 127
    %v2288 = vshll.u32 %v2287, 23
    %v2289 = vor.u32 4788187, %v2288
    %v2290 = vand.u32 2147483647, %v2289
    %v2292 = vcvt.s32.f32 %v2285
    %v2293 = vmul.f32 %v2292, %v2290
    %v2294 = vxor.u32 %v2293, 2147483648
    %v2295 = vsel %vm2212, %v2294, %v2293
    %v2296 = vsub.s32 4, %v2272
    %v2297 = vsel %vm2212, %v2296, %v2272
    %v2298 = vsel %vm2211, %v323, %v2295
    %v2299 = vsel %vm2211, 0, %v2297
    %v2300 = vcosq.f32.pop %v2298
    %v2301 = vsinq.f32.pop %v2298
    %vm2302 = vweird.f32 %v323
    %v2303 = vadd.s32 %v2299, 3
    %v2304 = vand.u32 %v2303, 3
    %vm2305 = vcmp.lt.s32.totalorder %v2304, 2
    %vm2306 = vcmp.eq.s32.totalorder %v2304, 0
    %v2307 = vxor.u32 %v2301, 2147483648
    %v2308 = vsel %vm2306, %v2300, %v2307
    %vm2309 = vcmp.eq.s32.totalorder %v2304, 2
    %v2310 = vxor.u32 %v2300, 2147483648
    %v2311 = vsel %vm2309, %v2310, %v2301
    %v2312 = vsel %vm2305, %v2308, %v2311
    %v2313 = vsel %vm2302, nan, %v2312
    %v2314 = vand.u32 2147483647, %v324
    %vm2315 = vcmp.le.f32.partialorder %v2314, 0.7853982
    %vm2316 = vcmp.lt.s32.totalorder %v324, 0
    %v2317 = vand.u32 %v324, 2139095040
    %v2318 = vshrl.u32 %v2317, 23
    %v2319 = vsub.s32 %v2318, 127
    %v2320 = vand.u32 2147483647, %v324
    %v2321 = vand.u32 %v2320, 8388607
    %v2322 = vor.u32 %v2321, 8388608
    %v2323 = vsub.s32 0, %v2322
    %v2324 = vadd.s32 %v2319, 1
    %vm2325 = vcmp.gt.s32.totalorder %v2324, 0
    %v2326 = vsel %vm2325, %v2324, 0
    %v2327 = vshrl.u32 %v2326, 5
    %v2328 = vand.u32 %v2326, 31
    %v2329 = vsub.s32 32, %v2328
    %v2330 = vshrl.u32 683565275, %v2329
    %v2331 = vshll.u32 683565275, %v2328
    %v2332 = vshrl.u32 2475754826, %v2329
    %v2333 = vor.u32 %v2331, %v2332
    %v2334 = vshll.u32 2475754826, %v2328
    %v2335 = vshrl.u32 2131351028, %v2329
    %v2336 = vor.u32 %v2334, %v2335
    %v2337 = vshll.u32 2131351028, %v2328
    %v2338 = vshrl.u32 2102212464, %v2329
    %v2339 = vor.u32 %v2337, %v2338
    %v2340 = vshll.u32 2102212464, %v2328
    %v2341 = vshrl.u32 920167782, %v2329
    %v2342 = vor.u32 %v2340, %v2341
    %v2343 = vshll.u32 920167782, %v2328
    %v2344 = vshrl.u32 1326507024, %v2329
    %v2345 = vor.u32 %v2343, %v2344
    %vm2346 = vcmp.lt.s32.totalorder %v2327, 1
    %vm2347 = vcmp.lt.s32.totalorder %v2327, 2
    %vm2348 = vcmp.lt.s32.totalorder %v2327, 3
    %vm2349 = vcmp.lt.s32.totalorder %v2327, 4
    %v2350 = vsel %vm2346, %v2330, %v2333
    %v2351 = vsel %vm2349, %v2339, 2102212464
    %v2352 = vsel %vm2348, %v2336, %v2351
    %v2353 = vsel %vm2347, %v2350, %v2352
    %v2354 = vsel %vm2346, %v2333, %v2336
    %v2355 = vsel %vm2349, %v2342, 920167782
    %v2356 = vsel %vm2348, %v2339, %v2355
    %v2357 = vsel %vm2347, %v2354, %v2356
    %v2358 = vsel %vm2346, %v2336, %v2339
    %v2359 = vsel %vm2349, %v2345, 1326507024
    %v2360 = vsel %vm2348, %v2342, %v2359
    %v2361 = vsel %vm2347, %v2358, %v2360
    %v2362 = vshll.u32 %v2322, 8
    %v2363 = vmul.u32.u64.compose %v2362, %v2361
    %v2364 = vextract.low.u32 %v2363
    %v2365 = vextract.high.u32 %v2363
    %v2366 = vmul.u32.u64.compose %v2362, %v2357
    %v2367 = vextract.low.u32 %v2366
    %v2368 = vextract.high.u32 %v2366
    %v2369 = vmul.u32 %v2362, %v2353
    %v2370 = vadd.s32 %v2365, %v2367
    %vm2371 = vc.u32 %v2365, %v2367
    %v2372 = vadd.s32 %v2368, 1
    %v2373 = vsel %vm2371, %v2372, %v2368
    %v2374 = vadd.s32 %v2369, %v2373
    %v2375 = vadd.s32 %v2374, 536870912
    %v2376 = vshrl.u32 %v2375, 30
    %v2377 = vshll.u32 %v2376, 30
    %v2378 = vsub.s32 %v2374, %v2377
    %vm2379 = vcmp.lt.s32.totalorder %v2378, 0
    %v2380 = vsub.s32 0, %v2378
    %v2381 = vsel %vm2379, %v2380, %v2378
    %v2382 = vclz %v2381
    %v2383 = vsub.s32 %v2382, 2
    %vm2384 = vcmp.gt.s32.totalorder 0, %v2383
    %v2385 = vsel %vm2384, 0, %v2383
    %v2386 = vsub.s32 32, %v2385
    %v2387 = vshll.u32 %v2378, %v2385
    %v2388 = vshrl.u32 %v2370, %v2386
    %v2389 = vor.u32 %v2387, %v2388
    %v2390 = vsub.s32 4294967266, %v2385
    %v2391 = vadd.s32 %v2390, 127
    %v2392 = vshll.u32 %v2391, 23
    %v2393 = vor.u32 4788187, %v2392
    %v2394 = vand.u32 2147483647, %v2393
    %v2396 = vcvt.s32.f32 %v2389
    %v2397 = vmul.f32 %v2396, %v2394
    %v2398 = vxor.u32 %v2397, 2147483648
    %v2399 = vsel %vm2316, %v2398, %v2397
    %v2400 = vsub.s32 4, %v2376
    %v2401 = vsel %vm2316, %v2400, %v2376
    %v2402 = vsel %vm2315, %v324, %v2399
    %v2403 = vsel %vm2315, 0, %v2401
    %v2404 = vcosq.f32.pop %v2402
    %v2405 = vsinq.f32.pop %v2402
    %vm2406 = vweird.f32 %v324
    %v2407 = vadd.s32 %v2403, 3
    %v2408 = vand.u32 %v2407, 3
    %vm2409 = vcmp.lt.s32.totalorder %v2408, 2
    %vm2410 = vcmp.eq.s32.totalorder %v2408, 0
    %v2411 = vxor.u32 %v2405, 2147483648
    %v2412 = vsel %vm2410, %v2404, %v2411
    %vm2413 = vcmp.eq.s32.totalorder %v2408, 2
    %v2414 = vxor.u32 %v2404, 2147483648
    %v2415 = vsel %vm2413, %v2414, %v2405
    %v2416 = vsel %vm2409, %v2412, %v2415
    %v2417 = vsel %vm2406, nan, %v2416
    %v2418 = vand.u32 2147483647, %v325
    %vm2419 = vcmp.le.f32.partialorder %v2418, 0.7853982
    %vm2420 = vcmp.lt.s32.totalorder %v325, 0
    %v2421 = vand.u32 %v325, 2139095040
    %v2422 = vshrl.u32 %v2421, 23
    %v2423 = vsub.s32 %v2422, 127
    %v2424 = vand.u32 2147483647, %v325
    %v2425 = vand.u32 %v2424, 8388607
    %v2426 = vor.u32 %v2425, 8388608
    %v2427 = vsub.s32 0, %v2426
    %v2428 = vadd.s32 %v2423, 1
    %vm2429 = vcmp.gt.s32.totalorder %v2428, 0
    %v2430 = vsel %vm2429, %v2428, 0
    %v2431 = vshrl.u32 %v2430, 5
    %v2432 = vand.u32 %v2430, 31
    %v2433 = vsub.s32 32, %v2432
    %v2434 = vshrl.u32 683565275, %v2433
    %v2435 = vshll.u32 683565275, %v2432
    %v2436 = vshrl.u32 2475754826, %v2433
    %v2437 = vor.u32 %v2435, %v2436
    %v2438 = vshll.u32 2475754826, %v2432
    %v2439 = vshrl.u32 2131351028, %v2433
    %v2440 = vor.u32 %v2438, %v2439
    %v2441 = vshll.u32 2131351028, %v2432
    %v2442 = vshrl.u32 2102212464, %v2433
    %v2443 = vor.u32 %v2441, %v2442
    %v2444 = vshll.u32 2102212464, %v2432
    %v2445 = vshrl.u32 920167782, %v2433
    %v2446 = vor.u32 %v2444, %v2445
    %v2447 = vshll.u32 920167782, %v2432
    %v2448 = vshrl.u32 1326507024, %v2433
    %v2449 = vor.u32 %v2447, %v2448
    %vm2450 = vcmp.lt.s32.totalorder %v2431, 1
    %vm2451 = vcmp.lt.s32.totalorder %v2431, 2
    %vm2452 = vcmp.lt.s32.totalorder %v2431, 3
    %vm2453 = vcmp.lt.s32.totalorder %v2431, 4
    %v2454 = vsel %vm2450, %v2434, %v2437
    %v2455 = vsel %vm2453, %v2443, 2102212464
    %v2456 = vsel %vm2452, %v2440, %v2455
    %v2457 = vsel %vm2451, %v2454, %v2456
    %v2458 = vsel %vm2450, %v2437, %v2440
    %v2459 = vsel %vm2453, %v2446, 920167782
    %v2460 = vsel %vm2452, %v2443, %v2459
    %v2461 = vsel %vm2451, %v2458, %v2460
    %v2462 = vsel %vm2450, %v2440, %v2443
    %v2463 = vsel %vm2453, %v2449, 1326507024
    %v2464 = vsel %vm2452, %v2446, %v2463
    %v2465 = vsel %vm2451, %v2462, %v2464
    %v2466 = vshll.u32 %v2426, 8
    %v2467 = vmul.u32.u64.compose %v2466, %v2465
    %v2468 = vextract.low.u32 %v2467
    %v2469 = vextract.high.u32 %v2467
    %v2470 = vmul.u32.u64.compose %v2466, %v2461
    %v2471 = vextract.low.u32 %v2470
    %v2472 = vextract.high.u32 %v2470
    %v2473 = vmul.u32 %v2466, %v2457
    %v2474 = vadd.s32 %v2469, %v2471
    %vm2475 = vc.u32 %v2469, %v2471
    %v2476 = vadd.s32 %v2472, 1
    %v2477 = vsel %vm2475, %v2476, %v2472
    %v2478 = vadd.s32 %v2473, %v2477
    %v2479 = vadd.s32 %v2478, 536870912
    %v2480 = vshrl.u32 %v2479, 30
    %v2481 = vshll.u32 %v2480, 30
    %v2482 = vsub.s32 %v2478, %v2481
    %vm2483 = vcmp.lt.s32.totalorder %v2482, 0
    %v2484 = vsub.s32 0, %v2482
    %v2485 = vsel %vm2483, %v2484, %v2482
    %v2486 = vclz %v2485
    %v2487 = vsub.s32 %v2486, 2
    %vm2488 = vcmp.gt.s32.totalorder 0, %v2487
    %v2489 = vsel %vm2488, 0, %v2487
    %v2490 = vsub.s32 32, %v2489
    %v2491 = vshll.u32 %v2482, %v2489
    %v2492 = vshrl.u32 %v2474, %v2490
    %v2493 = vor.u32 %v2491, %v2492
    %v2494 = vsub.s32 4294967266, %v2489
    %v2495 = vadd.s32 %v2494, 127
    %v2496 = vshll.u32 %v2495, 23
    %v2497 = vor.u32 4788187, %v2496
    %v2498 = vand.u32 2147483647, %v2497
    %v2500 = vcvt.s32.f32 %v2493
    %v2501 = vmul.f32 %v2500, %v2498
    %v2502 = vxor.u32 %v2501, 2147483648
    %v2503 = vsel %vm2420, %v2502, %v2501
    %v2504 = vsub.s32 4, %v2480
    %v2505 = vsel %vm2420, %v2504, %v2480
    %v2506 = vsel %vm2419, %v325, %v2503
    %v2507 = vsel %vm2419, 0, %v2505
    %v2508 = vcosq.f32.pop %v2506
    %v2509 = vsinq.f32.pop %v2506
    %vm2510 = vweird.f32 %v325
    %v2511 = vadd.s32 %v2507, 3
    %v2512 = vand.u32 %v2511, 3
    %vm2513 = vcmp.lt.s32.totalorder %v2512, 2
    %vm2514 = vcmp.eq.s32.totalorder %v2512, 0
    %v2515 = vxor.u32 %v2509, 2147483648
    %v2516 = vsel %vm2514, %v2508, %v2515
    %vm2517 = vcmp.eq.s32.totalorder %v2512, 2
    %v2518 = vxor.u32 %v2508, 2147483648
    %v2519 = vsel %vm2517, %v2518, %v2509
    %v2520 = vsel %vm2513, %v2516, %v2519
    %v2521 = vsel %vm2510, nan, %v2520
    %v2522 = vand.u32 2147483647, %v326
    %vm2523 = vcmp.le.f32.partialorder %v2522, 0.7853982
    %vm2524 = vcmp.lt.s32.totalorder %v326, 0
    %v2525 = vand.u32 %v326, 2139095040
    %v2526 = vshrl.u32 %v2525, 23
    %v2527 = vsub.s32 %v2526, 127
    %v2528 = vand.u32 2147483647, %v326
    %v2529 = vand.u32 %v2528, 8388607
    %v2530 = vor.u32 %v2529, 8388608
    %v2531 = vsub.s32 0, %v2530
    %v2532 = vadd.s32 %v2527, 1
    %vm2533 = vcmp.gt.s32.totalorder %v2532, 0
    %v2534 = vsel %vm2533, %v2532, 0
    %v2535 = vshrl.u32 %v2534, 5
    %v2536 = vand.u32 %v2534, 31
    %v2537 = vsub.s32 32, %v2536
    %v2538 = vshrl.u32 683565275, %v2537
    %v2539 = vshll.u32 683565275, %v2536
    %v2540 = vshrl.u32 2475754826, %v2537
    %v2541 = vor.u32 %v2539, %v2540
    %v2542 = vshll.u32 2475754826, %v2536
    %v2543 = vshrl.u32 2131351028, %v2537
    %v2544 = vor.u32 %v2542, %v2543
    %v2545 = vshll.u32 2131351028, %v2536
    %v2546 = vshrl.u32 2102212464, %v2537
    %v2547 = vor.u32 %v2545, %v2546
    %v2548 = vshll.u32 2102212464, %v2536
    %v2549 = vshrl.u32 920167782, %v2537
    %v2550 = vor.u32 %v2548, %v2549
    %v2551 = vshll.u32 920167782, %v2536
    %v2552 = vshrl.u32 1326507024, %v2537
    %v2553 = vor.u32 %v2551, %v2552
    %vm2554 = vcmp.lt.s32.totalorder %v2535, 1
    %vm2555 = vcmp.lt.s32.totalorder %v2535, 2
    %vm2556 = vcmp.lt.s32.totalorder %v2535, 3
    %vm2557 = vcmp.lt.s32.totalorder %v2535, 4
    %v2558 = vsel %vm2554, %v2538, %v2541
    %v2559 = vsel %vm2557, %v2547, 2102212464
    %v2560 = vsel %vm2556, %v2544, %v2559
    %v2561 = vsel %vm2555, %v2558, %v2560
    %v2562 = vsel %vm2554, %v2541, %v2544
    %v2563 = vsel %vm2557, %v2550, 920167782
    %v2564 = vsel %vm2556, %v2547, %v2563
    %v2565 = vsel %vm2555, %v2562, %v2564
    %v2566 = vsel %vm2554, %v2544, %v2547
    %v2567 = vsel %vm2557, %v2553, 1326507024
    %v2568 = vsel %vm2556, %v2550, %v2567
    %v2569 = vsel %vm2555, %v2566, %v2568
    %v2570 = vshll.u32 %v2530, 8
    %v2571 = vmul.u32.u64.compose %v2570, %v2569
    %v2572 = vextract.low.u32 %v2571
    %v2573 = vextract.high.u32 %v2571
    %v2574 = vmul.u32.u64.compose %v2570, %v2565
    %v2575 = vextract.low.u32 %v2574
    %v2576 = vextract.high.u32 %v2574
    %v2577 = vmul.u32 %v2570, %v2561
    %v2578 = vadd.s32 %v2573, %v2575
    %vm2579 = vc.u32 %v2573, %v2575
    %v2580 = vadd.s32 %v2576, 1
    %v2581 = vsel %vm2579, %v2580, %v2576
    %v2582 = vadd.s32 %v2577, %v2581
    %v2583 = vadd.s32 %v2582, 536870912
    %v2584 = vshrl.u32 %v2583, 30
    %v2585 = vshll.u32 %v2584, 30
    %v2586 = vsub.s32 %v2582, %v2585
    %vm2587 = vcmp.lt.s32.totalorder %v2586, 0
    %v2588 = vsub.s32 0, %v2586
    %v2589 = vsel %vm2587, %v2588, %v2586
    %v2590 = vclz %v2589
    %v2591 = vsub.s32 %v2590, 2
    %vm2592 = vcmp.gt.s32.totalorder 0, %v2591
    %v2593 = vsel %vm2592, 0, %v2591
    %v2594 = vsub.s32 32, %v2593
    %v2595 = vshll.u32 %v2586, %v2593
    %v2596 = vshrl.u32 %v2578, %v2594
    %v2597 = vor.u32 %v2595, %v2596
    %v2598 = vsub.s32 4294967266, %v2593
    %v2599 = vadd.s32 %v2598, 127
    %v2600 = vshll.u32 %v2599, 23
    %v2601 = vor.u32 4788187, %v2600
    %v2602 = vand.u32 2147483647, %v2601
    %v2604 = vcvt.s32.f32 %v2597
    %v2605 = vmul.f32 %v2604, %v2602
    %v2606 = vxor.u32 %v2605, 2147483648
    %v2607 = vsel %vm2524, %v2606, %v2605
    %v2608 = vsub.s32 4, %v2584
    %v2609 = vsel %vm2524, %v2608, %v2584
    %v2610 = vsel %vm2523, %v326, %v2607
    %v2611 = vsel %vm2523, 0, %v2609
    %v2612 = vcosq.f32.pop %v2610
    %v2613 = vsinq.f32.pop %v2610
    %vm2614 = vweird.f32 %v326
    %v2615 = vadd.s32 %v2611, 3
    %v2616 = vand.u32 %v2615, 3
    %vm2617 = vcmp.lt.s32.totalorder %v2616, 2
    %vm2618 = vcmp.eq.s32.totalorder %v2616, 0
    %v2619 = vxor.u32 %v2613, 2147483648
    %v2620 = vsel %vm2618, %v2612, %v2619
    %vm2621 = vcmp.eq.s32.totalorder %v2616, 2
    %v2622 = vxor.u32 %v2612, 2147483648
    %v2623 = vsel %vm2621, %v2622, %v2613
    %v2624 = vsel %vm2617, %v2620, %v2623
    %v2625 = vsel %vm2614, nan, %v2624
    %v2626 = vand.u32 2147483647, %v327
    %vm2627 = vcmp.le.f32.partialorder %v2626, 0.7853982
    %vm2628 = vcmp.lt.s32.totalorder %v327, 0
    %v2629 = vand.u32 %v327, 2139095040
    %v2630 = vshrl.u32 %v2629, 23
    %v2631 = vsub.s32 %v2630, 127
    %v2632 = vand.u32 2147483647, %v327
    %v2633 = vand.u32 %v2632, 8388607
    %v2634 = vor.u32 %v2633, 8388608
    %v2635 = vsub.s32 0, %v2634
    %v2636 = vadd.s32 %v2631, 1
    %vm2637 = vcmp.gt.s32.totalorder %v2636, 0
    %v2638 = vsel %vm2637, %v2636, 0
    %v2639 = vshrl.u32 %v2638, 5
    %v2640 = vand.u32 %v2638, 31
    %v2641 = vsub.s32 32, %v2640
    %v2642 = vshrl.u32 683565275, %v2641
    %v2643 = vshll.u32 683565275, %v2640
    %v2644 = vshrl.u32 2475754826, %v2641
    %v2645 = vor.u32 %v2643, %v2644
    %v2646 = vshll.u32 2475754826, %v2640
    %v2647 = vshrl.u32 2131351028, %v2641
    %v2648 = vor.u32 %v2646, %v2647
    %v2649 = vshll.u32 2131351028, %v2640
    %v2650 = vshrl.u32 2102212464, %v2641
    %v2651 = vor.u32 %v2649, %v2650
    %v2652 = vshll.u32 2102212464, %v2640
    %v2653 = vshrl.u32 920167782, %v2641
    %v2654 = vor.u32 %v2652, %v2653
    %v2655 = vshll.u32 920167782, %v2640
    %v2656 = vshrl.u32 1326507024, %v2641
    %v2657 = vor.u32 %v2655, %v2656
    %vm2658 = vcmp.lt.s32.totalorder %v2639, 1
    %vm2659 = vcmp.lt.s32.totalorder %v2639, 2
    %vm2660 = vcmp.lt.s32.totalorder %v2639, 3
    %vm2661 = vcmp.lt.s32.totalorder %v2639, 4
    %v2662 = vsel %vm2658, %v2642, %v2645
    %v2663 = vsel %vm2661, %v2651, 2102212464
    %v2664 = vsel %vm2660, %v2648, %v2663
    %v2665 = vsel %vm2659, %v2662, %v2664
    %v2666 = vsel %vm2658, %v2645, %v2648
    %v2667 = vsel %vm2661, %v2654, 920167782
    %v2668 = vsel %vm2660, %v2651, %v2667
    %v2669 = vsel %vm2659, %v2666, %v2668
    %v2670 = vsel %vm2658, %v2648, %v2651
    %v2671 = vsel %vm2661, %v2657, 1326507024
    %v2672 = vsel %vm2660, %v2654, %v2671
    %v2673 = vsel %vm2659, %v2670, %v2672
    %v2674 = vshll.u32 %v2634, 8
    %v2675 = vmul.u32.u64.compose %v2674, %v2673
    %v2676 = vextract.low.u32 %v2675
    %v2677 = vextract.high.u32 %v2675
    %v2678 = vmul.u32.u64.compose %v2674, %v2669
    %v2679 = vextract.low.u32 %v2678
    %v2680 = vextract.high.u32 %v2678
    %v2681 = vmul.u32 %v2674, %v2665
    %v2682 = vadd.s32 %v2677, %v2679
    %vm2683 = vc.u32 %v2677, %v2679
    %v2684 = vadd.s32 %v2680, 1
    %v2685 = vsel %vm2683, %v2684, %v2680
    %v2686 = vadd.s32 %v2681, %v2685
    %v2687 = vadd.s32 %v2686, 536870912
    %v2688 = vshrl.u32 %v2687, 30
    %v2689 = vshll.u32 %v2688, 30
    %v2690 = vsub.s32 %v2686, %v2689
    %vm2691 = vcmp.lt.s32.totalorder %v2690, 0
    %v2692 = vsub.s32 0, %v2690
    %v2693 = vsel %vm2691, %v2692, %v2690
    %v2694 = vclz %v2693
    %v2695 = vsub.s32 %v2694, 2
    %vm2696 = vcmp.gt.s32.totalorder 0, %v2695
    %v2697 = vsel %vm2696, 0, %v2695
    %v2698 = vsub.s32 32, %v2697
    %v2699 = vshll.u32 %v2690, %v2697
    %v2700 = vshrl.u32 %v2682, %v2698
    %v2701 = vor.u32 %v2699, %v2700
    %v2702 = vsub.s32 4294967266, %v2697
    %v2703 = vadd.s32 %v2702, 127
    %v2704 = vshll.u32 %v2703, 23
    %v2705 = vor.u32 4788187, %v2704
    %v2706 = vand.u32 2147483647, %v2705
    %v2708 = vcvt.s32.f32 %v2701
    %v2709 = vmul.f32 %v2708, %v2706
    %v2710 = vxor.u32 %v2709, 2147483648
    %v2711 = vsel %vm2628, %v2710, %v2709
    %v2712 = vsub.s32 4, %v2688
    %v2713 = vsel %vm2628, %v2712, %v2688
    %v2714 = vsel %vm2627, %v327, %v2711
    %v2715 = vsel %vm2627, 0, %v2713
    %v2716 = vcosq.f32.pop %v2714
    %v2717 = vsinq.f32.pop %v2714
    %vm2718 = vweird.f32 %v327
    %v2719 = vadd.s32 %v2715, 3
    %v2720 = vand.u32 %v2719, 3
    %vm2721 = vcmp.lt.s32.totalorder %v2720, 2
    %vm2722 = vcmp.eq.s32.totalorder %v2720, 0
    %v2723 = vxor.u32 %v2717, 2147483648
    %v2724 = vsel %vm2722, %v2716, %v2723
    %vm2725 = vcmp.eq.s32.totalorder %v2720, 2
    %v2726 = vxor.u32 %v2716, 2147483648
    %v2727 = vsel %vm2725, %v2726, %v2717
    %v2728 = vsel %vm2721, %v2724, %v2727
    %v2729 = vsel %vm2718, nan, %v2728
    %v2730 = vand.u32 2147483647, %v328
    %vm2731 = vcmp.le.f32.partialorder %v2730, 0.7853982
    %vm2732 = vcmp.lt.s32.totalorder %v328, 0
    %v2733 = vand.u32 %v328, 2139095040
    %v2734 = vshrl.u32 %v2733, 23
    %v2735 = vsub.s32 %v2734, 127
    %v2736 = vand.u32 2147483647, %v328
    %v2737 = vand.u32 %v2736, 8388607
    %v2738 = vor.u32 %v2737, 8388608
    %v2739 = vsub.s32 0, %v2738
    %v2740 = vadd.s32 %v2735, 1
    %vm2741 = vcmp.gt.s32.totalorder %v2740, 0
    %v2742 = vsel %vm2741, %v2740, 0
    %v2743 = vshrl.u32 %v2742, 5
    %v2744 = vand.u32 %v2742, 31
    %v2745 = vsub.s32 32, %v2744
    %v2746 = vshrl.u32 683565275, %v2745
    %v2747 = vshll.u32 683565275, %v2744
    %v2748 = vshrl.u32 2475754826, %v2745
    %v2749 = vor.u32 %v2747, %v2748
    %v2750 = vshll.u32 2475754826, %v2744
    %v2751 = vshrl.u32 2131351028, %v2745
    %v2752 = vor.u32 %v2750, %v2751
    %v2753 = vshll.u32 2131351028, %v2744
    %v2754 = vshrl.u32 2102212464, %v2745
    %v2755 = vor.u32 %v2753, %v2754
    %v2756 = vshll.u32 2102212464, %v2744
    %v2757 = vshrl.u32 920167782, %v2745
    %v2758 = vor.u32 %v2756, %v2757
    %v2759 = vshll.u32 920167782, %v2744
    %v2760 = vshrl.u32 1326507024, %v2745
    %v2761 = vor.u32 %v2759, %v2760
    %vm2762 = vcmp.lt.s32.totalorder %v2743, 1
    %vm2763 = vcmp.lt.s32.totalorder %v2743, 2
    %vm2764 = vcmp.lt.s32.totalorder %v2743, 3
    %vm2765 = vcmp.lt.s32.totalorder %v2743, 4
    %v2766 = vsel %vm2762, %v2746, %v2749
    %v2767 = vsel %vm2765, %v2755, 2102212464
    %v2768 = vsel %vm2764, %v2752, %v2767
    %v2769 = vsel %vm2763, %v2766, %v2768
    %v2770 = vsel %vm2762, %v2749, %v2752
    %v2771 = vsel %vm2765, %v2758, 920167782
    %v2772 = vsel %vm2764, %v2755, %v2771
    %v2773 = vsel %vm2763, %v2770, %v2772
    %v2774 = vsel %vm2762, %v2752, %v2755
    %v2775 = vsel %vm2765, %v2761, 1326507024
    %v2776 = vsel %vm2764, %v2758, %v2775
    %v2777 = vsel %vm2763, %v2774, %v2776
    %v2778 = vshll.u32 %v2738, 8
    %v2779 = vmul.u32.u64.compose %v2778, %v2777
    %v2780 = vextract.low.u32 %v2779
    %v2781 = vextract.high.u32 %v2779
    %v2782 = vmul.u32.u64.compose %v2778, %v2773
    %v2783 = vextract.low.u32 %v2782
    %v2784 = vextract.high.u32 %v2782
    %v2785 = vmul.u32 %v2778, %v2769
    %v2786 = vadd.s32 %v2781, %v2783
    %vm2787 = vc.u32 %v2781, %v2783
    %v2788 = vadd.s32 %v2784, 1
    %v2789 = vsel %vm2787, %v2788, %v2784
    %v2790 = vadd.s32 %v2785, %v2789
    %v2791 = vadd.s32 %v2790, 536870912
    %v2792 = vshrl.u32 %v2791, 30
    %v2793 = vshll.u32 %v2792, 30
    %v2794 = vsub.s32 %v2790, %v2793
    %vm2795 = vcmp.lt.s32.totalorder %v2794, 0
    %v2796 = vsub.s32 0, %v2794
    %v2797 = vsel %vm2795, %v2796, %v2794
    %v2798 = vclz %v2797
    %v2799 = vsub.s32 %v2798, 2
    %vm2800 = vcmp.gt.s32.totalorder 0, %v2799
    %v2801 = vsel %vm2800, 0, %v2799
    %v2802 = vsub.s32 32, %v2801
    %v2803 = vshll.u32 %v2794, %v2801
    %v2804 = vshrl.u32 %v2786, %v2802
    %v2805 = vor.u32 %v2803, %v2804
    %v2806 = vsub.s32 4294967266, %v2801
    %v2807 = vadd.s32 %v2806, 127
    %v2808 = vshll.u32 %v2807, 23
    %v2809 = vor.u32 4788187, %v2808
    %v2810 = vand.u32 2147483647, %v2809
    %v2812 = vcvt.s32.f32 %v2805
    %v2813 = vmul.f32 %v2812, %v2810
    %v2814 = vxor.u32 %v2813, 2147483648
    %v2815 = vsel %vm2732, %v2814, %v2813
    %v2816 = vsub.s32 4, %v2792
    %v2817 = vsel %vm2732, %v2816, %v2792
    %v2818 = vsel %vm2731, %v328, %v2815
    %v2819 = vsel %vm2731, 0, %v2817
    %v2820 = vcosq.f32.pop %v2818
    %v2821 = vsinq.f32.pop %v2818
    %vm2822 = vweird.f32 %v328
    %v2823 = vadd.s32 %v2819, 3
    %v2824 = vand.u32 %v2823, 3
    %vm2825 = vcmp.lt.s32.totalorder %v2824, 2
    %vm2826 = vcmp.eq.s32.totalorder %v2824, 0
    %v2827 = vxor.u32 %v2821, 2147483648
    %v2828 = vsel %vm2826, %v2820, %v2827
    %vm2829 = vcmp.eq.s32.totalorder %v2824, 2
    %v2830 = vxor.u32 %v2820, 2147483648
    %v2831 = vsel %vm2829, %v2830, %v2821
    %v2832 = vsel %vm2825, %v2828, %v2831
    %v2833 = vsel %vm2822, nan, %v2832
    %v2834 = vand.u32 2147483647, %v329
    %vm2835 = vcmp.le.f32.partialorder %v2834, 0.7853982
    %vm2836 = vcmp.lt.s32.totalorder %v329, 0
    %v2837 = vand.u32 %v329, 2139095040
    %v2838 = vshrl.u32 %v2837, 23
    %v2839 = vsub.s32 %v2838, 127
    %v2840 = vand.u32 2147483647, %v329
    %v2841 = vand.u32 %v2840, 8388607
    %v2842 = vor.u32 %v2841, 8388608
    %v2843 = vsub.s32 0, %v2842
    %v2844 = vadd.s32 %v2839, 1
    %vm2845 = vcmp.gt.s32.totalorder %v2844, 0
    %v2846 = vsel %vm2845, %v2844, 0
    %v2847 = vshrl.u32 %v2846, 5
    %v2848 = vand.u32 %v2846, 31
    %v2849 = vsub.s32 32, %v2848
    %v2850 = vshrl.u32 683565275, %v2849
    %v2851 = vshll.u32 683565275, %v2848
    %v2852 = vshrl.u32 2475754826, %v2849
    %v2853 = vor.u32 %v2851, %v2852
    %v2854 = vshll.u32 2475754826, %v2848
    %v2855 = vshrl.u32 2131351028, %v2849
    %v2856 = vor.u32 %v2854, %v2855
    %v2857 = vshll.u32 2131351028, %v2848
    %v2858 = vshrl.u32 2102212464, %v2849
    %v2859 = vor.u32 %v2857, %v2858
    %v2860 = vshll.u32 2102212464, %v2848
    %v2861 = vshrl.u32 920167782, %v2849
    %v2862 = vor.u32 %v2860, %v2861
    %v2863 = vshll.u32 920167782, %v2848
    %v2864 = vshrl.u32 1326507024, %v2849
    %v2865 = vor.u32 %v2863, %v2864
    %vm2866 = vcmp.lt.s32.totalorder %v2847, 1
    %vm2867 = vcmp.lt.s32.totalorder %v2847, 2
    %vm2868 = vcmp.lt.s32.totalorder %v2847, 3
    %vm2869 = vcmp.lt.s32.totalorder %v2847, 4
    %v2870 = vsel %vm2866, %v2850, %v2853
    %v2871 = vsel %vm2869, %v2859, 2102212464
    %v2872 = vsel %vm2868, %v2856, %v2871
    %v2873 = vsel %vm2867, %v2870, %v2872
    %v2874 = vsel %vm2866, %v2853, %v2856
    %v2875 = vsel %vm2869, %v2862, 920167782
    %v2876 = vsel %vm2868, %v2859, %v2875
    %v2877 = vsel %vm2867, %v2874, %v2876
    %v2878 = vsel %vm2866, %v2856, %v2859
    %v2879 = vsel %vm2869, %v2865, 1326507024
    %v2880 = vsel %vm2868, %v2862, %v2879
    %v2881 = vsel %vm2867, %v2878, %v2880
    %v2882 = vshll.u32 %v2842, 8
    %v2883 = vmul.u32.u64.compose %v2882, %v2881
    %v2884 = vextract.low.u32 %v2883
    %v2885 = vextract.high.u32 %v2883
    %v2886 = vmul.u32.u64.compose %v2882, %v2877
    %v2887 = vextract.low.u32 %v2886
    %v2888 = vextract.high.u32 %v2886
    %v2889 = vmul.u32 %v2882, %v2873
    %v2890 = vadd.s32 %v2885, %v2887
    %vm2891 = vc.u32 %v2885, %v2887
    %v2892 = vadd.s32 %v2888, 1
    %v2893 = vsel %vm2891, %v2892, %v2888
    %v2894 = vadd.s32 %v2889, %v2893
    %v2895 = vadd.s32 %v2894, 536870912
    %v2896 = vshrl.u32 %v2895, 30
    %v2897 = vshll.u32 %v2896, 30
    %v2898 = vsub.s32 %v2894, %v2897
    %vm2899 = vcmp.lt.s32.totalorder %v2898, 0
    %v2900 = vsub.s32 0, %v2898
    %v2901 = vsel %vm2899, %v2900, %v2898
    %v2902 = vclz %v2901
    %v2903 = vsub.s32 %v2902, 2
    %vm2904 = vcmp.gt.s32.totalorder 0, %v2903
    %v2905 = vsel %vm2904, 0, %v2903
    %v2906 = vsub.s32 32, %v2905
    %v2907 = vshll.u32 %v2898, %v2905
    %v2908 = vshrl.u32 %v2890, %v2906
    %v2909 = vor.u32 %v2907, %v2908
    %v2910 = vsub.s32 4294967266, %v2905
    %v2911 = vadd.s32 %v2910, 127
    %v2912 = vshll.u32 %v2911, 23
    %v2913 = vor.u32 4788187, %v2912
    %v2914 = vand.u32 2147483647, %v2913
    %v2916 = vcvt.s32.f32 %v2909
    %v2917 = vmul.f32 %v2916, %v2914
    %v2918 = vxor.u32 %v2917, 2147483648
    %v2919 = vsel %vm2836, %v2918, %v2917
    %v2920 = vsub.s32 4, %v2896
    %v2921 = vsel %vm2836, %v2920, %v2896
    %v2922 = vsel %vm2835, %v329, %v2919
    %v2923 = vsel %vm2835, 0, %v2921
    %v2924 = vcosq.f32.pop %v2922
    %v2925 = vsinq.f32.pop %v2922
    %vm2926 = vweird.f32 %v329
    %v2927 = vadd.s32 %v2923, 3
    %v2928 = vand.u32 %v2927, 3
    %vm2929 = vcmp.lt.s32.totalorder %v2928, 2
    %vm2930 = vcmp.eq.s32.totalorder %v2928, 0
    %v2931 = vxor.u32 %v2925, 2147483648
    %v2932 = vsel %vm2930, %v2924, %v2931
    %vm2933 = vcmp.eq.s32.totalorder %v2928, 2
    %v2934 = vxor.u32 %v2924, 2147483648
    %v2935 = vsel %vm2933, %v2934, %v2925
    %v2936 = vsel %vm2929, %v2932, %v2935
    %v2937 = vsel %vm2926, nan, %v2936
    %v2938 = vand.u32 2147483647, %v330
    %vm2939 = vcmp.le.f32.partialorder %v2938, 0.7853982
    %vm2940 = vcmp.lt.s32.totalorder %v330, 0
    %v2941 = vand.u32 %v330, 2139095040
    %v2942 = vshrl.u32 %v2941, 23
    %v2943 = vsub.s32 %v2942, 127
    %v2944 = vand.u32 2147483647, %v330
    %v2945 = vand.u32 %v2944, 8388607
    %v2946 = vor.u32 %v2945, 8388608
    %v2947 = vsub.s32 0, %v2946
    %v2948 = vadd.s32 %v2943, 1
    %vm2949 = vcmp.gt.s32.totalorder %v2948, 0
    %v2950 = vsel %vm2949, %v2948, 0
    %v2951 = vshrl.u32 %v2950, 5
    %v2952 = vand.u32 %v2950, 31
    %v2953 = vsub.s32 32, %v2952
    %v2954 = vshrl.u32 683565275, %v2953
    %v2955 = vshll.u32 683565275, %v2952
    %v2956 = vshrl.u32 2475754826, %v2953
    %v2957 = vor.u32 %v2955, %v2956
    %v2958 = vshll.u32 2475754826, %v2952
    %v2959 = vshrl.u32 2131351028, %v2953
    %v2960 = vor.u32 %v2958, %v2959
    %v2961 = vshll.u32 2131351028, %v2952
    %v2962 = vshrl.u32 2102212464, %v2953
    %v2963 = vor.u32 %v2961, %v2962
    %v2964 = vshll.u32 2102212464, %v2952
    %v2965 = vshrl.u32 920167782, %v2953
    %v2966 = vor.u32 %v2964, %v2965
    %v2967 = vshll.u32 920167782, %v2952
    %v2968 = vshrl.u32 1326507024, %v2953
    %v2969 = vor.u32 %v2967, %v2968
    %vm2970 = vcmp.lt.s32.totalorder %v2951, 1
    %vm2971 = vcmp.lt.s32.totalorder %v2951, 2
    %vm2972 = vcmp.lt.s32.totalorder %v2951, 3
    %vm2973 = vcmp.lt.s32.totalorder %v2951, 4
    %v2974 = vsel %vm2970, %v2954, %v2957
    %v2975 = vsel %vm2973, %v2963, 2102212464
    %v2976 = vsel %vm2972, %v2960, %v2975
    %v2977 = vsel %vm2971, %v2974, %v2976
    %v2978 = vsel %vm2970, %v2957, %v2960
    %v2979 = vsel %vm2973, %v2966, 920167782
    %v2980 = vsel %vm2972, %v2963, %v2979
    %v2981 = vsel %vm2971, %v2978, %v2980
    %v2982 = vsel %vm2970, %v2960, %v2963
    %v2983 = vsel %vm2973, %v2969, 1326507024
    %v2984 = vsel %vm2972, %v2966, %v2983
    %v2985 = vsel %vm2971, %v2982, %v2984
    %v2986 = vshll.u32 %v2946, 8
    %v2987 = vmul.u32.u64.compose %v2986, %v2985
    %v2988 = vextract.low.u32 %v2987
    %v2989 = vextract.high.u32 %v2987
    %v2990 = vmul.u32.u64.compose %v2986, %v2981
    %v2991 = vextract.low.u32 %v2990
    %v2992 = vextract.high.u32 %v2990
    %v2993 = vmul.u32 %v2986, %v2977
    %v2994 = vadd.s32 %v2989, %v2991
    %vm2995 = vc.u32 %v2989, %v2991
    %v2996 = vadd.s32 %v2992, 1
    %v2997 = vsel %vm2995, %v2996, %v2992
    %v2998 = vadd.s32 %v2993, %v2997
    %v2999 = vadd.s32 %v2998, 536870912
    %v3000 = vshrl.u32 %v2999, 30
    %v3001 = vshll.u32 %v3000, 30
    %v3002 = vsub.s32 %v2998, %v3001
    %vm3003 = vcmp.lt.s32.totalorder %v3002, 0
    %v3004 = vsub.s32 0, %v3002
    %v3005 = vsel %vm3003, %v3004, %v3002
    %v3006 = vclz %v3005
    %v3007 = vsub.s32 %v3006, 2
    %vm3008 = vcmp.gt.s32.totalorder 0, %v3007
    %v3009 = vsel %vm3008, 0, %v3007
    %v3010 = vsub.s32 32, %v3009
    %v3011 = vshll.u32 %v3002, %v3009
    %v3012 = vshrl.u32 %v2994, %v3010
    %v3013 = vor.u32 %v3011, %v3012
    %v3014 = vsub.s32 4294967266, %v3009
    %v3015 = vadd.s32 %v3014, 127
    %v3016 = vshll.u32 %v3015, 23
    %v3017 = vor.u32 4788187, %v3016
    %v3018 = vand.u32 2147483647, %v3017
    %v3020 = vcvt.s32.f32 %v3013
    %v3021 = vmul.f32 %v3020, %v3018
    %v3022 = vxor.u32 %v3021, 2147483648
    %v3023 = vsel %vm2940, %v3022, %v3021
    %v3024 = vsub.s32 4, %v3000
    %v3025 = vsel %vm2940, %v3024, %v3000
    %v3026 = vsel %vm2939, %v330, %v3023
    %v3027 = vsel %vm2939, 0, %v3025
    %v3028 = vcosq.f32.pop %v3026
    %v3029 = vsinq.f32.pop %v3026
    %vm3030 = vweird.f32 %v330
    %v3031 = vadd.s32 %v3027, 3
    %v3032 = vand.u32 %v3031, 3
    %vm3033 = vcmp.lt.s32.totalorder %v3032, 2
    %vm3034 = vcmp.eq.s32.totalorder %v3032, 0
    %v3035 = vxor.u32 %v3029, 2147483648
    %v3036 = vsel %vm3034, %v3028, %v3035
    %vm3037 = vcmp.eq.s32.totalorder %v3032, 2
    %v3038 = vxor.u32 %v3028, 2147483648
    %v3039 = vsel %vm3037, %v3038, %v3029
    %v3040 = vsel %vm3033, %v3036, %v3039
    %v3041 = vsel %vm3030, nan, %v3040
    %v3042 = vand.u32 2147483647, %v331
    %vm3043 = vcmp.le.f32.partialorder %v3042, 0.7853982
    %vm3044 = vcmp.lt.s32.totalorder %v331, 0
    %v3045 = vand.u32 %v331, 2139095040
    %v3046 = vshrl.u32 %v3045, 23
    %v3047 = vsub.s32 %v3046, 127
    %v3048 = vand.u32 2147483647, %v331
    %v3049 = vand.u32 %v3048, 8388607
    %v3050 = vor.u32 %v3049, 8388608
    %v3051 = vsub.s32 0, %v3050
    %v3052 = vadd.s32 %v3047, 1
    %vm3053 = vcmp.gt.s32.totalorder %v3052, 0
    %v3054 = vsel %vm3053, %v3052, 0
    %v3055 = vshrl.u32 %v3054, 5
    %v3056 = vand.u32 %v3054, 31
    %v3057 = vsub.s32 32, %v3056
    %v3058 = vshrl.u32 683565275, %v3057
    %v3059 = vshll.u32 683565275, %v3056
    %v3060 = vshrl.u32 2475754826, %v3057
    %v3061 = vor.u32 %v3059, %v3060
    %v3062 = vshll.u32 2475754826, %v3056
    %v3063 = vshrl.u32 2131351028, %v3057
    %v3064 = vor.u32 %v3062, %v3063
    %v3065 = vshll.u32 2131351028, %v3056
    %v3066 = vshrl.u32 2102212464, %v3057
    %v3067 = vor.u32 %v3065, %v3066
    %v3068 = vshll.u32 2102212464, %v3056
    %v3069 = vshrl.u32 920167782, %v3057
    %v3070 = vor.u32 %v3068, %v3069
    %v3071 = vshll.u32 920167782, %v3056
    %v3072 = vshrl.u32 1326507024, %v3057
    %v3073 = vor.u32 %v3071, %v3072
    %vm3074 = vcmp.lt.s32.totalorder %v3055, 1
    %vm3075 = vcmp.lt.s32.totalorder %v3055, 2
    %vm3076 = vcmp.lt.s32.totalorder %v3055, 3
    %vm3077 = vcmp.lt.s32.totalorder %v3055, 4
    %v3078 = vsel %vm3074, %v3058, %v3061
    %v3079 = vsel %vm3077, %v3067, 2102212464
    %v3080 = vsel %vm3076, %v3064, %v3079
    %v3081 = vsel %vm3075, %v3078, %v3080
    %v3082 = vsel %vm3074, %v3061, %v3064
    %v3083 = vsel %vm3077, %v3070, 920167782
    %v3084 = vsel %vm3076, %v3067, %v3083
    %v3085 = vsel %vm3075, %v3082, %v3084
    %v3086 = vsel %vm3074, %v3064, %v3067
    %v3087 = vsel %vm3077, %v3073, 1326507024
    %v3088 = vsel %vm3076, %v3070, %v3087
    %v3089 = vsel %vm3075, %v3086, %v3088
    %v3090 = vshll.u32 %v3050, 8
    %v3091 = vmul.u32.u64.compose %v3090, %v3089
    %v3092 = vextract.low.u32 %v3091
    %v3093 = vextract.high.u32 %v3091
    %v3094 = vmul.u32.u64.compose %v3090, %v3085
    %v3095 = vextract.low.u32 %v3094
    %v3096 = vextract.high.u32 %v3094
    %v3097 = vmul.u32 %v3090, %v3081
    %v3098 = vadd.s32 %v3093, %v3095
    %vm3099 = vc.u32 %v3093, %v3095
    %v3100 = vadd.s32 %v3096, 1
    %v3101 = vsel %vm3099, %v3100, %v3096
    %v3102 = vadd.s32 %v3097, %v3101
    %v3103 = vadd.s32 %v3102, 536870912
    %v3104 = vshrl.u32 %v3103, 30
    %v3105 = vshll.u32 %v3104, 30
    %v3106 = vsub.s32 %v3102, %v3105
    %vm3107 = vcmp.lt.s32.totalorder %v3106, 0
    %v3108 = vsub.s32 0, %v3106
    %v3109 = vsel %vm3107, %v3108, %v3106
    %v3110 = vclz %v3109
    %v3111 = vsub.s32 %v3110, 2
    %vm3112 = vcmp.gt.s32.totalorder 0, %v3111
    %v3113 = vsel %vm3112, 0, %v3111
    %v3114 = vsub.s32 32, %v3113
    %v3115 = vshll.u32 %v3106, %v3113
    %v3116 = vshrl.u32 %v3098, %v3114
    %v3117 = vor.u32 %v3115, %v3116
    %v3118 = vsub.s32 4294967266, %v3113
    %v3119 = vadd.s32 %v3118, 127
    %v3120 = vshll.u32 %v3119, 23
    %v3121 = vor.u32 4788187, %v3120
    %v3122 = vand.u32 2147483647, %v3121
    %v3124 = vcvt.s32.f32 %v3117
    %v3125 = vmul.f32 %v3124, %v3122
    %v3126 = vxor.u32 %v3125, 2147483648
    %v3127 = vsel %vm3044, %v3126, %v3125
    %v3128 = vsub.s32 4, %v3104
    %v3129 = vsel %vm3044, %v3128, %v3104
    %v3130 = vsel %vm3043, %v331, %v3127
    %v3131 = vsel %vm3043, 0, %v3129
    %v3132 = vcosq.f32.pop %v3130
    %v3133 = vsinq.f32.pop %v3130
    %vm3134 = vweird.f32 %v331
    %v3135 = vadd.s32 %v3131, 3
    %v3136 = vand.u32 %v3135, 3
    %vm3137 = vcmp.lt.s32.totalorder %v3136, 2
    %vm3138 = vcmp.eq.s32.totalorder %v3136, 0
    %v3139 = vxor.u32 %v3133, 2147483648
    %v3140 = vsel %vm3138, %v3132, %v3139
    %vm3141 = vcmp.eq.s32.totalorder %v3136, 2
    %v3142 = vxor.u32 %v3132, 2147483648
    %v3143 = vsel %vm3141, %v3142, %v3133
    %v3144 = vsel %vm3137, %v3140, %v3143
    %v3145 = vsel %vm3134, nan, %v3144
    %v3146 = vand.u32 2147483647, %v332
    %vm3147 = vcmp.le.f32.partialorder %v3146, 0.7853982
    %vm3148 = vcmp.lt.s32.totalorder %v332, 0
    %v3149 = vand.u32 %v332, 2139095040
    %v3150 = vshrl.u32 %v3149, 23
    %v3151 = vsub.s32 %v3150, 127
    %v3152 = vand.u32 2147483647, %v332
    %v3153 = vand.u32 %v3152, 8388607
    %v3154 = vor.u32 %v3153, 8388608
    %v3155 = vsub.s32 0, %v3154
    %v3156 = vadd.s32 %v3151, 1
    %vm3157 = vcmp.gt.s32.totalorder %v3156, 0
    %v3158 = vsel %vm3157, %v3156, 0
    %v3159 = vshrl.u32 %v3158, 5
    %v3160 = vand.u32 %v3158, 31
    %v3161 = vsub.s32 32, %v3160
    %v3162 = vshrl.u32 683565275, %v3161
    %v3163 = vshll.u32 683565275, %v3160
    %v3164 = vshrl.u32 2475754826, %v3161
    %v3165 = vor.u32 %v3163, %v3164
    %v3166 = vshll.u32 2475754826, %v3160
    %v3167 = vshrl.u32 2131351028, %v3161
    %v3168 = vor.u32 %v3166, %v3167
    %v3169 = vshll.u32 2131351028, %v3160
    %v3170 = vshrl.u32 2102212464, %v3161
    %v3171 = vor.u32 %v3169, %v3170
    %v3172 = vshll.u32 2102212464, %v3160
    %v3173 = vshrl.u32 920167782, %v3161
    %v3174 = vor.u32 %v3172, %v3173
    %v3175 = vshll.u32 920167782, %v3160
    %v3176 = vshrl.u32 1326507024, %v3161
    %v3177 = vor.u32 %v3175, %v3176
    %vm3178 = vcmp.lt.s32.totalorder %v3159, 1
    %vm3179 = vcmp.lt.s32.totalorder %v3159, 2
    %vm3180 = vcmp.lt.s32.totalorder %v3159, 3
    %vm3181 = vcmp.lt.s32.totalorder %v3159, 4
    %v3182 = vsel %vm3178, %v3162, %v3165
    %v3183 = vsel %vm3181, %v3171, 2102212464
    %v3184 = vsel %vm3180, %v3168, %v3183
    %v3185 = vsel %vm3179, %v3182, %v3184
    %v3186 = vsel %vm3178, %v3165, %v3168
    %v3187 = vsel %vm3181, %v3174, 920167782
    %v3188 = vsel %vm3180, %v3171, %v3187
    %v3189 = vsel %vm3179, %v3186, %v3188
    %v3190 = vsel %vm3178, %v3168, %v3171
    %v3191 = vsel %vm3181, %v3177, 1326507024
    %v3192 = vsel %vm3180, %v3174, %v3191
    %v3193 = vsel %vm3179, %v3190, %v3192
    %v3194 = vshll.u32 %v3154, 8
    %v3195 = vmul.u32.u64.compose %v3194, %v3193
    %v3196 = vextract.low.u32 %v3195
    %v3197 = vextract.high.u32 %v3195
    %v3198 = vmul.u32.u64.compose %v3194, %v3189
    %v3199 = vextract.low.u32 %v3198
    %v3200 = vextract.high.u32 %v3198
    %v3201 = vmul.u32 %v3194, %v3185
    %v3202 = vadd.s32 %v3197, %v3199
    %vm3203 = vc.u32 %v3197, %v3199
    %v3204 = vadd.s32 %v3200, 1
    %v3205 = vsel %vm3203, %v3204, %v3200
    %v3206 = vadd.s32 %v3201, %v3205
    %v3207 = vadd.s32 %v3206, 536870912
    %v3208 = vshrl.u32 %v3207, 30
    %v3209 = vshll.u32 %v3208, 30
    %v3210 = vsub.s32 %v3206, %v3209
    %vm3211 = vcmp.lt.s32.totalorder %v3210, 0
    %v3212 = vsub.s32 0, %v3210
    %v3213 = vsel %vm3211, %v3212, %v3210
    %v3214 = vclz %v3213
    %v3215 = vsub.s32 %v3214, 2
    %vm3216 = vcmp.gt.s32.totalorder 0, %v3215
    %v3217 = vsel %vm3216, 0, %v3215
    %v3218 = vsub.s32 32, %v3217
    %v3219 = vshll.u32 %v3210, %v3217
    %v3220 = vshrl.u32 %v3202, %v3218
    %v3221 = vor.u32 %v3219, %v3220
    %v3222 = vsub.s32 4294967266, %v3217
    %v3223 = vadd.s32 %v3222, 127
    %v3224 = vshll.u32 %v3223, 23
    %v3225 = vor.u32 4788187, %v3224
    %v3226 = vand.u32 2147483647, %v3225
    %v3228 = vcvt.s32.f32 %v3221
    %v3229 = vmul.f32 %v3228, %v3226
    %v3230 = vxor.u32 %v3229, 2147483648
    %v3231 = vsel %vm3148, %v3230, %v3229
    %v3232 = vsub.s32 4, %v3208
    %v3233 = vsel %vm3148, %v3232, %v3208
    %v3234 = vsel %vm3147, %v332, %v3231
    %v3235 = vsel %vm3147, 0, %v3233
    %v3236 = vcosq.f32.pop %v3234
    %v3237 = vsinq.f32.pop %v3234
    %vm3238 = vweird.f32 %v332
    %v3239 = vadd.s32 %v3235, 3
    %v3240 = vand.u32 %v3239, 3
    %vm3241 = vcmp.lt.s32.totalorder %v3240, 2
    %vm3242 = vcmp.eq.s32.totalorder %v3240, 0
    %v3243 = vxor.u32 %v3237, 2147483648
    %v3244 = vsel %vm3242, %v3236, %v3243
    %vm3245 = vcmp.eq.s32.totalorder %v3240, 2
    %v3246 = vxor.u32 %v3236, 2147483648
    %v3247 = vsel %vm3245, %v3246, %v3237
    %v3248 = vsel %vm3241, %v3244, %v3247
    %v3249 = vsel %vm3238, nan, %v3248
    %v3250 = vand.u32 2147483647, %v333
    %vm3251 = vcmp.le.f32.partialorder %v3250, 0.7853982
    %vm3252 = vcmp.lt.s32.totalorder %v333, 0
    %v3253 = vand.u32 %v333, 2139095040
    %v3254 = vshrl.u32 %v3253, 23
    %v3255 = vsub.s32 %v3254, 127
    %v3256 = vand.u32 2147483647, %v333
    %v3257 = vand.u32 %v3256, 8388607
    %v3258 = vor.u32 %v3257, 8388608
    %v3259 = vsub.s32 0, %v3258
    %v3260 = vadd.s32 %v3255, 1
    %vm3261 = vcmp.gt.s32.totalorder %v3260, 0
    %v3262 = vsel %vm3261, %v3260, 0
    %v3263 = vshrl.u32 %v3262, 5
    %v3264 = vand.u32 %v3262, 31
    %v3265 = vsub.s32 32, %v3264
    %v3266 = vshrl.u32 683565275, %v3265
    %v3267 = vshll.u32 683565275, %v3264
    %v3268 = vshrl.u32 2475754826, %v3265
    %v3269 = vor.u32 %v3267, %v3268
    %v3270 = vshll.u32 2475754826, %v3264
    %v3271 = vshrl.u32 2131351028, %v3265
    %v3272 = vor.u32 %v3270, %v3271
    %v3273 = vshll.u32 2131351028, %v3264
    %v3274 = vshrl.u32 2102212464, %v3265
    %v3275 = vor.u32 %v3273, %v3274
    %v3276 = vshll.u32 2102212464, %v3264
    %v3277 = vshrl.u32 920167782, %v3265
    %v3278 = vor.u32 %v3276, %v3277
    %v3279 = vshll.u32 920167782, %v3264
    %v3280 = vshrl.u32 1326507024, %v3265
    %v3281 = vor.u32 %v3279, %v3280
    %vm3282 = vcmp.lt.s32.totalorder %v3263, 1
    %vm3283 = vcmp.lt.s32.totalorder %v3263, 2
    %vm3284 = vcmp.lt.s32.totalorder %v3263, 3
    %vm3285 = vcmp.lt.s32.totalorder %v3263, 4
    %v3286 = vsel %vm3282, %v3266, %v3269
    %v3287 = vsel %vm3285, %v3275, 2102212464
    %v3288 = vsel %vm3284, %v3272, %v3287
    %v3289 = vsel %vm3283, %v3286, %v3288
    %v3290 = vsel %vm3282, %v3269, %v3272
    %v3291 = vsel %vm3285, %v3278, 920167782
    %v3292 = vsel %vm3284, %v3275, %v3291
    %v3293 = vsel %vm3283, %v3290, %v3292
    %v3294 = vsel %vm3282, %v3272, %v3275
    %v3295 = vsel %vm3285, %v3281, 1326507024
    %v3296 = vsel %vm3284, %v3278, %v3295
    %v3297 = vsel %vm3283, %v3294, %v3296
    %v3298 = vshll.u32 %v3258, 8
    %v3299 = vmul.u32.u64.compose %v3298, %v3297
    %v3300 = vextract.low.u32 %v3299
    %v3301 = vextract.high.u32 %v3299
    %v3302 = vmul.u32.u64.compose %v3298, %v3293
    %v3303 = vextract.low.u32 %v3302
    %v3304 = vextract.high.u32 %v3302
    %v3305 = vmul.u32 %v3298, %v3289
    %v3306 = vadd.s32 %v3301, %v3303
    %vm3307 = vc.u32 %v3301, %v3303
    %v3308 = vadd.s32 %v3304, 1
    %v3309 = vsel %vm3307, %v3308, %v3304
    %v3310 = vadd.s32 %v3305, %v3309
    %v3311 = vadd.s32 %v3310, 536870912
    %v3312 = vshrl.u32 %v3311, 30
    %v3313 = vshll.u32 %v3312, 30
    %v3314 = vsub.s32 %v3310, %v3313
    %vm3315 = vcmp.lt.s32.totalorder %v3314, 0
    %v3316 = vsub.s32 0, %v3314
    %v3317 = vsel %vm3315, %v3316, %v3314
    %v3318 = vclz %v3317
    %v3319 = vsub.s32 %v3318, 2
    %vm3320 = vcmp.gt.s32.totalorder 0, %v3319
    %v3321 = vsel %vm3320, 0, %v3319
    %v3322 = vsub.s32 32, %v3321
    %v3323 = vshll.u32 %v3314, %v3321
    %v3324 = vshrl.u32 %v3306, %v3322
    %v3325 = vor.u32 %v3323, %v3324
    %v3326 = vsub.s32 4294967266, %v3321
    %v3327 = vadd.s32 %v3326, 127
    %v3328 = vshll.u32 %v3327, 23
    %v3329 = vor.u32 4788187, %v3328
    %v3330 = vand.u32 2147483647, %v3329
    %v3332 = vcvt.s32.f32 %v3325
    %v3333 = vmul.f32 %v3332, %v3330
    %v3334 = vxor.u32 %v3333, 2147483648
    %v3335 = vsel %vm3252, %v3334, %v3333
    %v3336 = vsub.s32 4, %v3312
    %v3337 = vsel %vm3252, %v3336, %v3312
    %v3338 = vsel %vm3251, %v333, %v3335
    %v3339 = vsel %vm3251, 0, %v3337
    %v3340 = vcosq.f32.pop %v3338
    %v3341 = vsinq.f32.pop %v3338
    %vm3342 = vweird.f32 %v333
    %v3343 = vadd.s32 %v3339, 3
    %v3344 = vand.u32 %v3343, 3
    %vm3345 = vcmp.lt.s32.totalorder %v3344, 2
    %vm3346 = vcmp.eq.s32.totalorder %v3344, 0
    %v3347 = vxor.u32 %v3341, 2147483648
    %v3348 = vsel %vm3346, %v3340, %v3347
    %vm3349 = vcmp.eq.s32.totalorder %v3344, 2
    %v3350 = vxor.u32 %v3340, 2147483648
    %v3351 = vsel %vm3349, %v3350, %v3341
    %v3352 = vsel %vm3345, %v3348, %v3351
    %v3353 = vsel %vm3342, nan, %v3352
    %v3354 = vand.u32 2147483647, %v334
    %vm3355 = vcmp.le.f32.partialorder %v3354, 0.7853982
    %vm3356 = vcmp.lt.s32.totalorder %v334, 0
    %v3357 = vand.u32 %v334, 2139095040
    %v3358 = vshrl.u32 %v3357, 23
    %v3359 = vsub.s32 %v3358, 127
    %v3360 = vand.u32 2147483647, %v334
    %v3361 = vand.u32 %v3360, 8388607
    %v3362 = vor.u32 %v3361, 8388608
    %v3363 = vsub.s32 0, %v3362
    %v3364 = vadd.s32 %v3359, 1
    %vm3365 = vcmp.gt.s32.totalorder %v3364, 0
    %v3366 = vsel %vm3365, %v3364, 0
    %v3367 = vshrl.u32 %v3366, 5
    %v3368 = vand.u32 %v3366, 31
    %v3369 = vsub.s32 32, %v3368
    %v3370 = vshrl.u32 683565275, %v3369
    %v3371 = vshll.u32 683565275, %v3368
    %v3372 = vshrl.u32 2475754826, %v3369
    %v3373 = vor.u32 %v3371, %v3372
    %v3374 = vshll.u32 2475754826, %v3368
    %v3375 = vshrl.u32 2131351028, %v3369
    %v3376 = vor.u32 %v3374, %v3375
    %v3377 = vshll.u32 2131351028, %v3368
    %v3378 = vshrl.u32 2102212464, %v3369
    %v3379 = vor.u32 %v3377, %v3378
    %v3380 = vshll.u32 2102212464, %v3368
    %v3381 = vshrl.u32 920167782, %v3369
    %v3382 = vor.u32 %v3380, %v3381
    %v3383 = vshll.u32 920167782, %v3368
    %v3384 = vshrl.u32 1326507024, %v3369
    %v3385 = vor.u32 %v3383, %v3384
    %vm3386 = vcmp.lt.s32.totalorder %v3367, 1
    %vm3387 = vcmp.lt.s32.totalorder %v3367, 2
    %vm3388 = vcmp.lt.s32.totalorder %v3367, 3
    %vm3389 = vcmp.lt.s32.totalorder %v3367, 4
    %v3390 = vsel %vm3386, %v3370, %v3373
    %v3391 = vsel %vm3389, %v3379, 2102212464
    %v3392 = vsel %vm3388, %v3376, %v3391
    %v3393 = vsel %vm3387, %v3390, %v3392
    %v3394 = vsel %vm3386, %v3373, %v3376
    %v3395 = vsel %vm3389, %v3382, 920167782
    %v3396 = vsel %vm3388, %v3379, %v3395
    %v3397 = vsel %vm3387, %v3394, %v3396
    %v3398 = vsel %vm3386, %v3376, %v3379
    %v3399 = vsel %vm3389, %v3385, 1326507024
    %v3400 = vsel %vm3388, %v3382, %v3399
    %v3401 = vsel %vm3387, %v3398, %v3400
    %v3402 = vshll.u32 %v3362, 8
    %v3403 = vmul.u32.u64.compose %v3402, %v3401
    %v3404 = vextract.low.u32 %v3403
    %v3405 = vextract.high.u32 %v3403
    %v3406 = vmul.u32.u64.compose %v3402, %v3397
    %v3407 = vextract.low.u32 %v3406
    %v3408 = vextract.high.u32 %v3406
    %v3409 = vmul.u32 %v3402, %v3393
    %v3410 = vadd.s32 %v3405, %v3407
    %vm3411 = vc.u32 %v3405, %v3407
    %v3412 = vadd.s32 %v3408, 1
    %v3413 = vsel %vm3411, %v3412, %v3408
    %v3414 = vadd.s32 %v3409, %v3413
    %v3415 = vadd.s32 %v3414, 536870912
    %v3416 = vshrl.u32 %v3415, 30
    %v3417 = vshll.u32 %v3416, 30
    %v3418 = vsub.s32 %v3414, %v3417
    %vm3419 = vcmp.lt.s32.totalorder %v3418, 0
    %v3420 = vsub.s32 0, %v3418
    %v3421 = vsel %vm3419, %v3420, %v3418
    %v3422 = vclz %v3421
    %v3423 = vsub.s32 %v3422, 2
    %vm3424 = vcmp.gt.s32.totalorder 0, %v3423
    %v3425 = vsel %vm3424, 0, %v3423
    %v3426 = vsub.s32 32, %v3425
    %v3427 = vshll.u32 %v3418, %v3425
    %v3428 = vshrl.u32 %v3410, %v3426
    %v3429 = vor.u32 %v3427, %v3428
    %v3430 = vsub.s32 4294967266, %v3425
    %v3431 = vadd.s32 %v3430, 127
    %v3432 = vshll.u32 %v3431, 23
    %v3433 = vor.u32 4788187, %v3432
    %v3434 = vand.u32 2147483647, %v3433
    %v3436 = vcvt.s32.f32 %v3429
    %v3437 = vmul.f32 %v3436, %v3434
    %v3438 = vxor.u32 %v3437, 2147483648
    %v3439 = vsel %vm3356, %v3438, %v3437
    %v3440 = vsub.s32 4, %v3416
    %v3441 = vsel %vm3356, %v3440, %v3416
    %v3442 = vsel %vm3355, %v334, %v3439
    %v3443 = vsel %vm3355, 0, %v3441
    %v3444 = vcosq.f32.pop %v3442
    %v3445 = vsinq.f32.pop %v3442
    %vm3446 = vweird.f32 %v334
    %v3447 = vadd.s32 %v3443, 3
    %v3448 = vand.u32 %v3447, 3
    %vm3449 = vcmp.lt.s32.totalorder %v3448, 2
    %vm3450 = vcmp.eq.s32.totalorder %v3448, 0
    %v3451 = vxor.u32 %v3445, 2147483648
    %v3452 = vsel %vm3450, %v3444, %v3451
    %vm3453 = vcmp.eq.s32.totalorder %v3448, 2
    %v3454 = vxor.u32 %v3444, 2147483648
    %v3455 = vsel %vm3453, %v3454, %v3445
    %v3456 = vsel %vm3449, %v3452, %v3455
    %v3457 = vsel %vm3446, nan, %v3456
    %v3458 = vand.u32 2147483647, %v335
    %vm3459 = vcmp.le.f32.partialorder %v3458, 0.7853982
    %vm3460 = vcmp.lt.s32.totalorder %v335, 0
    %v3461 = vand.u32 %v335, 2139095040
    %v3462 = vshrl.u32 %v3461, 23
    %v3463 = vsub.s32 %v3462, 127
    %v3464 = vand.u32 2147483647, %v335
    %v3465 = vand.u32 %v3464, 8388607
    %v3466 = vor.u32 %v3465, 8388608
    %v3467 = vsub.s32 0, %v3466
    %v3468 = vadd.s32 %v3463, 1
    %vm3469 = vcmp.gt.s32.totalorder %v3468, 0
    %v3470 = vsel %vm3469, %v3468, 0
    %v3471 = vshrl.u32 %v3470, 5
    %v3472 = vand.u32 %v3470, 31
    %v3473 = vsub.s32 32, %v3472
    %v3474 = vshrl.u32 683565275, %v3473
    %v3475 = vshll.u32 683565275, %v3472
    %v3476 = vshrl.u32 2475754826, %v3473
    %v3477 = vor.u32 %v3475, %v3476
    %v3478 = vshll.u32 2475754826, %v3472
    %v3479 = vshrl.u32 2131351028, %v3473
    %v3480 = vor.u32 %v3478, %v3479
    %v3481 = vshll.u32 2131351028, %v3472
    %v3482 = vshrl.u32 2102212464, %v3473
    %v3483 = vor.u32 %v3481, %v3482
    %v3484 = vshll.u32 2102212464, %v3472
    %v3485 = vshrl.u32 920167782, %v3473
    %v3486 = vor.u32 %v3484, %v3485
    %v3487 = vshll.u32 920167782, %v3472
    %v3488 = vshrl.u32 1326507024, %v3473
    %v3489 = vor.u32 %v3487, %v3488
    %vm3490 = vcmp.lt.s32.totalorder %v3471, 1
    %vm3491 = vcmp.lt.s32.totalorder %v3471, 2
    %vm3492 = vcmp.lt.s32.totalorder %v3471, 3
    %vm3493 = vcmp.lt.s32.totalorder %v3471, 4
    %v3494 = vsel %vm3490, %v3474, %v3477
    %v3495 = vsel %vm3493, %v3483, 2102212464
    %v3496 = vsel %vm3492, %v3480, %v3495
    %v3497 = vsel %vm3491, %v3494, %v3496
    %v3498 = vsel %vm3490, %v3477, %v3480
    %v3499 = vsel %vm3493, %v3486, 920167782
    %v3500 = vsel %vm3492, %v3483, %v3499
    %v3501 = vsel %vm3491, %v3498, %v3500
    %v3502 = vsel %vm3490, %v3480, %v3483
    %v3503 = vsel %vm3493, %v3489, 1326507024
    %v3504 = vsel %vm3492, %v3486, %v3503
    %v3505 = vsel %vm3491, %v3502, %v3504
    %v3506 = vshll.u32 %v3466, 8
    %v3507 = vmul.u32.u64.compose %v3506, %v3505
    %v3508 = vextract.low.u32 %v3507
    %v3509 = vextract.high.u32 %v3507
    %v3510 = vmul.u32.u64.compose %v3506, %v3501
    %v3511 = vextract.low.u32 %v3510
    %v3512 = vextract.high.u32 %v3510
    %v3513 = vmul.u32 %v3506, %v3497
    %v3514 = vadd.s32 %v3509, %v3511
    %vm3515 = vc.u32 %v3509, %v3511
    %v3516 = vadd.s32 %v3512, 1
    %v3517 = vsel %vm3515, %v3516, %v3512
    %v3518 = vadd.s32 %v3513, %v3517
    %v3519 = vadd.s32 %v3518, 536870912
    %v3520 = vshrl.u32 %v3519, 30
    %v3521 = vshll.u32 %v3520, 30
    %v3522 = vsub.s32 %v3518, %v3521
    %vm3523 = vcmp.lt.s32.totalorder %v3522, 0
    %v3524 = vsub.s32 0, %v3522
    %v3525 = vsel %vm3523, %v3524, %v3522
    %v3526 = vclz %v3525
    %v3527 = vsub.s32 %v3526, 2
    %vm3528 = vcmp.gt.s32.totalorder 0, %v3527
    %v3529 = vsel %vm3528, 0, %v3527
    %v3530 = vsub.s32 32, %v3529
    %v3531 = vshll.u32 %v3522, %v3529
    %v3532 = vshrl.u32 %v3514, %v3530
    %v3533 = vor.u32 %v3531, %v3532
    %v3534 = vsub.s32 4294967266, %v3529
    %v3535 = vadd.s32 %v3534, 127
    %v3536 = vshll.u32 %v3535, 23
    %v3537 = vor.u32 4788187, %v3536
    %v3538 = vand.u32 2147483647, %v3537
    %v3540 = vcvt.s32.f32 %v3533
    %v3541 = vmul.f32 %v3540, %v3538
    %v3542 = vxor.u32 %v3541, 2147483648
    %v3543 = vsel %vm3460, %v3542, %v3541
    %v3544 = vsub.s32 4, %v3520
    %v3545 = vsel %vm3460, %v3544, %v3520
    %v3546 = vsel %vm3459, %v335, %v3543
    %v3547 = vsel %vm3459, 0, %v3545
    %v3548 = vcosq.f32.pop %v3546
    %v3549 = vsinq.f32.pop %v3546
    %vm3550 = vweird.f32 %v335
    %v3551 = vadd.s32 %v3547, 3
    %v3552 = vand.u32 %v3551, 3
    %vm3553 = vcmp.lt.s32.totalorder %v3552, 2
    %vm3554 = vcmp.eq.s32.totalorder %v3552, 0
    %v3555 = vxor.u32 %v3549, 2147483648
    %v3556 = vsel %vm3554, %v3548, %v3555
    %vm3557 = vcmp.eq.s32.totalorder %v3552, 2
    %v3558 = vxor.u32 %v3548, 2147483648
    %v3559 = vsel %vm3557, %v3558, %v3549
    %v3560 = vsel %vm3553, %v3556, %v3559
    %v3561 = vsel %vm3550, nan, %v3560
    %v3562 = vand.u32 2147483647, %v336
    %vm3563 = vcmp.le.f32.partialorder %v3562, 0.7853982
    %vm3564 = vcmp.lt.s32.totalorder %v336, 0
    %v3565 = vand.u32 %v336, 2139095040
    %v3566 = vshrl.u32 %v3565, 23
    %v3567 = vsub.s32 %v3566, 127
    %v3568 = vand.u32 2147483647, %v336
    %v3569 = vand.u32 %v3568, 8388607
    %v3570 = vor.u32 %v3569, 8388608
    %v3571 = vsub.s32 0, %v3570
    %v3572 = vadd.s32 %v3567, 1
    %vm3573 = vcmp.gt.s32.totalorder %v3572, 0
    %v3574 = vsel %vm3573, %v3572, 0
    %v3575 = vshrl.u32 %v3574, 5
    %v3576 = vand.u32 %v3574, 31
    %v3577 = vsub.s32 32, %v3576
    %v3578 = vshrl.u32 683565275, %v3577
    %v3579 = vshll.u32 683565275, %v3576
    %v3580 = vshrl.u32 2475754826, %v3577
    %v3581 = vor.u32 %v3579, %v3580
    %v3582 = vshll.u32 2475754826, %v3576
    %v3583 = vshrl.u32 2131351028, %v3577
    %v3584 = vor.u32 %v3582, %v3583
    %v3585 = vshll.u32 2131351028, %v3576
    %v3586 = vshrl.u32 2102212464, %v3577
    %v3587 = vor.u32 %v3585, %v3586
    %v3588 = vshll.u32 2102212464, %v3576
    %v3589 = vshrl.u32 920167782, %v3577
    %v3590 = vor.u32 %v3588, %v3589
    %v3591 = vshll.u32 920167782, %v3576
    %v3592 = vshrl.u32 1326507024, %v3577
    %v3593 = vor.u32 %v3591, %v3592
    %vm3594 = vcmp.lt.s32.totalorder %v3575, 1
    %vm3595 = vcmp.lt.s32.totalorder %v3575, 2
    %vm3596 = vcmp.lt.s32.totalorder %v3575, 3
    %vm3597 = vcmp.lt.s32.totalorder %v3575, 4
    %v3598 = vsel %vm3594, %v3578, %v3581
    %v3599 = vsel %vm3597, %v3587, 2102212464
    %v3600 = vsel %vm3596, %v3584, %v3599
    %v3601 = vsel %vm3595, %v3598, %v3600
    %v3602 = vsel %vm3594, %v3581, %v3584
    %v3603 = vsel %vm3597, %v3590, 920167782
    %v3604 = vsel %vm3596, %v3587, %v3603
    %v3605 = vsel %vm3595, %v3602, %v3604
    %v3606 = vsel %vm3594, %v3584, %v3587
    %v3607 = vsel %vm3597, %v3593, 1326507024
    %v3608 = vsel %vm3596, %v3590, %v3607
    %v3609 = vsel %vm3595, %v3606, %v3608
    %v3610 = vshll.u32 %v3570, 8
    %v3611 = vmul.u32.u64.compose %v3610, %v3609
    %v3612 = vextract.low.u32 %v3611
    %v3613 = vextract.high.u32 %v3611
    %v3614 = vmul.u32.u64.compose %v3610, %v3605
    %v3615 = vextract.low.u32 %v3614
    %v3616 = vextract.high.u32 %v3614
    %v3617 = vmul.u32 %v3610, %v3601
    %v3618 = vadd.s32 %v3613, %v3615
    %vm3619 = vc.u32 %v3613, %v3615
    %v3620 = vadd.s32 %v3616, 1
    %v3621 = vsel %vm3619, %v3620, %v3616
    %v3622 = vadd.s32 %v3617, %v3621
    %v3623 = vadd.s32 %v3622, 536870912
    %v3624 = vshrl.u32 %v3623, 30
    %v3625 = vshll.u32 %v3624, 30
    %v3626 = vsub.s32 %v3622, %v3625
    %vm3627 = vcmp.lt.s32.totalorder %v3626, 0
    %v3628 = vsub.s32 0, %v3626
    %v3629 = vsel %vm3627, %v3628, %v3626
    %v3630 = vclz %v3629
    %v3631 = vsub.s32 %v3630, 2
    %vm3632 = vcmp.gt.s32.totalorder 0, %v3631
    %v3633 = vsel %vm3632, 0, %v3631
    %v3634 = vsub.s32 32, %v3633
    %v3635 = vshll.u32 %v3626, %v3633
    %v3636 = vshrl.u32 %v3618, %v3634
    %v3637 = vor.u32 %v3635, %v3636
    %v3638 = vsub.s32 4294967266, %v3633
    %v3639 = vadd.s32 %v3638, 127
    %v3640 = vshll.u32 %v3639, 23
    %v3641 = vor.u32 4788187, %v3640
    %v3642 = vand.u32 2147483647, %v3641
    %v3644 = vcvt.s32.f32 %v3637
    %v3645 = vmul.f32 %v3644, %v3642
    %v3646 = vxor.u32 %v3645, 2147483648
    %v3647 = vsel %vm3564, %v3646, %v3645
    %v3648 = vsub.s32 4, %v3624
    %v3649 = vsel %vm3564, %v3648, %v3624
    %v3650 = vsel %vm3563, %v336, %v3647
    %v3651 = vsel %vm3563, 0, %v3649
    %v3652 = vcosq.f32.pop %v3650
    %v3653 = vsinq.f32.pop %v3650
    %vm3654 = vweird.f32 %v336
    %v3655 = vadd.s32 %v3651, 3
    %v3656 = vand.u32 %v3655, 3
    %vm3657 = vcmp.lt.s32.totalorder %v3656, 2
    %vm3658 = vcmp.eq.s32.totalorder %v3656, 0
    %v3659 = vxor.u32 %v3653, 2147483648
    %v3660 = vsel %vm3658, %v3652, %v3659
    %vm3661 = vcmp.eq.s32.totalorder %v3656, 2
    %v3662 = vxor.u32 %v3652, 2147483648
    %v3663 = vsel %vm3661, %v3662, %v3653
    %v3664 = vsel %vm3657, %v3660, %v3663
    %v3665 = vsel %vm3654, nan, %v3664
    %v3666 = vstv %s111
    %v3667 = vmul.f32 %v3666, %v2105
    %v3668 = vmul.f32 %v3666, %v2209
    %v3669 = vmul.f32 %v3666, %v2313
    %v3670 = vmul.f32 %v3666, %v2417
    %v3671 = vmul.f32 %v3666, %v2521
    %v3672 = vmul.f32 %v3666, %v2625
    %v3673 = vmul.f32 %v3666, %v2729
    %v3674 = vmul.f32 %v3666, %v2833
    %v3675 = vmul.f32 %v3666, %v2937
    %v3676 = vmul.f32 %v3666, %v3041
    %v3677 = vmul.f32 %v3666, %v3145
    %v3678 = vmul.f32 %v3666, %v3249
    %v3679 = vmul.f32 %v3666, %v3353
    %v3680 = vmul.f32 %v3666, %v3457
    %v3681 = vmul.f32 %v3666, %v3561
    %v3682 = vmul.f32 %v3666, %v3665
    %v3683 = vadd.f32 %v1986, %v3667
    %v3684 = vadd.f32 %v1987, %v3668
    %v3685 = vadd.f32 %v1988, %v3669
    %v3686 = vadd.f32 %v1989, %v3670
    %v3687 = vadd.f32 %v1990, %v3671
    %v3688 = vadd.f32 %v1991, %v3672
    %v3689 = vadd.f32 %v1992, %v3673
    %v3690 = vadd.f32 %v1993, %v3674
    %v3691 = vadd.f32 %v1994, %v3675
    %v3692 = vadd.f32 %v1995, %v3676
    %v3693 = vadd.f32 %v1996, %v3677
    %v3694 = vadd.f32 %v1997, %v3678
    %v3695 = vadd.f32 %v1998, %v3679
    %v3696 = vadd.f32 %v1999, %v3680
    %v3697 = vadd.f32 %v2000, %v3681
    %v3698 = vadd.f32 %v2001, %v3682
    %v3699 = vmul.f32 %v1985, %v217
    %v3700 = vmul.f32 %v1985, %v218
    %v3701 = vmul.f32 %v1985, %v219
    %v3702 = vmul.f32 %v1985, %v220
    %v3703 = vmul.f32 %v1985, %v221
    %v3704 = vmul.f32 %v1985, %v222
    %v3705 = vmul.f32 %v1985, %v223
    %v3706 = vmul.f32 %v1985, %v224
    %v3707 = vmul.f32 %v1985, %v225
    %v3708 = vmul.f32 %v1985, %v226
    %v3709 = vmul.f32 %v1985, %v227
    %v3710 = vmul.f32 %v1985, %v228
    %v3711 = vmul.f32 %v1985, %v229
    %v3712 = vmul.f32 %v1985, %v230
    %v3713 = vmul.f32 %v1985, %v231
    %v3714 = vmul.f32 %v1985, %v232
    %v3715 = vmul.f32 %v3666, %v321
    %v3716 = vmul.f32 %v3666, %v322
    %v3717 = vmul.f32 %v3666, %v323
    %v3718 = vmul.f32 %v3666, %v324
    %v3719 = vmul.f32 %v3666, %v325
    %v3720 = vmul.f32 %v3666, %v326
    %v3721 = vmul.f32 %v3666, %v327
    %v3722 = vmul.f32 %v3666, %v328
    %v3723 = vmul.f32 %v3666, %v329
    %v3724 = vmul.f32 %v3666, %v330
    %v3725 = vmul.f32 %v3666, %v331
    %v3726 = vmul.f32 %v3666, %v332
    %v3727 = vmul.f32 %v3666, %v333
    %v3728 = vmul.f32 %v3666, %v334
    %v3729 = vmul.f32 %v3666, %v335
    %v3730 = vmul.f32 %v3666, %v336
    %v3731 = vadd.f32 %v3699, %v3715
    %v3732 = vadd.f32 %v3700, %v3716
    %v3733 = vadd.f32 %v3701, %v3717
    %v3734 = vadd.f32 %v3702, %v3718
    %v3735 = vadd.f32 %v3703, %v3719
    %v3736 = vadd.f32 %v3704, %v3720
    %v3737 = vadd.f32 %v3705, %v3721
    %v3738 = vadd.f32 %v3706, %v3722
    %v3739 = vadd.f32 %v3707, %v3723
    %v3740 = vadd.f32 %v3708, %v3724
    %v3741 = vadd.f32 %v3709, %v3725
    %v3742 = vadd.f32 %v3710, %v3726
    %v3743 = vadd.f32 %v3711, %v3727
    %v3744 = vadd.f32 %v3712, %v3728
    %v3745 = vadd.f32 %v3713, %v3729
    %v3746 = vadd.f32 %v3714, %v3730
    %v3747 = vlaneseq
    %v3748 = vand.u32 %v3747, 127
    %vm3749 = vcmp.eq.s32.totalorder %v3748, 127
    %v3750 = vsel %vm3749, 1, 0
    %vm3751 = vcmp.eq.s32.totalorder %v3750, 1
    %v3752 = vsel %vm3751, %v3731, %v3683
    %v3753 = vsel %vm3751, %v3732, %v3684
    %v3754 = vsel %vm3751, %v3733, %v3685
    %v3755 = vsel %vm3751, %v3734, %v3686
    %v3756 = vsel %vm3751, %v3735, %v3687
    %v3757 = vsel %vm3751, %v3736, %v3688
    %v3758 = vsel %vm3751, %v3737, %v3689
    %v3759 = vsel %vm3751, %v3738, %v3690
    %v3760 = vsel %vm3751, %v3739, %v3691
    %v3761 = vsel %vm3751, %v3740, %v3692
    %v3762 = vsel %vm3751, %v3741, %v3693
    %v3763 = vsel %vm3751, %v3742, %v3694
    %v3764 = vsel %vm3751, %v3743, %v3695
    %v3765 = vsel %vm3751, %v3744, %v3696
    %v3766 = vsel %vm3751, %v3745, %v3697
    %v3767 = vsel %vm3751, %v3746, %v3698
    %3768 = vset.pattern.permute.xlu0 3
    %3769 = vperm.xlu0 %3768, %v90
    %v3770 = vpop.permute.xlu0 %3769
    %3772 = vset.pattern.permute.xlu0 3
    %3773 = vperm.xlu0 %3772, %v91
    %v3774 = vpop.permute.xlu0 %3773
    %3776 = vset.pattern.permute.xlu0 3
    %3777 = vperm.xlu0 %3776, %v92
    %v3778 = vpop.permute.xlu0 %3777
    %3780 = vset.pattern.permute.xlu0 3
    %3781 = vperm.xlu0 %3780, %v93
    %v3782 = vpop.permute.xlu0 %3781
    %3784 = vset.pattern.permute.xlu0 3
    %3785 = vperm.xlu0 %3784, %v94
    %v3786 = vpop.permute.xlu0 %3785
    %3788 = vset.pattern.permute.xlu0 3
    %3789 = vperm.xlu0 %3788, %v95
    %v3790 = vpop.permute.xlu0 %3789
    %3792 = vset.pattern.permute.xlu0 3
    %3793 = vperm.xlu0 %3792, %v96
    %v3794 = vpop.permute.xlu0 %3793
    %3796 = vset.pattern.permute.xlu0 3
    %3797 = vperm.xlu0 %3796, %v97
    %v3798 = vpop.permute.xlu0 %3797
    %3800 = vset.pattern.permute.xlu0 3
    %3801 = vperm.xlu0 %3800, %v98
    %v3802 = vpop.permute.xlu0 %3801
    %3804 = vset.pattern.permute.xlu0 3
    %3805 = vperm.xlu0 %3804, %v99
    %v3806 = vpop.permute.xlu0 %3805
    %3808 = vset.pattern.permute.xlu0 3
    %3809 = vperm.xlu0 %3808, %v100
    %v3810 = vpop.permute.xlu0 %3809
    %3812 = vset.pattern.permute.xlu0 3
    %3813 = vperm.xlu0 %3812, %v101
    %v3814 = vpop.permute.xlu0 %3813
    %3816 = vset.pattern.permute.xlu0 3
    %3817 = vperm.xlu0 %3816, %v102
    %v3818 = vpop.permute.xlu0 %3817
    %3820 = vset.pattern.permute.xlu0 3
    %3821 = vperm.xlu0 %3820, %v103
    %v3822 = vpop.permute.xlu0 %3821
    %3824 = vset.pattern.permute.xlu0 3
    %3825 = vperm.xlu0 %3824, %v104
    %v3826 = vpop.permute.xlu0 %3825
    %3828 = vset.pattern.permute.xlu0 3
    %3829 = vperm.xlu0 %3828, %v105
    %v3830 = vpop.permute.xlu0 %3829
    %v3832 = vmul.f32 %v3752, %v3770
    %v3833 = vmul.f32 %v3753, %v3774
    %v3834 = vmul.f32 %v3754, %v3778
    %v3835 = vmul.f32 %v3755, %v3782
    %v3836 = vmul.f32 %v3756, %v3786
    %v3837 = vmul.f32 %v3757, %v3790
    %v3838 = vmul.f32 %v3758, %v3794
    %v3839 = vmul.f32 %v3759, %v3798
    %v3840 = vmul.f32 %v3760, %v3802
    %v3841 = vmul.f32 %v3761, %v3806
    %v3842 = vmul.f32 %v3762, %v3810
    %v3843 = vmul.f32 %v3763, %v3814
    %v3844 = vmul.f32 %v3764, %v3818
    %v3845 = vmul.f32 %v3765, %v3822
    %v3846 = vmul.f32 %v3766, %v3826
    %v3847 = vmul.f32 %v3767, %v3830
    %vm3848 = vcmp.eq.f32.partialorder %v90, 0.0
    %vm3849 = vcmp.eq.f32.partialorder %v91, 0.0
    %vm3850 = vcmp.eq.f32.partialorder %v92, 0.0
    %vm3851 = vcmp.eq.f32.partialorder %v93, 0.0
    %vm3852 = vcmp.eq.f32.partialorder %v94, 0.0
    %vm3853 = vcmp.eq.f32.partialorder %v95, 0.0
    %vm3854 = vcmp.eq.f32.partialorder %v96, 0.0
    %vm3855 = vcmp.eq.f32.partialorder %v97, 0.0
    %vm3856 = vcmp.eq.f32.partialorder %v98, 0.0
    %vm3857 = vcmp.eq.f32.partialorder %v99, 0.0
    %vm3858 = vcmp.eq.f32.partialorder %v100, 0.0
    %vm3859 = vcmp.eq.f32.partialorder %v101, 0.0
    %vm3860 = vcmp.eq.f32.partialorder %v102, 0.0
    %vm3861 = vcmp.eq.f32.partialorder %v103, 0.0
    %vm3862 = vcmp.eq.f32.partialorder %v104, 0.0
    %vm3863 = vcmp.eq.f32.partialorder %v105, 0.0
    %v3864 = vld [vmem:[%s2] sm:$0x1]
    %v3865 = vsel %vm3848, 1, 0
    %v3866 = vsel %vm3849, 1, 0
    %v3867 = vsel %vm3850, 1, 0
    %v3868 = vsel %vm3851, 1, 0
    %v3869 = vsel %vm3852, 1, 0
    %v3870 = vsel %vm3853, 1, 0
    %v3871 = vsel %vm3854, 1, 0
    %v3872 = vsel %vm3855, 1, 0
    %v3873 = vsel %vm3856, 1, 0
    %v3874 = vsel %vm3857, 1, 0
    %v3875 = vsel %vm3858, 1, 0
    %v3876 = vsel %vm3859, 1, 0
    %v3877 = vsel %vm3860, 1, 0
    %v3878 = vsel %vm3861, 1, 0
    %v3879 = vsel %vm3862, 1, 0
    %v3880 = vsel %vm3863, 1, 0
    %3881 = vset.pattern.permute.xlu0 2
    %3882 = vperm.xlu0 %3881, %v3865
    %v3883 = vpop.permute.xlu0 %3882
    %3884 = vset.pattern.permute.xlu0 2
    %3885 = vperm.xlu0 %3884, %v3866
    %v3886 = vpop.permute.xlu0 %3885
    %3887 = vset.pattern.permute.xlu0 2
    %3888 = vperm.xlu0 %3887, %v3867
    %v3889 = vpop.permute.xlu0 %3888
    %3890 = vset.pattern.permute.xlu0 2
    %3891 = vperm.xlu0 %3890, %v3868
    %v3892 = vpop.permute.xlu0 %3891
    %3893 = vset.pattern.permute.xlu0 2
    %3894 = vperm.xlu0 %3893, %v3869
    %v3895 = vpop.permute.xlu0 %3894
    %3896 = vset.pattern.permute.xlu0 2
    %3897 = vperm.xlu0 %3896, %v3870
    %v3898 = vpop.permute.xlu0 %3897
    %3899 = vset.pattern.permute.xlu0 2
    %3900 = vperm.xlu0 %3899, %v3871
    %v3901 = vpop.permute.xlu0 %3900
    %3902 = vset.pattern.permute.xlu0 2
    %3903 = vperm.xlu0 %3902, %v3872
    %v3904 = vpop.permute.xlu0 %3903
    %3905 = vset.pattern.permute.xlu0 2
    %3906 = vperm.xlu0 %3905, %v3873
    %v3907 = vpop.permute.xlu0 %3906
    %3908 = vset.pattern.permute.xlu0 2
    %3909 = vperm.xlu0 %3908, %v3874
    %v3910 = vpop.permute.xlu0 %3909
    %3911 = vset.pattern.permute.xlu0 2
    %3912 = vperm.xlu0 %3911, %v3875
    %v3913 = vpop.permute.xlu0 %3912
    %3914 = vset.pattern.permute.xlu0 2
    %3915 = vperm.xlu0 %3914, %v3876
    %v3916 = vpop.permute.xlu0 %3915
    %3917 = vset.pattern.permute.xlu0 2
    %3918 = vperm.xlu0 %3917, %v3877
    %v3919 = vpop.permute.xlu0 %3918
    %3920 = vset.pattern.permute.xlu0 2
    %3921 = vperm.xlu0 %3920, %v3878
    %v3922 = vpop.permute.xlu0 %3921
    %3923 = vset.pattern.permute.xlu0 2
    %3924 = vperm.xlu0 %3923, %v3879
    %v3925 = vpop.permute.xlu0 %3924
    %3926 = vset.pattern.permute.xlu0 2
    %3927 = vperm.xlu0 %3926, %v3880
    %v3928 = vpop.permute.xlu0 %3927
    %vm3929 = vcmp.eq.s32.totalorder %v3883, 1
    %vm3930 = vcmp.eq.s32.totalorder %v3886, 1
    %vm3931 = vcmp.eq.s32.totalorder %v3889, 1
    %vm3932 = vcmp.eq.s32.totalorder %v3892, 1
    %vm3933 = vcmp.eq.s32.totalorder %v3895, 1
    %vm3934 = vcmp.eq.s32.totalorder %v3898, 1
    %vm3935 = vcmp.eq.s32.totalorder %v3901, 1
    %vm3936 = vcmp.eq.s32.totalorder %v3904, 1
    %vm3937 = vcmp.eq.s32.totalorder %v3907, 1
    %vm3938 = vcmp.eq.s32.totalorder %v3910, 1
    %vm3939 = vcmp.eq.s32.totalorder %v3913, 1
    %vm3940 = vcmp.eq.s32.totalorder %v3916, 1
    %vm3941 = vcmp.eq.s32.totalorder %v3919, 1
    %vm3942 = vcmp.eq.s32.totalorder %v3922, 1
    %vm3943 = vcmp.eq.s32.totalorder %v3925, 1
    %vm3944 = vcmp.eq.s32.totalorder %v3928, 1
    %v3945 = vlaneseq
    %v3946 = vshrl.u32 %v3945, 7
    %v3947 = vsub.s32 0, %v3946
    %v3948 = vrot.slane %v3864, %v3947
    %v3949 = vsel %vm3929, %v3948, 0.0
    %v3950 = vsel %vm3930, %v3948, 0.0
    %v3951 = vsel %vm3931, %v3948, 0.0
    %v3952 = vsel %vm3932, %v3948, 0.0
    %v3953 = vsel %vm3933, %v3948, 0.0
    %v3954 = vsel %vm3934, %v3948, 0.0
    %v3955 = vsel %vm3935, %v3948, 0.0
    %v3956 = vsel %vm3936, %v3948, 0.0
    %v3957 = vsel %vm3937, %v3948, 0.0
    %v3958 = vsel %vm3938, %v3948, 0.0
    %v3959 = vsel %vm3939, %v3948, 0.0
    %v3960 = vsel %vm3940, %v3948, 0.0
    %v3961 = vsel %vm3941, %v3948, 0.0
    %v3962 = vsel %vm3942, %v3948, 0.0
    %v3963 = vsel %vm3943, %v3948, 0.0
    %v3964 = vsel %vm3944, %v3948, 0.0
    %v3965 = vadd.f32 %v3949, 0.0
    %v3966 = vadd.f32 %v3950, 0.0
    %v3967 = vadd.f32 %v3951, 0.0
    %v3968 = vadd.f32 %v3952, 0.0
    %v3969 = vadd.f32 %v3953, 0.0
    %v3970 = vadd.f32 %v3954, 0.0
    %v3971 = vadd.f32 %v3955, 0.0
    %v3972 = vadd.f32 %v3956, 0.0
    %v3973 = vadd.f32 %v3957, 0.0
    %v3974 = vadd.f32 %v3958, 0.0
    %v3975 = vadd.f32 %v3959, 0.0
    %v3976 = vadd.f32 %v3960, 0.0
    %v3977 = vadd.f32 %v3961, 0.0
    %v3978 = vadd.f32 %v3962, 0.0
    %v3979 = vadd.f32 %v3963, 0.0
    %v3980 = vadd.f32 %v3964, 0.0
    %vm3981 = vcmp.eq.f32.partialorder %v90, 1.0
    %vm3982 = vcmp.eq.f32.partialorder %v91, 1.0
    %vm3983 = vcmp.eq.f32.partialorder %v92, 1.0
    %vm3984 = vcmp.eq.f32.partialorder %v93, 1.0
    %vm3985 = vcmp.eq.f32.partialorder %v94, 1.0
    %vm3986 = vcmp.eq.f32.partialorder %v95, 1.0
    %vm3987 = vcmp.eq.f32.partialorder %v96, 1.0
    %vm3988 = vcmp.eq.f32.partialorder %v97, 1.0
    %vm3989 = vcmp.eq.f32.partialorder %v98, 1.0
    %vm3990 = vcmp.eq.f32.partialorder %v99, 1.0
    %vm3991 = vcmp.eq.f32.partialorder %v100, 1.0
    %vm3992 = vcmp.eq.f32.partialorder %v101, 1.0
    %vm3993 = vcmp.eq.f32.partialorder %v102, 1.0
    %vm3994 = vcmp.eq.f32.partialorder %v103, 1.0
    %vm3995 = vcmp.eq.f32.partialorder %v104, 1.0
    %vm3996 = vcmp.eq.f32.partialorder %v105, 1.0
    %v3997 = vld [vmem:[%s2 + $0x1] sm:$0x1]
    %v3998 = vsel %vm3981, 1, 0
    %v3999 = vsel %vm3982, 1, 0
    %v4000 = vsel %vm3983, 1, 0
    %v4001 = vsel %vm3984, 1, 0
    %v4002 = vsel %vm3985, 1, 0
    %v4003 = vsel %vm3986, 1, 0
    %v4004 = vsel %vm3987, 1, 0
    %v4005 = vsel %vm3988, 1, 0
    %v4006 = vsel %vm3989, 1, 0
    %v4007 = vsel %vm3990, 1, 0
    %v4008 = vsel %vm3991, 1, 0
    %v4009 = vsel %vm3992, 1, 0
    %v4010 = vsel %vm3993, 1, 0
    %v4011 = vsel %vm3994, 1, 0
    %v4012 = vsel %vm3995, 1, 0
    %v4013 = vsel %vm3996, 1, 0
    %4014 = vset.pattern.permute.xlu0 2
    %4015 = vperm.xlu0 %4014, %v3998
    %v4016 = vpop.permute.xlu0 %4015
    %4017 = vset.pattern.permute.xlu0 2
    %4018 = vperm.xlu0 %4017, %v3999
    %v4019 = vpop.permute.xlu0 %4018
    %4020 = vset.pattern.permute.xlu0 2
    %4021 = vperm.xlu0 %4020, %v4000
    %v4022 = vpop.permute.xlu0 %4021
    %4023 = vset.pattern.permute.xlu0 2
    %4024 = vperm.xlu0 %4023, %v4001
    %v4025 = vpop.permute.xlu0 %4024
    %4026 = vset.pattern.permute.xlu0 2
    %4027 = vperm.xlu0 %4026, %v4002
    %v4028 = vpop.permute.xlu0 %4027
    %4029 = vset.pattern.permute.xlu0 2
    %4030 = vperm.xlu0 %4029, %v4003
    %v4031 = vpop.permute.xlu0 %4030
    %4032 = vset.pattern.permute.xlu0 2
    %4033 = vperm.xlu0 %4032, %v4004
    %v4034 = vpop.permute.xlu0 %4033
    %4035 = vset.pattern.permute.xlu0 2
    %4036 = vperm.xlu0 %4035, %v4005
    %v4037 = vpop.permute.xlu0 %4036
    %4038 = vset.pattern.permute.xlu0 2
    %4039 = vperm.xlu0 %4038, %v4006
    %v4040 = vpop.permute.xlu0 %4039
    %4041 = vset.pattern.permute.xlu0 2
    %4042 = vperm.xlu0 %4041, %v4007
    %v4043 = vpop.permute.xlu0 %4042
    %4044 = vset.pattern.permute.xlu0 2
    %4045 = vperm.xlu0 %4044, %v4008
    %v4046 = vpop.permute.xlu0 %4045
    %4047 = vset.pattern.permute.xlu0 2
    %4048 = vperm.xlu0 %4047, %v4009
    %v4049 = vpop.permute.xlu0 %4048
    %4050 = vset.pattern.permute.xlu0 2
    %4051 = vperm.xlu0 %4050, %v4010
    %v4052 = vpop.permute.xlu0 %4051
    %4053 = vset.pattern.permute.xlu0 2
    %4054 = vperm.xlu0 %4053, %v4011
    %v4055 = vpop.permute.xlu0 %4054
    %4056 = vset.pattern.permute.xlu0 2
    %4057 = vperm.xlu0 %4056, %v4012
    %v4058 = vpop.permute.xlu0 %4057
    %4059 = vset.pattern.permute.xlu0 2
    %4060 = vperm.xlu0 %4059, %v4013
    %v4061 = vpop.permute.xlu0 %4060
    %vm4062 = vcmp.eq.s32.totalorder %v4016, 1
    %vm4063 = vcmp.eq.s32.totalorder %v4019, 1
    %vm4064 = vcmp.eq.s32.totalorder %v4022, 1
    %vm4065 = vcmp.eq.s32.totalorder %v4025, 1
    %vm4066 = vcmp.eq.s32.totalorder %v4028, 1
    %vm4067 = vcmp.eq.s32.totalorder %v4031, 1
    %vm4068 = vcmp.eq.s32.totalorder %v4034, 1
    %vm4069 = vcmp.eq.s32.totalorder %v4037, 1
    %vm4070 = vcmp.eq.s32.totalorder %v4040, 1
    %vm4071 = vcmp.eq.s32.totalorder %v4043, 1
    %vm4072 = vcmp.eq.s32.totalorder %v4046, 1
    %vm4073 = vcmp.eq.s32.totalorder %v4049, 1
    %vm4074 = vcmp.eq.s32.totalorder %v4052, 1
    %vm4075 = vcmp.eq.s32.totalorder %v4055, 1
    %vm4076 = vcmp.eq.s32.totalorder %v4058, 1
    %vm4077 = vcmp.eq.s32.totalorder %v4061, 1
    %v4078 = vlaneseq
    %v4079 = vshrl.u32 %v4078, 7
    %v4080 = vsub.s32 0, %v4079
    %v4081 = vrot.slane %v3997, %v4080
    %v4082 = vsel %vm4062, %v4081, 0.0
    %v4083 = vsel %vm4063, %v4081, 0.0
    %v4084 = vsel %vm4064, %v4081, 0.0
    %v4085 = vsel %vm4065, %v4081, 0.0
    %v4086 = vsel %vm4066, %v4081, 0.0
    %v4087 = vsel %vm4067, %v4081, 0.0
    %v4088 = vsel %vm4068, %v4081, 0.0
    %v4089 = vsel %vm4069, %v4081, 0.0
    %v4090 = vsel %vm4070, %v4081, 0.0
    %v4091 = vsel %vm4071, %v4081, 0.0
    %v4092 = vsel %vm4072, %v4081, 0.0
    %v4093 = vsel %vm4073, %v4081, 0.0
    %v4094 = vsel %vm4074, %v4081, 0.0
    %v4095 = vsel %vm4075, %v4081, 0.0
    %v4096 = vsel %vm4076, %v4081, 0.0
    %v4097 = vsel %vm4077, %v4081, 0.0
    %v4098 = vadd.f32 %v3965, %v4082
    %v4099 = vadd.f32 %v3966, %v4083
    %v4100 = vadd.f32 %v3967, %v4084
    %v4101 = vadd.f32 %v3968, %v4085
    %v4102 = vadd.f32 %v3969, %v4086
    %v4103 = vadd.f32 %v3970, %v4087
    %v4104 = vadd.f32 %v3971, %v4088
    %v4105 = vadd.f32 %v3972, %v4089
    %v4106 = vadd.f32 %v3973, %v4090
    %v4107 = vadd.f32 %v3974, %v4091
    %v4108 = vadd.f32 %v3975, %v4092
    %v4109 = vadd.f32 %v3976, %v4093
    %v4110 = vadd.f32 %v3977, %v4094
    %v4111 = vadd.f32 %v3978, %v4095
    %v4112 = vadd.f32 %v3979, %v4096
    %v4113 = vadd.f32 %v3980, %v4097
    %vm4114 = vcmp.eq.f32.partialorder %v90, 2.0
    %vm4115 = vcmp.eq.f32.partialorder %v91, 2.0
    %vm4116 = vcmp.eq.f32.partialorder %v92, 2.0
    %vm4117 = vcmp.eq.f32.partialorder %v93, 2.0
    %vm4118 = vcmp.eq.f32.partialorder %v94, 2.0
    %vm4119 = vcmp.eq.f32.partialorder %v95, 2.0
    %vm4120 = vcmp.eq.f32.partialorder %v96, 2.0
    %vm4121 = vcmp.eq.f32.partialorder %v97, 2.0
    %vm4122 = vcmp.eq.f32.partialorder %v98, 2.0
    %vm4123 = vcmp.eq.f32.partialorder %v99, 2.0
    %vm4124 = vcmp.eq.f32.partialorder %v100, 2.0
    %vm4125 = vcmp.eq.f32.partialorder %v101, 2.0
    %vm4126 = vcmp.eq.f32.partialorder %v102, 2.0
    %vm4127 = vcmp.eq.f32.partialorder %v103, 2.0
    %vm4128 = vcmp.eq.f32.partialorder %v104, 2.0
    %vm4129 = vcmp.eq.f32.partialorder %v105, 2.0
    %v4130 = vld [vmem:[%s2 + $0x2] sm:$0x1]
    %v4131 = vsel %vm4114, 1, 0
    %v4132 = vsel %vm4115, 1, 0
    %v4133 = vsel %vm4116, 1, 0
    %v4134 = vsel %vm4117, 1, 0
    %v4135 = vsel %vm4118, 1, 0
    %v4136 = vsel %vm4119, 1, 0
    %v4137 = vsel %vm4120, 1, 0
    %v4138 = vsel %vm4121, 1, 0
    %v4139 = vsel %vm4122, 1, 0
    %v4140 = vsel %vm4123, 1, 0
    %v4141 = vsel %vm4124, 1, 0
    %v4142 = vsel %vm4125, 1, 0
    %v4143 = vsel %vm4126, 1, 0
    %v4144 = vsel %vm4127, 1, 0
    %v4145 = vsel %vm4128, 1, 0
    %v4146 = vsel %vm4129, 1, 0
    %4147 = vset.pattern.permute.xlu0 2
    %4148 = vperm.xlu0 %4147, %v4131
    %v4149 = vpop.permute.xlu0 %4148
    %4150 = vset.pattern.permute.xlu0 2
    %4151 = vperm.xlu0 %4150, %v4132
    %v4152 = vpop.permute.xlu0 %4151
    %4153 = vset.pattern.permute.xlu0 2
    %4154 = vperm.xlu0 %4153, %v4133
    %v4155 = vpop.permute.xlu0 %4154
    %4156 = vset.pattern.permute.xlu0 2
    %4157 = vperm.xlu0 %4156, %v4134
    %v4158 = vpop.permute.xlu0 %4157
    %4159 = vset.pattern.permute.xlu0 2
    %4160 = vperm.xlu0 %4159, %v4135
    %v4161 = vpop.permute.xlu0 %4160
    %4162 = vset.pattern.permute.xlu0 2
    %4163 = vperm.xlu0 %4162, %v4136
    %v4164 = vpop.permute.xlu0 %4163
    %4165 = vset.pattern.permute.xlu0 2
    %4166 = vperm.xlu0 %4165, %v4137
    %v4167 = vpop.permute.xlu0 %4166
    %4168 = vset.pattern.permute.xlu0 2
    %4169 = vperm.xlu0 %4168, %v4138
    %v4170 = vpop.permute.xlu0 %4169
    %4171 = vset.pattern.permute.xlu0 2
    %4172 = vperm.xlu0 %4171, %v4139
    %v4173 = vpop.permute.xlu0 %4172
    %4174 = vset.pattern.permute.xlu0 2
    %4175 = vperm.xlu0 %4174, %v4140
    %v4176 = vpop.permute.xlu0 %4175
    %4177 = vset.pattern.permute.xlu0 2
    %4178 = vperm.xlu0 %4177, %v4141
    %v4179 = vpop.permute.xlu0 %4178
    %4180 = vset.pattern.permute.xlu0 2
    %4181 = vperm.xlu0 %4180, %v4142
    %v4182 = vpop.permute.xlu0 %4181
    %4183 = vset.pattern.permute.xlu0 2
    %4184 = vperm.xlu0 %4183, %v4143
    %v4185 = vpop.permute.xlu0 %4184
    %4186 = vset.pattern.permute.xlu0 2
    %4187 = vperm.xlu0 %4186, %v4144
    %v4188 = vpop.permute.xlu0 %4187
    %4189 = vset.pattern.permute.xlu0 2
    %4190 = vperm.xlu0 %4189, %v4145
    %v4191 = vpop.permute.xlu0 %4190
    %4192 = vset.pattern.permute.xlu0 2
    %4193 = vperm.xlu0 %4192, %v4146
    %v4194 = vpop.permute.xlu0 %4193
    %vm4195 = vcmp.eq.s32.totalorder %v4149, 1
    %vm4196 = vcmp.eq.s32.totalorder %v4152, 1
    %vm4197 = vcmp.eq.s32.totalorder %v4155, 1
    %vm4198 = vcmp.eq.s32.totalorder %v4158, 1
    %vm4199 = vcmp.eq.s32.totalorder %v4161, 1
    %vm4200 = vcmp.eq.s32.totalorder %v4164, 1
    %vm4201 = vcmp.eq.s32.totalorder %v4167, 1
    %vm4202 = vcmp.eq.s32.totalorder %v4170, 1
    %vm4203 = vcmp.eq.s32.totalorder %v4173, 1
    %vm4204 = vcmp.eq.s32.totalorder %v4176, 1
    %vm4205 = vcmp.eq.s32.totalorder %v4179, 1
    %vm4206 = vcmp.eq.s32.totalorder %v4182, 1
    %vm4207 = vcmp.eq.s32.totalorder %v4185, 1
    %vm4208 = vcmp.eq.s32.totalorder %v4188, 1
    %vm4209 = vcmp.eq.s32.totalorder %v4191, 1
    %vm4210 = vcmp.eq.s32.totalorder %v4194, 1
    %v4211 = vlaneseq
    %v4212 = vshrl.u32 %v4211, 7
    %v4213 = vsub.s32 0, %v4212
    %v4214 = vrot.slane %v4130, %v4213
    %v4215 = vsel %vm4195, %v4214, 0.0
    %v4216 = vsel %vm4196, %v4214, 0.0
    %v4217 = vsel %vm4197, %v4214, 0.0
    %v4218 = vsel %vm4198, %v4214, 0.0
    %v4219 = vsel %vm4199, %v4214, 0.0
    %v4220 = vsel %vm4200, %v4214, 0.0
    %v4221 = vsel %vm4201, %v4214, 0.0
    %v4222 = vsel %vm4202, %v4214, 0.0
    %v4223 = vsel %vm4203, %v4214, 0.0
    %v4224 = vsel %vm4204, %v4214, 0.0
    %v4225 = vsel %vm4205, %v4214, 0.0
    %v4226 = vsel %vm4206, %v4214, 0.0
    %v4227 = vsel %vm4207, %v4214, 0.0
    %v4228 = vsel %vm4208, %v4214, 0.0
    %v4229 = vsel %vm4209, %v4214, 0.0
    %v4230 = vsel %vm4210, %v4214, 0.0
    %v4231 = vadd.f32 %v4098, %v4215
    %v4232 = vadd.f32 %v4099, %v4216
    %v4233 = vadd.f32 %v4100, %v4217
    %v4234 = vadd.f32 %v4101, %v4218
    %v4235 = vadd.f32 %v4102, %v4219
    %v4236 = vadd.f32 %v4103, %v4220
    %v4237 = vadd.f32 %v4104, %v4221
    %v4238 = vadd.f32 %v4105, %v4222
    %v4239 = vadd.f32 %v4106, %v4223
    %v4240 = vadd.f32 %v4107, %v4224
    %v4241 = vadd.f32 %v4108, %v4225
    %v4242 = vadd.f32 %v4109, %v4226
    %v4243 = vadd.f32 %v4110, %v4227
    %v4244 = vadd.f32 %v4111, %v4228
    %v4245 = vadd.f32 %v4112, %v4229
    %v4246 = vadd.f32 %v4113, %v4230
    %vm4247 = vcmp.eq.f32.partialorder %v90, 3.0
    %vm4248 = vcmp.eq.f32.partialorder %v91, 3.0
    %vm4249 = vcmp.eq.f32.partialorder %v92, 3.0
    %vm4250 = vcmp.eq.f32.partialorder %v93, 3.0
    %vm4251 = vcmp.eq.f32.partialorder %v94, 3.0
    %vm4252 = vcmp.eq.f32.partialorder %v95, 3.0
    %vm4253 = vcmp.eq.f32.partialorder %v96, 3.0
    %vm4254 = vcmp.eq.f32.partialorder %v97, 3.0
    %vm4255 = vcmp.eq.f32.partialorder %v98, 3.0
    %vm4256 = vcmp.eq.f32.partialorder %v99, 3.0
    %vm4257 = vcmp.eq.f32.partialorder %v100, 3.0
    %vm4258 = vcmp.eq.f32.partialorder %v101, 3.0
    %vm4259 = vcmp.eq.f32.partialorder %v102, 3.0
    %vm4260 = vcmp.eq.f32.partialorder %v103, 3.0
    %vm4261 = vcmp.eq.f32.partialorder %v104, 3.0
    %vm4262 = vcmp.eq.f32.partialorder %v105, 3.0
    %v4263 = vld [vmem:[%s2 + $0x3] sm:$0x1]
    %v4264 = vsel %vm4247, 1, 0
    %v4265 = vsel %vm4248, 1, 0
    %v4266 = vsel %vm4249, 1, 0
    %v4267 = vsel %vm4250, 1, 0
    %v4268 = vsel %vm4251, 1, 0
    %v4269 = vsel %vm4252, 1, 0
    %v4270 = vsel %vm4253, 1, 0
    %v4271 = vsel %vm4254, 1, 0
    %v4272 = vsel %vm4255, 1, 0
    %v4273 = vsel %vm4256, 1, 0
    %v4274 = vsel %vm4257, 1, 0
    %v4275 = vsel %vm4258, 1, 0
    %v4276 = vsel %vm4259, 1, 0
    %v4277 = vsel %vm4260, 1, 0
    %v4278 = vsel %vm4261, 1, 0
    %v4279 = vsel %vm4262, 1, 0
    %4280 = vset.pattern.permute.xlu0 2
    %4281 = vperm.xlu0 %4280, %v4264
    %v4282 = vpop.permute.xlu0 %4281
    %4283 = vset.pattern.permute.xlu0 2
    %4284 = vperm.xlu0 %4283, %v4265
    %v4285 = vpop.permute.xlu0 %4284
    %4286 = vset.pattern.permute.xlu0 2
    %4287 = vperm.xlu0 %4286, %v4266
    %v4288 = vpop.permute.xlu0 %4287
    %4289 = vset.pattern.permute.xlu0 2
    %4290 = vperm.xlu0 %4289, %v4267
    %v4291 = vpop.permute.xlu0 %4290
    %4292 = vset.pattern.permute.xlu0 2
    %4293 = vperm.xlu0 %4292, %v4268
    %v4294 = vpop.permute.xlu0 %4293
    %4295 = vset.pattern.permute.xlu0 2
    %4296 = vperm.xlu0 %4295, %v4269
    %v4297 = vpop.permute.xlu0 %4296
    %4298 = vset.pattern.permute.xlu0 2
    %4299 = vperm.xlu0 %4298, %v4270
    %v4300 = vpop.permute.xlu0 %4299
    %4301 = vset.pattern.permute.xlu0 2
    %4302 = vperm.xlu0 %4301, %v4271
    %v4303 = vpop.permute.xlu0 %4302
    %4304 = vset.pattern.permute.xlu0 2
    %4305 = vperm.xlu0 %4304, %v4272
    %v4306 = vpop.permute.xlu0 %4305
    %4307 = vset.pattern.permute.xlu0 2
    %4308 = vperm.xlu0 %4307, %v4273
    %v4309 = vpop.permute.xlu0 %4308
    %4310 = vset.pattern.permute.xlu0 2
    %4311 = vperm.xlu0 %4310, %v4274
    %v4312 = vpop.permute.xlu0 %4311
    %4313 = vset.pattern.permute.xlu0 2
    %4314 = vperm.xlu0 %4313, %v4275
    %v4315 = vpop.permute.xlu0 %4314
    %4316 = vset.pattern.permute.xlu0 2
    %4317 = vperm.xlu0 %4316, %v4276
    %v4318 = vpop.permute.xlu0 %4317
    %4319 = vset.pattern.permute.xlu0 2
    %4320 = vperm.xlu0 %4319, %v4277
    %v4321 = vpop.permute.xlu0 %4320
    %4322 = vset.pattern.permute.xlu0 2
    %4323 = vperm.xlu0 %4322, %v4278
    %v4324 = vpop.permute.xlu0 %4323
    %4325 = vset.pattern.permute.xlu0 2
    %4326 = vperm.xlu0 %4325, %v4279
    %v4327 = vpop.permute.xlu0 %4326
    %vm4328 = vcmp.eq.s32.totalorder %v4282, 1
    %vm4329 = vcmp.eq.s32.totalorder %v4285, 1
    %vm4330 = vcmp.eq.s32.totalorder %v4288, 1
    %vm4331 = vcmp.eq.s32.totalorder %v4291, 1
    %vm4332 = vcmp.eq.s32.totalorder %v4294, 1
    %vm4333 = vcmp.eq.s32.totalorder %v4297, 1
    %vm4334 = vcmp.eq.s32.totalorder %v4300, 1
    %vm4335 = vcmp.eq.s32.totalorder %v4303, 1
    %vm4336 = vcmp.eq.s32.totalorder %v4306, 1
    %vm4337 = vcmp.eq.s32.totalorder %v4309, 1
    %vm4338 = vcmp.eq.s32.totalorder %v4312, 1
    %vm4339 = vcmp.eq.s32.totalorder %v4315, 1
    %vm4340 = vcmp.eq.s32.totalorder %v4318, 1
    %vm4341 = vcmp.eq.s32.totalorder %v4321, 1
    %vm4342 = vcmp.eq.s32.totalorder %v4324, 1
    %vm4343 = vcmp.eq.s32.totalorder %v4327, 1
    %v4344 = vlaneseq
    %v4345 = vshrl.u32 %v4344, 7
    %v4346 = vsub.s32 0, %v4345
    %v4347 = vrot.slane %v4263, %v4346
    %v4348 = vsel %vm4328, %v4347, 0.0
    %v4349 = vsel %vm4329, %v4347, 0.0
    %v4350 = vsel %vm4330, %v4347, 0.0
    %v4351 = vsel %vm4331, %v4347, 0.0
    %v4352 = vsel %vm4332, %v4347, 0.0
    %v4353 = vsel %vm4333, %v4347, 0.0
    %v4354 = vsel %vm4334, %v4347, 0.0
    %v4355 = vsel %vm4335, %v4347, 0.0
    %v4356 = vsel %vm4336, %v4347, 0.0
    %v4357 = vsel %vm4337, %v4347, 0.0
    %v4358 = vsel %vm4338, %v4347, 0.0
    %v4359 = vsel %vm4339, %v4347, 0.0
    %v4360 = vsel %vm4340, %v4347, 0.0
    %v4361 = vsel %vm4341, %v4347, 0.0
    %v4362 = vsel %vm4342, %v4347, 0.0
    %v4363 = vsel %vm4343, %v4347, 0.0
    %v4364 = vadd.f32 %v4231, %v4348
    %v4365 = vadd.f32 %v4232, %v4349
    %v4366 = vadd.f32 %v4233, %v4350
    %v4367 = vadd.f32 %v4234, %v4351
    %v4368 = vadd.f32 %v4235, %v4352
    %v4369 = vadd.f32 %v4236, %v4353
    %v4370 = vadd.f32 %v4237, %v4354
    %v4371 = vadd.f32 %v4238, %v4355
    %v4372 = vadd.f32 %v4239, %v4356
    %v4373 = vadd.f32 %v4240, %v4357
    %v4374 = vadd.f32 %v4241, %v4358
    %v4375 = vadd.f32 %v4242, %v4359
    %v4376 = vadd.f32 %v4243, %v4360
    %v4377 = vadd.f32 %v4244, %v4361
    %v4378 = vadd.f32 %v4245, %v4362
    %v4379 = vadd.f32 %v4246, %v4363
    %v4380 = vstv %s112
    %v4381 = vmul.f32 %v4380, %v4364
    %v4382 = vmul.f32 %v4380, %v4365
    %v4383 = vmul.f32 %v4380, %v4366
    %v4384 = vmul.f32 %v4380, %v4367
    %v4385 = vmul.f32 %v4380, %v4368
    %v4386 = vmul.f32 %v4380, %v4369
    %v4387 = vmul.f32 %v4380, %v4370
    %v4388 = vmul.f32 %v4380, %v4371
    %v4389 = vmul.f32 %v4380, %v4372
    %v4390 = vmul.f32 %v4380, %v4373
    %v4391 = vmul.f32 %v4380, %v4374
    %v4392 = vmul.f32 %v4380, %v4375
    %v4393 = vmul.f32 %v4380, %v4376
    %v4394 = vmul.f32 %v4380, %v4377
    %v4395 = vmul.f32 %v4380, %v4378
    %v4396 = vmul.f32 %v4380, %v4379
    %v4397 = vadd.f32 %v3832, %v4381
    %v4398 = vadd.f32 %v3833, %v4382
    %v4399 = vadd.f32 %v3834, %v4383
    %v4400 = vadd.f32 %v3835, %v4384
    %v4401 = vadd.f32 %v3836, %v4385
    %v4402 = vadd.f32 %v3837, %v4386
    %v4403 = vadd.f32 %v3838, %v4387
    %v4404 = vadd.f32 %v3839, %v4388
    %v4405 = vadd.f32 %v3840, %v4389
    %v4406 = vadd.f32 %v3841, %v4390
    %v4407 = vadd.f32 %v3842, %v4391
    %v4408 = vadd.f32 %v3843, %v4392
    %v4409 = vadd.f32 %v3844, %v4393
    %v4410 = vadd.f32 %v3845, %v4394
    %v4411 = vadd.f32 %v3846, %v4395
    %v4412 = vadd.f32 %v3847, %v4396
    loop: start=0, step=1, limit=128
    $region55: #{embeddings_forward.1} parent=1 // loop_pre_header
      _
    $region56: #{embeddings_forward.1} parent=1 // loop_header
      %s4414 = sphi 0, %s4418
      %p4415 = scmp.ge.s32.totalorder %s4414, 128
    $region57: #{embeddings_forward.1} parent=1 // loop_header_branch
      %4417 = sbr.rel (%p4415) target = $region61
    $region58: #{embeddings_forward.1} parent=1 // loop_body
      %4420 = dma.done [#allocation3], 16
    $region59: #{embeddings_forward.1} parent=1 // loop_footer
      %s4418 = sadd.s32 1, %s4414
    $region60: #{embeddings_forward.1} parent=1 // loop_footer_branch
      %4413 = sbr.rel target = $region56
    $region61: #{embeddings_forward.1} parent=1 // loop_exit
      _
    %v4421 = vld [vmem:[#allocation2] sm:$0xff]
    %v4422 = vld [vmem:[#allocation2 + $0x8] sm:$0xff]
    %v4423 = vld [vmem:[#allocation2 + $0x10] sm:$0xff]
    %v4424 = vld [vmem:[#allocation2 + $0x18] sm:$0xff]
    %v4425 = vld [vmem:[#allocation2 + $0x20] sm:$0xff]
    %v4426 = vld [vmem:[#allocation2 + $0x28] sm:$0xff]
    %v4427 = vld [vmem:[#allocation2 + $0x30] sm:$0xff]
    %v4428 = vld [vmem:[#allocation2 + $0x38] sm:$0xff]
    %v4429 = vld [vmem:[#allocation2 + $0x40] sm:$0xff]
    %v4430 = vld [vmem:[#allocation2 + $0x48] sm:$0xff]
    %v4431 = vld [vmem:[#allocation2 + $0x50] sm:$0xff]
    %v4432 = vld [vmem:[#allocation2 + $0x58] sm:$0xff]
    %v4433 = vld [vmem:[#allocation2 + $0x60] sm:$0xff]
    %v4434 = vld [vmem:[#allocation2 + $0x68] sm:$0xff]
    %v4435 = vld [vmem:[#allocation2 + $0x70] sm:$0xff]
    %v4436 = vld [vmem:[#allocation2 + $0x78] sm:$0xff]
    %v4437 = vadd.f32 %v4421, %v4397
    %v4438 = vadd.f32 %v4422, %v4398
    %v4439 = vadd.f32 %v4423, %v4399
    %v4440 = vadd.f32 %v4424, %v4400
    %v4441 = vadd.f32 %v4425, %v4401
    %v4442 = vadd.f32 %v4426, %v4402
    %v4443 = vadd.f32 %v4427, %v4403
    %v4444 = vadd.f32 %v4428, %v4404
    %v4445 = vadd.f32 %v4429, %v4405
    %v4446 = vadd.f32 %v4430, %v4406
    %v4447 = vadd.f32 %v4431, %v4407
    %v4448 = vadd.f32 %v4432, %v4408
    %v4449 = vadd.f32 %v4433, %v4409
    %v4450 = vadd.f32 %v4434, %v4410
    %v4451 = vadd.f32 %v4435, %v4411
    %v4452 = vadd.f32 %v4436, %v4412
    %4453 = vst [vmem:[%s5] sm:$0xff] %v4437
    %4454 = vst [vmem:[%s5 + $0x8] sm:$0xff] %v4438
    %4455 = vst [vmem:[%s5 + $0x10] sm:$0xff] %v4439
    %4456 = vst [vmem:[%s5 + $0x18] sm:$0xff] %v4440
    %4457 = vst [vmem:[%s5 + $0x20] sm:$0xff] %v4441
    %4458 = vst [vmem:[%s5 + $0x28] sm:$0xff] %v4442
    %4459 = vst [vmem:[%s5 + $0x30] sm:$0xff] %v4443
    %4460 = vst [vmem:[%s5 + $0x38] sm:$0xff] %v4444
    %4461 = vst [vmem:[%s5 + $0x40] sm:$0xff] %v4445
    %4462 = vst [vmem:[%s5 + $0x48] sm:$0xff] %v4446
    %4463 = vst [vmem:[%s5 + $0x50] sm:$0xff] %v4447
    %4464 = vst [vmem:[%s5 + $0x58] sm:$0xff] %v4448
    %4465 = vst [vmem:[%s5 + $0x60] sm:$0xff] %v4449
    %4466 = vst [vmem:[%s5 + $0x68] sm:$0xff] %v4450
    %4467 = vst [vmem:[%s5 + $0x70] sm:$0xff] %v4451
    %4468 = vst [vmem:[%s5 + $0x78] sm:$0xff] %v4452
    // Predicated region
    $region62: #{embeddings_forward.1} parent=1 // pred_check
      _
    $region63: #{embeddings_forward.1} parent=1 // pred_check_branch
      %4470 = sbr.rel (0) target = $region65
    $region64: #{embeddings_forward.1} parent=1 // pred_region
      _
    $region65: #{embeddings_forward.1} parent=1 // pred_fallthru
      _
    // Predicated region
    $region66: #{embeddings_forward.1} parent=1 // pred_check
      _
    $region67: #{embeddings_forward.1} parent=1 // pred_check_branch
      %4472 = sbr.rel (0) target = $region69
    $region68: #{embeddings_forward.1} parent=1 // pred_region
      _
    $region69: #{embeddings_forward.1} parent=1 // pred_fallthru
      _
    %4473 = vsyncpa [#allocation7], 1
  %4474 = vsyncmov [#allocation3]
  %s4475 = vpop.sfrf %4474
  %p4476 = scmp.eq.s32.totalorder %s4475, 0
  %p4477 = pneg %p4476
  %4479 = shalt.err (%p4477)

</llo_original>
